<compile_context>
chip_gen: v7x
topology: tpu7x:2x2x1
jax: 0.10.0
libtpu: 0.0.40
codegen_flags: <defaults>
</compile_context>

<pallas_src>
import jax
import jax.numpy as jnp
from jax.experimental import pallas as pl
from jax.experimental.pallas import tpu as pltpu

IN_FEATURES = 8192
H1 = 16
H2 = 8


def _fused_kernel(x_ref, w1_ref, b1_ref, w2_ref, b2_ref, w3_ref, b3_ref, o_ref):
    # x tile: (TB, 8192) f32 -> bf16 so the big matmul runs the bf16 MXU path.
    x = x_ref[...].astype(jnp.bfloat16)

    # Fused Linear(8192, classes*16) + bias + ReLU (padded cols are zero).
    h1 = jnp.dot(x, w1_ref[...], preferred_element_type=jnp.float32) + b1_ref[...]
    h1 = jnp.maximum(h1, 0.0)

    # Block-diagonal Linear(16->8 per branch) with BN1 pre-folded, + ReLU.
    h2 = jnp.dot(h1, w2_ref[...], preferred_element_type=jnp.float32) + b2_ref[...]
    h2 = jnp.maximum(h2, 0.0)

    # Block-diagonal Linear(8->1 per branch) with BN2 pre-folded.
    out = jnp.dot(h2, w3_ref[...], preferred_element_type=jnp.float32) + b3_ref[...]
    o_ref[...] = out.astype(o_ref.dtype)


def parallel_branches_pallas(x, packed):
    """x: (B, 8192) f32. packed: dict from pack_params. Returns (B, classes) f32."""
    B, IN = x.shape
    assert IN == IN_FEATURES

    w1 = packed["w1"]            # (IN, N1) bf16, lane-padded fused weight
    N1 = w1.shape[1]
    w2 = packed["w2"]            # (N1, N2) f32, block-diagonal, BN1 folded
    N2 = w2.shape[1]
    w3 = packed["w3"]            # (N2, classes) f32, block-diagonal, BN2 folded
    classes = w3.shape[1]

    # Batch tiling: stream x over a "parallel" grid axis; weights stay resident.
    TB = 256 if B >= 256 else B
    B_pad = -(-B // TB) * TB
    xp = x if B_pad == B else jnp.pad(x, ((0, B_pad - B), (0, 0)))

    out = pl.pallas_call(
        _fused_kernel,
        out_shape=jax.ShapeDtypeStruct((B_pad, classes), jnp.float32),
        grid_spec=pltpu.PrefetchScalarGridSpec(
            num_scalar_prefetch=0,
            grid=(B_pad // TB,),
            in_specs=[
                pl.BlockSpec((TB, IN), lambda i: (i, 0)),       # x (streamed)
                pl.BlockSpec((IN, N1), lambda i: (0, 0)),       # W1 fused (resident)
                pl.BlockSpec((1, N1), lambda i: (0, 0)),        # b1 fused
                pl.BlockSpec((N1, N2), lambda i: (0, 0)),       # W2 block-diag
                pl.BlockSpec((1, N2), lambda i: (0, 0)),        # b2 (BN1 folded)
                pl.BlockSpec((N2, classes), lambda i: (0, 0)),  # W3 block-diag
                pl.BlockSpec((1, classes), lambda i: (0, 0)),   # b3 (BN2 folded)
            ],
            out_specs=pl.BlockSpec((TB, classes), lambda i: (i, 0)),
        ),
        compiler_params=pltpu.CompilerParams(
            dimension_semantics=("parallel",),
            vmem_limit_bytes=32 * 1024 * 1024,
        ),
    )(xp, w1, packed["b1"], w2, packed["b2"], w3, packed["b3"])

    return out[:B]


def make_params(key, classes, eps=1e-5):
    """Deterministic per-branch parameters (PyTorch-layout analog, unfolded)."""
    ks = jax.random.split(key, 16)

    def normal(k, shape, scale=0.02):
        return scale * jax.random.normal(k, shape, dtype=jnp.float32)

    # Linear weights stored as (in, out) per branch.
    w1 = normal(ks[0], (classes, IN_FEATURES, H1))
    b1 = normal(ks[1], (classes, H1))
    w2 = normal(ks[2], (classes, H1, H2), scale=0.1)
    b2 = normal(ks[3], (classes, H2))
    w3 = normal(ks[4], (classes, H2, 1), scale=0.1)
    b3 = normal(ks[5], (classes, 1))

    # BatchNorm1d(16) eval-mode affine: y = h*s1 + t1
    g1 = 1.0 + normal(ks[6], (classes, H1), scale=0.1)
    be1 = normal(ks[7], (classes, H1), scale=0.1)
    m1 = normal(ks[8], (classes, H1), scale=0.1)
    v1 = 1.0 + 0.1 * jax.random.uniform(ks[9], (classes, H1), dtype=jnp.float32)
    s1 = g1 / jnp.sqrt(v1 + eps)
    t1 = be1 - m1 * s1

    # BatchNorm1d(8) eval-mode affine
    g2 = 1.0 + normal(ks[10], (classes, H2), scale=0.1)
    be2 = normal(ks[11], (classes, H2), scale=0.1)
    m2 = normal(ks[12], (classes, H2), scale=0.1)
    v2 = 1.0 + 0.1 * jax.random.uniform(ks[13], (classes, H2), dtype=jnp.float32)
    s2 = g2 / jnp.sqrt(v2 + eps)
    t2 = be2 - m2 * s2

    return dict(w1=w1, b1=b1, s1=s1, t1=t1,
                w2=w2, b2=b2, s2=s2, t2=t2,
                w3=w3, b3=b3)


def pack_params(p):
    """Host-side packing: fuse W1 across branches (bf16, lane-padded), fold BN
    into the next Linear, and build block-diagonal tail weights."""
    classes = p["w1"].shape[0]
    n1_raw = classes * H1
    N1 = ((n1_raw + 127) // 128) * 128          # lane-dense fused width
    N2 = classes * H2

    # Fused first layer: (IN, classes*16), zero-padded to N1 lanes, bf16.
    w1_all = jnp.transpose(p["w1"], (1, 0, 2)).reshape(IN_FEATURES, n1_raw)
    w1_all = jnp.pad(w1_all, ((0, 0), (0, N1 - n1_raw))).astype(jnp.bfloat16)
    b1_all = jnp.pad(p["b1"].reshape(1, n1_raw), ((0, 0), (0, N1 - n1_raw)))

    # Fold BN1 into Linear2: W2' = diag(s1) @ W2 ; b2' = b2 + t1 @ W2
    w2f = p["s1"][:, :, None] * p["w2"]                                # (C,16,8)
    b2f = p["b2"] + jnp.einsum("kh,kho->ko", p["t1"], p["w2"])         # (C,8)
    w2_blk = jnp.zeros((N1, N2), jnp.float32)
    for k in range(classes):
        w2_blk = w2_blk.at[k * H1:(k + 1) * H1, k * H2:(k + 1) * H2].set(w2f[k])
    b2_all = b2f.reshape(1, N2)

    # Fold BN2 into Linear3: W3' = diag(s2) @ W3 ; b3' = b3 + t2 @ W3
    w3f = p["s2"][:, :, None] * p["w3"]                                # (C,8,1)
    b3f = p["b3"] + jnp.einsum("kh,kho->ko", p["t2"], p["w3"])         # (C,1)
    w3_blk = jnp.zeros((N2, classes), jnp.float32)
    for k in range(classes):
        w3_blk = w3_blk.at[k * H2:(k + 1) * H2, k:k + 1].set(w3f[k])
    b3_all = b3f.reshape(1, classes)

    return dict(w1=w1_all, b1=b1_all, w2=w2_blk, b2=b2_all, w3=w3_blk, b3=b3_all)


def parallel_branches_ref(x, p):
    """Pure-JAX reference of the original (unfolded) eval-mode forward.
    First matmul uses the same bf16 weights/activations (f32 accumulate) as the
    kernel so the comparison is apples-to-apples."""
    classes = p["w1"].shape[0]
    xb = x.astype(jnp.bfloat16)
    cols = []
    for k in range(classes):
        h1 = jnp.dot(xb, p["w1"][k].astype(jnp.bfloat16),
                     preferred_element_type=jnp.float32) + p["b1"][k]
        h1 = jnp.maximum(h1, 0.0)
        h1 = h1 * p["s1"][k] + p["t1"][k]               # BN1 (eval), Dropout = id
        h2 = jnp.maximum(h1 @ p["w2"][k] + p["b2"][k], 0.0)
        h2 = h2 * p["s2"][k] + p["t2"][k]               # BN2 (eval), Dropout = id
        cols.append(h2 @ p["w3"][k] + p["b3"][k])
    return jnp.concatenate(cols, axis=1)


if __name__ == "__main__":
    classes = 4
    B = 8
    key = jax.random.PRNGKey(0)
    kx, kp = jax.random.split(key)

    x = jax.random.normal(kx, (B, IN_FEATURES), dtype=jnp.float32)
    params = make_params(kp, classes)
    packed = pack_params(params)

    y = parallel_branches_pallas(x, packed)
    y = jax.block_until_ready(y)

    y_ref = parallel_branches_ref(x, params)
    assert y.shape == (B, classes), y.shape
    assert jnp.allclose(y, y_ref, atol=1e-3, rtol=1e-3), (y, y_ref)

    print("KERNEL_OK")
</pallas_src>

<mosaic_0001>
module attributes {stable_mosaic.version = 11 : i64} {
  func.func @_fused_kernel(%arg0: i32, %arg1: memref<8x8192xf32, #tpu.memory_space<vmem>>, %arg2: memref<8192x128xbf16, #tpu.memory_space<vmem>>, %arg3: memref<1x128xf32, #tpu.memory_space<vmem>>, %arg4: memref<128x32xf32, #tpu.memory_space<vmem>>, %arg5: memref<1x32xf32, #tpu.memory_space<vmem>>, %arg6: memref<32x4xf32, #tpu.memory_space<vmem>>, %arg7: memref<1x4xf32, #tpu.memory_space<vmem>>, %arg8: memref<8x4xf32, #tpu.memory_space<vmem>>) attributes {dimension_semantics = [#tpu.dimension_semantics<parallel>], iteration_bounds = array<i64: 1>, scalar_prefetch = 0 : i64, scratch_operands = 0 : i64, tpu.core_type = #tpu.core_type<tc>, window_params = [{transform_indices = @transform_0, window_bounds = array<i64: 8, 8192>}, {pipeline_mode = #tpu.pipeline_mode<synchronous>, transform_indices = @transform_1, window_bounds = array<i64: 8192, 128>}, {pipeline_mode = #tpu.pipeline_mode<synchronous>, transform_indices = @transform_2, window_bounds = array<i64: 1, 128>}, {pipeline_mode = #tpu.pipeline_mode<synchronous>, transform_indices = @transform_3, window_bounds = array<i64: 128, 32>}, {pipeline_mode = #tpu.pipeline_mode<synchronous>, transform_indices = @transform_4, window_bounds = array<i64: 1, 32>}, {pipeline_mode = #tpu.pipeline_mode<synchronous>, transform_indices = @transform_5, window_bounds = array<i64: 32, 4>}, {pipeline_mode = #tpu.pipeline_mode<synchronous>, transform_indices = @transform_6, window_bounds = array<i64: 1, 4>}, {transform_indices = @transform_7, window_bounds = array<i64: 8, 4>}]} {
    %c0 = arith.constant 0 : index
    %c0_0 = arith.constant 0 : index
    %0 = vector.load %arg1[%c0, %c0_0] : memref<8x8192xf32, #tpu.memory_space<vmem>>, vector<8x8192xf32>
    %1 = arith.truncf %0 : vector<8x8192xf32> to vector<8x8192xbf16>
    %c0_1 = arith.constant 0 : index
    %c0_2 = arith.constant 0 : index
    %2 = vector.load %arg2[%c0_1, %c0_2] : memref<8192x128xbf16, #tpu.memory_space<vmem>>, vector<8192x128xbf16>
    %cst = arith.constant dense<0.000000e+00> : vector<8x128xf32>
    %3 = tpu.matmul %1, %2, %cst {dimension_numbers = #tpu.dot_dimension_numbers<[1], [0], [0], [1], [0, 0, 1, 1], [], []>} : vector<8x8192xbf16>, vector<8192x128xbf16>, vector<8x128xf32> -> vector<8x128xf32>
    %c0_3 = arith.constant 0 : index
    %c0_4 = arith.constant 0 : index
    %4 = vector.load %arg3[%c0_3, %c0_4] : memref<1x128xf32, #tpu.memory_space<vmem>>, vector<1x128xf32>
    %5 = vector.broadcast %4 : vector<1x128xf32> to vector<8x128xf32>
    %6 = arith.addf %3, %5 : vector<8x128xf32>
    %cst_5 = arith.constant 0.000000e+00 : f32
    %7 = vector.broadcast %cst_5 : f32 to vector<8x128xf32>
    %8 = arith.maximumf %6, %7 : vector<8x128xf32>
    %c0_6 = arith.constant 0 : index
    %c0_7 = arith.constant 0 : index
    %9 = vector.load %arg4[%c0_6, %c0_7] : memref<128x32xf32, #tpu.memory_space<vmem>>, vector<128x32xf32>
    %cst_8 = arith.constant dense<0.000000e+00> : vector<8x32xf32>
    %10 = tpu.matmul %8, %9, %cst_8 {dimension_numbers = #tpu.dot_dimension_numbers<[1], [0], [0], [1], [0, 0, 1, 1], [], []>} : vector<8x128xf32>, vector<128x32xf32>, vector<8x32xf32> -> vector<8x32xf32>
    %c0_9 = arith.constant 0 : index
    %c0_10 = arith.constant 0 : index
    %11 = vector.load %arg5[%c0_9, %c0_10] : memref<1x32xf32, #tpu.memory_space<vmem>>, vector<1x32xf32>
    %12 = vector.broadcast %11 : vector<1x32xf32> to vector<8x32xf32>
    %13 = arith.addf %10, %12 : vector<8x32xf32>
    %cst_11 = arith.constant 0.000000e+00 : f32
    %14 = vector.broadcast %cst_11 : f32 to vector<8x32xf32>
    %15 = arith.maximumf %13, %14 : vector<8x32xf32>
    %c0_12 = arith.constant 0 : index
    %c0_13 = arith.constant 0 : index
    %16 = vector.load %arg6[%c0_12, %c0_13] : memref<32x4xf32, #tpu.memory_space<vmem>>, vector<32x4xf32>
    %cst_14 = arith.constant dense<0.000000e+00> : vector<8x4xf32>
    %17 = tpu.matmul %15, %16, %cst_14 {dimension_numbers = #tpu.dot_dimension_numbers<[1], [0], [0], [1], [0, 0, 1, 1], [], []>} : vector<8x32xf32>, vector<32x4xf32>, vector<8x4xf32> -> vector<8x4xf32>
    %c0_15 = arith.constant 0 : index
    %c0_16 = arith.constant 0 : index
    %18 = vector.load %arg7[%c0_15, %c0_16] : memref<1x4xf32, #tpu.memory_space<vmem>>, vector<1x4xf32>
    %19 = vector.broadcast %18 : vector<1x4xf32> to vector<8x4xf32>
    %20 = arith.addf %17, %19 : vector<8x4xf32>
    %c0_17 = arith.constant 0 : index
    %c0_18 = arith.constant 0 : index
    %21 = vector.load %arg8[%c0_17, %c0_18] : memref<8x4xf32, #tpu.memory_space<vmem>>, vector<8x4xf32>
    tpu.vector_store %arg8[%c0_17, %c0_18], %20 {strides = array<i32>} : memref<8x4xf32, #tpu.memory_space<vmem>>, vector<8x4xf32>,
    return
  }
  func.func @transform_0(%arg0: i32) -> (i32, i32) {
    %c0_i32 = arith.constant 0 : i32
    %c0_i32_0 = arith.constant 0 : i32
    return %arg0, %c0_i32 : i32, i32
  }
  func.func @transform_1(%arg0: i32) -> (i32, i32) {
    %c0_i32 = arith.constant 0 : i32
    %c0_i32_0 = arith.constant 0 : i32
    %c0_i32_1 = arith.constant 0 : i32
    return %c0_i32, %c0_i32_0 : i32, i32
  }
  func.func @transform_2(%arg0: i32) -> (i32, i32) {
    %c0_i32 = arith.constant 0 : i32
    %c0_i32_0 = arith.constant 0 : i32
    %c0_i32_1 = arith.constant 0 : i32
    return %c0_i32, %c0_i32_0 : i32, i32
  }
  func.func @transform_3(%arg0: i32) -> (i32, i32) {
    %c0_i32 = arith.constant 0 : i32
    %c0_i32_0 = arith.constant 0 : i32
    %c0_i32_1 = arith.constant 0 : i32
    return %c0_i32, %c0_i32_0 : i32, i32
  }
  func.func @transform_4(%arg0: i32) -> (i32, i32) {
    %c0_i32 = arith.constant 0 : i32
    %c0_i32_0 = arith.constant 0 : i32
    %c0_i32_1 = arith.constant 0 : i32
    return %c0_i32, %c0_i32_0 : i32, i32
  }
  func.func @transform_5(%arg0: i32) -> (i32, i32) {
    %c0_i32 = arith.constant 0 : i32
    %c0_i32_0 = arith.constant 0 : i32
    %c0_i32_1 = arith.constant 0 : i32
    return %c0_i32, %c0_i32_0 : i32, i32
  }
  func.func @transform_6(%arg0: i32) -> (i32, i32) {
    %c0_i32 = arith.constant 0 : i32
    %c0_i32_0 = arith.constant 0 : i32
    %c0_i32_1 = arith.constant 0 : i32
    return %c0_i32, %c0_i32_0 : i32, i32
  }
  func.func @transform_7(%arg0: i32) -> (i32, i32) {
    %c0_i32 = arith.constant 0 : i32
    %c0_i32_0 = arith.constant 0 : i32
    return %arg0, %c0_i32 : i32, i32
  }
}

</mosaic_0001>

<llo_original>
// kernel: tpu_custom_call.1
$region0: #{tpu_custom_call.1}
  #allocation0 [shape = 'u32[]', space=smem, size = 0x4, offset = 0x4, fixed_abs, tag = 'smem constant byte address 0x4 - core index']
  #allocation1 [shape = 'u32[144,128]{1,0:T(1,128)}', space=vmem, size = 0x12000, scoped, tag = 'internal scratch']
  %s0 = inlined_call_operand.hbm [shape: f32[8,8192], index: 0, kind: input, shape index: {}]
  %s1 = inlined_call_operand.hbm [shape: bf16[8192,128], index: 1, kind: input, shape index: {}]
  %s2 = inlined_call_operand.hbm [shape: f32[1,128], index: 2, kind: input, shape index: {}]
  %s3 = inlined_call_operand.vmem [shape: f32[128,32], index: 3, kind: input, shape index: {}]
  %s4 = inlined_call_operand.hbm [shape: f32[1,32], index: 4, kind: input, shape index: {}]
  %s5 = inlined_call_operand.vmem [shape: f32[32,4], index: 5, kind: input, shape index: {}]
  %s6 = inlined_call_operand.hbm [shape: f32[1,4], index: 6, kind: input, shape index: {}]
  %s7 = inlined_call_operand.vmem [shape: f32[8,4], index: 7, kind: output, shape index: {}]
  %s8 = sld [smem:[#allocation0]]
  $region58: #{tpu_custom_call.1} parent=0
    _
  %s10 = ssub.s32 1, %s8
  %s11 = scalar_select 0, %s10, %s8
  $region1: #{tpu_custom_call.1} parent=0
    #allocation2 [shape = 'u8[262144]{0}', space=vmem, size = 0x40000, scoped, tag = 'input window, operand 0, single buffered']
    #allocation3 [shape = 's32[1]{0}', space=sflag, size = 0x4, scoped, tag = 'scoped memory for tpu_custom_call.1']
    #allocation4 [shape = 'u8[2097152]{0}', space=vmem, size = 0x200000, scoped, tag = 'input window, operand 1, single buffered']
    #allocation5 [shape = 's32[1]{0}', space=sflag, size = 0x4, scoped, tag = 'scoped memory for tpu_custom_call.1']
    #allocation6 [shape = 'u8[512]{0}', space=vmem, size = 0x400, scoped, tag = 'input window, operand 2, single buffered']
    #allocation7 [shape = 'u8[512]{0}', space=vmem, size = 0x400, scoped, tag = 'input window, operand 4, single buffered']
    #allocation8 [shape = 's32[1]{0}', space=sflag, size = 0x4, scoped, tag = 'scoped memory for tpu_custom_call.1']
    #allocation9 [shape = 'u8[512]{0}', space=vmem, size = 0x400, scoped, tag = 'input window, operand 6, single buffered']
    %12 = vsyncpa [#allocation3], 0
    %13 = vsyncpa [#allocation5], 0
    %14 = vsyncpa [#allocation8], 0
    // Predicated region
    $region2: #{tpu_custom_call.1} parent=1 // pred_check
      _
    $region3: #{tpu_custom_call.1} parent=1 // pred_check_branch
      %16 = sbr.rel (0) target = $region5
    $region4: #{tpu_custom_call.1} parent=1 // pred_region
      %s18 = ssub.s32 8192, 8192
      %19 = vsyncadd [#allocation3], %s18
      %s21 = sshll.u32 [#allocation2], 4
      %s22 = int_to_ptr.vmem [resolvable:$true] %s21
      %24 = dma.hbm_to_vmem [thread:$0]  %s0, 8192, %s22, [#allocation3]
    $region5: #{tpu_custom_call.1} parent=1 // pred_fallthru
      _
    // Predicated region
    $region6: #{tpu_custom_call.1} parent=1 // pred_check
      _
    $region7: #{tpu_custom_call.1} parent=1 // pred_check_branch
      %26 = sbr.rel (0) target = $region9
    $region8: #{tpu_custom_call.1} parent=1 // pred_region
      %s28 = ssub.s32 65536, 65536
      %29 = vsyncadd [#allocation5], %s28
      %s30 = sshll.u32 [#allocation4], 4
      %s31 = int_to_ptr.vmem [resolvable:$true] %s30
      %36 = dma.hbm_to_vmem [thread:$0]  %s1, 65536, %s31, [#allocation5], 64, 64, 4
    $region9: #{tpu_custom_call.1} parent=1 // pred_fallthru
      _
    // Predicated region
    $region10: #{tpu_custom_call.1} parent=1 // pred_check
      _
    $region11: #{tpu_custom_call.1} parent=1 // pred_check_branch
      %38 = sbr.rel (0) target = $region13
    $region12: #{tpu_custom_call.1} parent=1 // pred_region
      %s40 = ssub.s32 16, 16
      %41 = vsyncadd [#allocation5], %s40
      %s43 = sshll.u32 [#allocation6], 4
      %s44 = int_to_ptr.vmem [resolvable:$true] %s43
      %46 = dma.hbm_to_vmem [thread:$0]  %s2, 16, %s44, [#allocation5]
    $region13: #{tpu_custom_call.1} parent=1 // pred_fallthru
      _
    // Predicated region
    $region14: #{tpu_custom_call.1} parent=1 // pred_check
      _
    $region15: #{tpu_custom_call.1} parent=1 // pred_check_branch
      %48 = sbr.rel (0) target = $region17
    $region16: #{tpu_custom_call.1} parent=1 // pred_region
      _
    $region17: #{tpu_custom_call.1} parent=1 // pred_fallthru
      _
    // Predicated region
    $region18: #{tpu_custom_call.1} parent=1 // pred_check
      _
    $region19: #{tpu_custom_call.1} parent=1 // pred_check_branch
      %50 = sbr.rel (0) target = $region21
    $region20: #{tpu_custom_call.1} parent=1 // pred_region
      %s52 = ssub.s32 16, 16
      %53 = vsyncadd [#allocation8], %s52
      %s55 = sshll.u32 [#allocation7], 4
      %s56 = int_to_ptr.vmem [resolvable:$true] %s55
      %58 = dma.hbm_to_vmem [thread:$0]  %s4, 16, %s56, [#allocation8]
    $region21: #{tpu_custom_call.1} parent=1 // pred_fallthru
      _
    // Predicated region
    $region22: #{tpu_custom_call.1} parent=1 // pred_check
      _
    $region23: #{tpu_custom_call.1} parent=1 // pred_check_branch
      %60 = sbr.rel (0) target = $region25
    $region24: #{tpu_custom_call.1} parent=1 // pred_region
      _
    $region25: #{tpu_custom_call.1} parent=1 // pred_fallthru
      _
    // Predicated region
    $region26: #{tpu_custom_call.1} parent=1 // pred_check
      _
    $region27: #{tpu_custom_call.1} parent=1 // pred_check_branch
      %62 = sbr.rel (0) target = $region29
    $region28: #{tpu_custom_call.1} parent=1 // pred_region
      %s64 = ssub.s32 16, 16
      %65 = vsyncadd [#allocation8], %s64
      %s67 = sshll.u32 [#allocation9], 4
      %s68 = int_to_ptr.vmem [resolvable:$true] %s67
      %70 = dma.hbm_to_vmem [thread:$0]  %s6, 16, %s68, [#allocation8]
    $region29: #{tpu_custom_call.1} parent=1 // pred_fallthru
      _
    // Predicated region
    $region30: #{tpu_custom_call.1} parent=1 // pred_check
      _
    $region31: #{tpu_custom_call.1} parent=1 // pred_check_branch
      %72 = sbr.rel (0) target = $region33
    $region32: #{tpu_custom_call.1} parent=1 // pred_region
      %73 = dma.done [#allocation3], 8192
    $region33: #{tpu_custom_call.1} parent=1 // pred_fallthru
      _
    // Predicated region
    $region34: #{tpu_custom_call.1} parent=1 // pred_check
      _
    $region35: #{tpu_custom_call.1} parent=1 // pred_check_branch
      %75 = sbr.rel (0) target = $region37
    $region36: #{tpu_custom_call.1} parent=1 // pred_region
      %76 = dma.done [#allocation5], 65536
    $region37: #{tpu_custom_call.1} parent=1 // pred_fallthru
      _
    // Predicated region
    $region38: #{tpu_custom_call.1} parent=1 // pred_check
      _
    $region39: #{tpu_custom_call.1} parent=1 // pred_check_branch
      %78 = sbr.rel (0) target = $region41
    $region40: #{tpu_custom_call.1} parent=1 // pred_region
      %79 = dma.done [#allocation5], 16
    $region41: #{tpu_custom_call.1} parent=1 // pred_fallthru
      _
    // Predicated region
    $region42: #{tpu_custom_call.1} parent=1 // pred_check
      _
    $region43: #{tpu_custom_call.1} parent=1 // pred_check_branch
      %81 = sbr.rel (0) target = $region45
    $region44: #{tpu_custom_call.1} parent=1 // pred_region
      %82 = dma.done [#allocation8], 16
    $region45: #{tpu_custom_call.1} parent=1 // pred_fallthru
      _
    // Predicated region
    $region46: #{tpu_custom_call.1} parent=1 // pred_check
      _
    $region47: #{tpu_custom_call.1} parent=1 // pred_check_branch
      %84 = sbr.rel (0) target = $region49
    $region48: #{tpu_custom_call.1} parent=1 // pred_region
      %85 = dma.done [#allocation8], 16
    $region49: #{tpu_custom_call.1} parent=1 // pred_fallthru
      _
    %v87 = vld [vmem:[#allocation2] sm:$0xff]
    %v88 = vld [vmem:[#allocation2 + $0x8] sm:$0xff]
    %v89 = vld [vmem:[#allocation2 + $0x10] sm:$0xff]
    %v90 = vld [vmem:[#allocation2 + $0x18] sm:$0xff]
    %v91 = vld [vmem:[#allocation2 + $0x20] sm:$0xff]
    %v92 = vld [vmem:[#allocation2 + $0x28] sm:$0xff]
    %v93 = vld [vmem:[#allocation2 + $0x30] sm:$0xff]
    %v94 = vld [vmem:[#allocation2 + $0x38] sm:$0xff]
    %v95 = vld [vmem:[#allocation2 + $0x40] sm:$0xff]
    %v96 = vld [vmem:[#allocation2 + $0x48] sm:$0xff]
    %v97 = vld [vmem:[#allocation2 + $0x50] sm:$0xff]
    %v98 = vld [vmem:[#allocation2 + $0x58] sm:$0xff]
    %v99 = vld [vmem:[#allocation2 + $0x60] sm:$0xff]
    %v100 = vld [vmem:[#allocation2 + $0x68] sm:$0xff]
    %v101 = vld [vmem:[#allocation2 + $0x70] sm:$0xff]
    %v102 = vld [vmem:[#allocation2 + $0x78] sm:$0xff]
    %v103 = vld [vmem:[#allocation2 + $0x80] sm:$0xff]
    %v104 = vld [vmem:[#allocation2 + $0x88] sm:$0xff]
    %v105 = vld [vmem:[#allocation2 + $0x90] sm:$0xff]
    %v106 = vld [vmem:[#allocation2 + $0x98] sm:$0xff]
    %v107 = vld [vmem:[#allocation2 + $0xa0] sm:$0xff]
    %v108 = vld [vmem:[#allocation2 + $0xa8] sm:$0xff]
    %v109 = vld [vmem:[#allocation2 + $0xb0] sm:$0xff]
    %v110 = vld [vmem:[#allocation2 + $0xb8] sm:$0xff]
    %v111 = vld [vmem:[#allocation2 + $0xc0] sm:$0xff]
    %v112 = vld [vmem:[#allocation2 + $0xc8] sm:$0xff]
    %v113 = vld [vmem:[#allocation2 + $0xd0] sm:$0xff]
    %v114 = vld [vmem:[#allocation2 + $0xd8] sm:$0xff]
    %v115 = vld [vmem:[#allocation2 + $0xe0] sm:$0xff]
    %v116 = vld [vmem:[#allocation2 + $0xe8] sm:$0xff]
    %v117 = vld [vmem:[#allocation2 + $0xf0] sm:$0xff]
    %v118 = vld [vmem:[#allocation2 + $0xf8] sm:$0xff]
    %v119 = vld [vmem:[#allocation2 + $0x100] sm:$0xff]
    %v120 = vld [vmem:[#allocation2 + $0x108] sm:$0xff]
    %v121 = vld [vmem:[#allocation2 + $0x110] sm:$0xff]
    %v122 = vld [vmem:[#allocation2 + $0x118] sm:$0xff]
    %v123 = vld [vmem:[#allocation2 + $0x120] sm:$0xff]
    %v124 = vld [vmem:[#allocation2 + $0x128] sm:$0xff]
    %v125 = vld [vmem:[#allocation2 + $0x130] sm:$0xff]
    %v126 = vld [vmem:[#allocation2 + $0x138] sm:$0xff]
    %v127 = vld [vmem:[#allocation2 + $0x140] sm:$0xff]
    %v128 = vld [vmem:[#allocation2 + $0x148] sm:$0xff]
    %v129 = vld [vmem:[#allocation2 + $0x150] sm:$0xff]
    %v130 = vld [vmem:[#allocation2 + $0x158] sm:$0xff]
    %v131 = vld [vmem:[#allocation2 + $0x160] sm:$0xff]
    %v132 = vld [vmem:[#allocation2 + $0x168] sm:$0xff]
    %v133 = vld [vmem:[#allocation2 + $0x170] sm:$0xff]
    %v134 = vld [vmem:[#allocation2 + $0x178] sm:$0xff]
    %v135 = vld [vmem:[#allocation2 + $0x180] sm:$0xff]
    %v136 = vld [vmem:[#allocation2 + $0x188] sm:$0xff]
    %v137 = vld [vmem:[#allocation2 + $0x190] sm:$0xff]
    %v138 = vld [vmem:[#allocation2 + $0x198] sm:$0xff]
    %v139 = vld [vmem:[#allocation2 + $0x1a0] sm:$0xff]
    %v140 = vld [vmem:[#allocation2 + $0x1a8] sm:$0xff]
    %v141 = vld [vmem:[#allocation2 + $0x1b0] sm:$0xff]
    %v142 = vld [vmem:[#allocation2 + $0x1b8] sm:$0xff]
    %v143 = vld [vmem:[#allocation2 + $0x1c0] sm:$0xff]
    %v144 = vld [vmem:[#allocation2 + $0x1c8] sm:$0xff]
    %v145 = vld [vmem:[#allocation2 + $0x1d0] sm:$0xff]
    %v146 = vld [vmem:[#allocation2 + $0x1d8] sm:$0xff]
    %v147 = vld [vmem:[#allocation2 + $0x1e0] sm:$0xff]
    %v148 = vld [vmem:[#allocation2 + $0x1e8] sm:$0xff]
    %v149 = vld [vmem:[#allocation2 + $0x1f0] sm:$0xff]
    %v150 = vld [vmem:[#allocation2 + $0x1f8] sm:$0xff]
    %v151 = vpack.c.bf16 %v87, %v87
    %v152 = vpack.c.bf16 %v88, %v88
    %v153 = vpack.c.bf16 %v89, %v89
    %v154 = vpack.c.bf16 %v90, %v90
    %v155 = vpack.c.bf16 %v91, %v91
    %v156 = vpack.c.bf16 %v92, %v92
    %v157 = vpack.c.bf16 %v93, %v93
    %v158 = vpack.c.bf16 %v94, %v94
    %v159 = vpack.c.bf16 %v95, %v95
    %v160 = vpack.c.bf16 %v96, %v96
    %v161 = vpack.c.bf16 %v97, %v97
    %v162 = vpack.c.bf16 %v98, %v98
    %v163 = vpack.c.bf16 %v99, %v99
    %v164 = vpack.c.bf16 %v100, %v100
    %v165 = vpack.c.bf16 %v101, %v101
    %v166 = vpack.c.bf16 %v102, %v102
    %v167 = vpack.c.bf16 %v103, %v103
    %v168 = vpack.c.bf16 %v104, %v104
    %v169 = vpack.c.bf16 %v105, %v105
    %v170 = vpack.c.bf16 %v106, %v106
    %v171 = vpack.c.bf16 %v107, %v107
    %v172 = vpack.c.bf16 %v108, %v108
    %v173 = vpack.c.bf16 %v109, %v109
    %v174 = vpack.c.bf16 %v110, %v110
    %v175 = vpack.c.bf16 %v111, %v111
    %v176 = vpack.c.bf16 %v112, %v112
    %v177 = vpack.c.bf16 %v113, %v113
    %v178 = vpack.c.bf16 %v114, %v114
    %v179 = vpack.c.bf16 %v115, %v115
    %v180 = vpack.c.bf16 %v116, %v116
    %v181 = vpack.c.bf16 %v117, %v117
    %v182 = vpack.c.bf16 %v118, %v118
    %v183 = vpack.c.bf16 %v119, %v119
    %v184 = vpack.c.bf16 %v120, %v120
    %v185 = vpack.c.bf16 %v121, %v121
    %v186 = vpack.c.bf16 %v122, %v122
    %v187 = vpack.c.bf16 %v123, %v123
    %v188 = vpack.c.bf16 %v124, %v124
    %v189 = vpack.c.bf16 %v125, %v125
    %v190 = vpack.c.bf16 %v126, %v126
    %v191 = vpack.c.bf16 %v127, %v127
    %v192 = vpack.c.bf16 %v128, %v128
    %v193 = vpack.c.bf16 %v129, %v129
    %v194 = vpack.c.bf16 %v130, %v130
    %v195 = vpack.c.bf16 %v131, %v131
    %v196 = vpack.c.bf16 %v132, %v132
    %v197 = vpack.c.bf16 %v133, %v133
    %v198 = vpack.c.bf16 %v134, %v134
    %v199 = vpack.c.bf16 %v135, %v135
    %v200 = vpack.c.bf16 %v136, %v136
    %v201 = vpack.c.bf16 %v137, %v137
    %v202 = vpack.c.bf16 %v138, %v138
    %v203 = vpack.c.bf16 %v139, %v139
    %v204 = vpack.c.bf16 %v140, %v140
    %v205 = vpack.c.bf16 %v141, %v141
    %v206 = vpack.c.bf16 %v142, %v142
    %v207 = vpack.c.bf16 %v143, %v143
    %v208 = vpack.c.bf16 %v144, %v144
    %v209 = vpack.c.bf16 %v145, %v145
    %v210 = vpack.c.bf16 %v146, %v146
    %v211 = vpack.c.bf16 %v147, %v147
    %v212 = vpack.c.bf16 %v148, %v148
    %v213 = vpack.c.bf16 %v149, %v149
    %v214 = vpack.c.bf16 %v150, %v150
    %v215 = vld [vmem:[#allocation4] sm:$0xf]
    %v216 = vld [vmem:[#allocation4 + $0x4] sm:$0xf]
    %v217 = vld [vmem:[#allocation4 + $0x8] sm:$0xf]
    %v218 = vld [vmem:[#allocation4 + $0xc] sm:$0xf]
    %v219 = vld [vmem:[#allocation4 + $0x10] sm:$0xf]
    %v220 = vld [vmem:[#allocation4 + $0x14] sm:$0xf]
    %v221 = vld [vmem:[#allocation4 + $0x18] sm:$0xf]
    %v222 = vld [vmem:[#allocation4 + $0x1c] sm:$0xf]
    %v223 = vld [vmem:[#allocation4 + $0x20] sm:$0xf]
    %v224 = vld [vmem:[#allocation4 + $0x24] sm:$0xf]
    %v225 = vld [vmem:[#allocation4 + $0x28] sm:$0xf]
    %v226 = vld [vmem:[#allocation4 + $0x2c] sm:$0xf]
    %v227 = vld [vmem:[#allocation4 + $0x30] sm:$0xf]
    %v228 = vld [vmem:[#allocation4 + $0x34] sm:$0xf]
    %v229 = vld [vmem:[#allocation4 + $0x38] sm:$0xf]
    %v230 = vld [vmem:[#allocation4 + $0x3c] sm:$0xf]
    %v231 = vld [vmem:[#allocation4 + $0x40] sm:$0xf]
    %v232 = vld [vmem:[#allocation4 + $0x44] sm:$0xf]
    %v233 = vld [vmem:[#allocation4 + $0x48] sm:$0xf]
    %v234 = vld [vmem:[#allocation4 + $0x4c] sm:$0xf]
    %v235 = vld [vmem:[#allocation4 + $0x50] sm:$0xf]
    %v236 = vld [vmem:[#allocation4 + $0x54] sm:$0xf]
    %v237 = vld [vmem:[#allocation4 + $0x58] sm:$0xf]
    %v238 = vld [vmem:[#allocation4 + $0x5c] sm:$0xf]
    %v239 = vld [vmem:[#allocation4 + $0x60] sm:$0xf]
    %v240 = vld [vmem:[#allocation4 + $0x64] sm:$0xf]
    %v241 = vld [vmem:[#allocation4 + $0x68] sm:$0xf]
    %v242 = vld [vmem:[#allocation4 + $0x6c] sm:$0xf]
    %v243 = vld [vmem:[#allocation4 + $0x70] sm:$0xf]
    %v244 = vld [vmem:[#allocation4 + $0x74] sm:$0xf]
    %v245 = vld [vmem:[#allocation4 + $0x78] sm:$0xf]
    %v246 = vld [vmem:[#allocation4 + $0x7c] sm:$0xf]
    %v247 = vld [vmem:[#allocation4 + $0x80] sm:$0xf]
    %v248 = vld [vmem:[#allocation4 + $0x84] sm:$0xf]
    %v249 = vld [vmem:[#allocation4 + $0x88] sm:$0xf]
    %v250 = vld [vmem:[#allocation4 + $0x8c] sm:$0xf]
    %v251 = vld [vmem:[#allocation4 + $0x90] sm:$0xf]
    %v252 = vld [vmem:[#allocation4 + $0x94] sm:$0xf]
    %v253 = vld [vmem:[#allocation4 + $0x98] sm:$0xf]
    %v254 = vld [vmem:[#allocation4 + $0x9c] sm:$0xf]
    %v255 = vld [vmem:[#allocation4 + $0xa0] sm:$0xf]
    %v256 = vld [vmem:[#allocation4 + $0xa4] sm:$0xf]
    %v257 = vld [vmem:[#allocation4 + $0xa8] sm:$0xf]
    %v258 = vld [vmem:[#allocation4 + $0xac] sm:$0xf]
    %v259 = vld [vmem:[#allocation4 + $0xb0] sm:$0xf]
    %v260 = vld [vmem:[#allocation4 + $0xb4] sm:$0xf]
    %v261 = vld [vmem:[#allocation4 + $0xb8] sm:$0xf]
    %v262 = vld [vmem:[#allocation4 + $0xbc] sm:$0xf]
    %v263 = vld [vmem:[#allocation4 + $0xc0] sm:$0xf]
    %v264 = vld [vmem:[#allocation4 + $0xc4] sm:$0xf]
    %v265 = vld [vmem:[#allocation4 + $0xc8] sm:$0xf]
    %v266 = vld [vmem:[#allocation4 + $0xcc] sm:$0xf]
    %v267 = vld [vmem:[#allocation4 + $0xd0] sm:$0xf]
    %v268 = vld [vmem:[#allocation4 + $0xd4] sm:$0xf]
    %v269 = vld [vmem:[#allocation4 + $0xd8] sm:$0xf]
    %v270 = vld [vmem:[#allocation4 + $0xdc] sm:$0xf]
    %v271 = vld [vmem:[#allocation4 + $0xe0] sm:$0xf]
    %v272 = vld [vmem:[#allocation4 + $0xe4] sm:$0xf]
    %v273 = vld [vmem:[#allocation4 + $0xe8] sm:$0xf]
    %v274 = vld [vmem:[#allocation4 + $0xec] sm:$0xf]
    %v275 = vld [vmem:[#allocation4 + $0xf0] sm:$0xf]
    %v276 = vld [vmem:[#allocation4 + $0xf4] sm:$0xf]
    %v277 = vld [vmem:[#allocation4 + $0xf8] sm:$0xf]
    %v278 = vld [vmem:[#allocation4 + $0xfc] sm:$0xf]
    %v279 = vld [vmem:[#allocation4 + $0x100] sm:$0xf]
    %v280 = vld [vmem:[#allocation4 + $0x104] sm:$0xf]
    %v281 = vld [vmem:[#allocation4 + $0x108] sm:$0xf]
    %v282 = vld [vmem:[#allocation4 + $0x10c] sm:$0xf]
    %v283 = vld [vmem:[#allocation4 + $0x110] sm:$0xf]
    %v284 = vld [vmem:[#allocation4 + $0x114] sm:$0xf]
    %v285 = vld [vmem:[#allocation4 + $0x118] sm:$0xf]
    %v286 = vld [vmem:[#allocation4 + $0x11c] sm:$0xf]
    %v287 = vld [vmem:[#allocation4 + $0x120] sm:$0xf]
    %v288 = vld [vmem:[#allocation4 + $0x124] sm:$0xf]
    %v289 = vld [vmem:[#allocation4 + $0x128] sm:$0xf]
    %v290 = vld [vmem:[#allocation4 + $0x12c] sm:$0xf]
    %v291 = vld [vmem:[#allocation4 + $0x130] sm:$0xf]
    %v292 = vld [vmem:[#allocation4 + $0x134] sm:$0xf]
    %v293 = vld [vmem:[#allocation4 + $0x138] sm:$0xf]
    %v294 = vld [vmem:[#allocation4 + $0x13c] sm:$0xf]
    %v295 = vld [vmem:[#allocation4 + $0x140] sm:$0xf]
    %v296 = vld [vmem:[#allocation4 + $0x144] sm:$0xf]
    %v297 = vld [vmem:[#allocation4 + $0x148] sm:$0xf]
    %v298 = vld [vmem:[#allocation4 + $0x14c] sm:$0xf]
    %v299 = vld [vmem:[#allocation4 + $0x150] sm:$0xf]
    %v300 = vld [vmem:[#allocation4 + $0x154] sm:$0xf]
    %v301 = vld [vmem:[#allocation4 + $0x158] sm:$0xf]
    %v302 = vld [vmem:[#allocation4 + $0x15c] sm:$0xf]
    %v303 = vld [vmem:[#allocation4 + $0x160] sm:$0xf]
    %v304 = vld [vmem:[#allocation4 + $0x164] sm:$0xf]
    %v305 = vld [vmem:[#allocation4 + $0x168] sm:$0xf]
    %v306 = vld [vmem:[#allocation4 + $0x16c] sm:$0xf]
    %v307 = vld [vmem:[#allocation4 + $0x170] sm:$0xf]
    %v308 = vld [vmem:[#allocation4 + $0x174] sm:$0xf]
    %v309 = vld [vmem:[#allocation4 + $0x178] sm:$0xf]
    %v310 = vld [vmem:[#allocation4 + $0x17c] sm:$0xf]
    %v311 = vld [vmem:[#allocation4 + $0x180] sm:$0xf]
    %v312 = vld [vmem:[#allocation4 + $0x184] sm:$0xf]
    %v313 = vld [vmem:[#allocation4 + $0x188] sm:$0xf]
    %v314 = vld [vmem:[#allocation4 + $0x18c] sm:$0xf]
    %v315 = vld [vmem:[#allocation4 + $0x190] sm:$0xf]
    %v316 = vld [vmem:[#allocation4 + $0x194] sm:$0xf]
    %v317 = vld [vmem:[#allocation4 + $0x198] sm:$0xf]
    %v318 = vld [vmem:[#allocation4 + $0x19c] sm:$0xf]
    %v319 = vld [vmem:[#allocation4 + $0x1a0] sm:$0xf]
    %v320 = vld [vmem:[#allocation4 + $0x1a4] sm:$0xf]
    %v321 = vld [vmem:[#allocation4 + $0x1a8] sm:$0xf]
    %v322 = vld [vmem:[#allocation4 + $0x1ac] sm:$0xf]
    %v323 = vld [vmem:[#allocation4 + $0x1b0] sm:$0xf]
    %v324 = vld [vmem:[#allocation4 + $0x1b4] sm:$0xf]
    %v325 = vld [vmem:[#allocation4 + $0x1b8] sm:$0xf]
    %v326 = vld [vmem:[#allocation4 + $0x1bc] sm:$0xf]
    %v327 = vld [vmem:[#allocation4 + $0x1c0] sm:$0xf]
    %v328 = vld [vmem:[#allocation4 + $0x1c4] sm:$0xf]
    %v329 = vld [vmem:[#allocation4 + $0x1c8] sm:$0xf]
    %v330 = vld [vmem:[#allocation4 + $0x1cc] sm:$0xf]
    %v331 = vld [vmem:[#allocation4 + $0x1d0] sm:$0xf]
    %v332 = vld [vmem:[#allocation4 + $0x1d4] sm:$0xf]
    %v333 = vld [vmem:[#allocation4 + $0x1d8] sm:$0xf]
    %v334 = vld [vmem:[#allocation4 + $0x1dc] sm:$0xf]
    %v335 = vld [vmem:[#allocation4 + $0x1e0] sm:$0xf]
    %v336 = vld [vmem:[#allocation4 + $0x1e4] sm:$0xf]
    %v337 = vld [vmem:[#allocation4 + $0x1e8] sm:$0xf]
    %v338 = vld [vmem:[#allocation4 + $0x1ec] sm:$0xf]
    %v339 = vld [vmem:[#allocation4 + $0x1f0] sm:$0xf]
    %v340 = vld [vmem:[#allocation4 + $0x1f4] sm:$0xf]
    %v341 = vld [vmem:[#allocation4 + $0x1f8] sm:$0xf]
    %v342 = vld [vmem:[#allocation4 + $0x1fc] sm:$0xf]
    %v343 = vld [vmem:[#allocation4 + $0x200] sm:$0xf]
    %v344 = vld [vmem:[#allocation4 + $0x204] sm:$0xf]
    %v345 = vld [vmem:[#allocation4 + $0x208] sm:$0xf]
    %v346 = vld [vmem:[#allocation4 + $0x20c] sm:$0xf]
    %v347 = vld [vmem:[#allocation4 + $0x210] sm:$0xf]
    %v348 = vld [vmem:[#allocation4 + $0x214] sm:$0xf]
    %v349 = vld [vmem:[#allocation4 + $0x218] sm:$0xf]
    %v350 = vld [vmem:[#allocation4 + $0x21c] sm:$0xf]
    %v351 = vld [vmem:[#allocation4 + $0x220] sm:$0xf]
    %v352 = vld [vmem:[#allocation4 + $0x224] sm:$0xf]
    %v353 = vld [vmem:[#allocation4 + $0x228] sm:$0xf]
    %v354 = vld [vmem:[#allocation4 + $0x22c] sm:$0xf]
    %v355 = vld [vmem:[#allocation4 + $0x230] sm:$0xf]
    %v356 = vld [vmem:[#allocation4 + $0x234] sm:$0xf]
    %v357 = vld [vmem:[#allocation4 + $0x238] sm:$0xf]
    %v358 = vld [vmem:[#allocation4 + $0x23c] sm:$0xf]
    %v359 = vld [vmem:[#allocation4 + $0x240] sm:$0xf]
    %v360 = vld [vmem:[#allocation4 + $0x244] sm:$0xf]
    %v361 = vld [vmem:[#allocation4 + $0x248] sm:$0xf]
    %v362 = vld [vmem:[#allocation4 + $0x24c] sm:$0xf]
    %v363 = vld [vmem:[#allocation4 + $0x250] sm:$0xf]
    %v364 = vld [vmem:[#allocation4 + $0x254] sm:$0xf]
    %v365 = vld [vmem:[#allocation4 + $0x258] sm:$0xf]
    %v366 = vld [vmem:[#allocation4 + $0x25c] sm:$0xf]
    %v367 = vld [vmem:[#allocation4 + $0x260] sm:$0xf]
    %v368 = vld [vmem:[#allocation4 + $0x264] sm:$0xf]
    %v369 = vld [vmem:[#allocation4 + $0x268] sm:$0xf]
    %v370 = vld [vmem:[#allocation4 + $0x26c] sm:$0xf]
    %v371 = vld [vmem:[#allocation4 + $0x270] sm:$0xf]
    %v372 = vld [vmem:[#allocation4 + $0x274] sm:$0xf]
    %v373 = vld [vmem:[#allocation4 + $0x278] sm:$0xf]
    %v374 = vld [vmem:[#allocation4 + $0x27c] sm:$0xf]
    %v375 = vld [vmem:[#allocation4 + $0x280] sm:$0xf]
    %v376 = vld [vmem:[#allocation4 + $0x284] sm:$0xf]
    %v377 = vld [vmem:[#allocation4 + $0x288] sm:$0xf]
    %v378 = vld [vmem:[#allocation4 + $0x28c] sm:$0xf]
    %v379 = vld [vmem:[#allocation4 + $0x290] sm:$0xf]
    %v380 = vld [vmem:[#allocation4 + $0x294] sm:$0xf]
    %v381 = vld [vmem:[#allocation4 + $0x298] sm:$0xf]
    %v382 = vld [vmem:[#allocation4 + $0x29c] sm:$0xf]
    %v383 = vld [vmem:[#allocation4 + $0x2a0] sm:$0xf]
    %v384 = vld [vmem:[#allocation4 + $0x2a4] sm:$0xf]
    %v385 = vld [vmem:[#allocation4 + $0x2a8] sm:$0xf]
    %v386 = vld [vmem:[#allocation4 + $0x2ac] sm:$0xf]
    %v387 = vld [vmem:[#allocation4 + $0x2b0] sm:$0xf]
    %v388 = vld [vmem:[#allocation4 + $0x2b4] sm:$0xf]
    %v389 = vld [vmem:[#allocation4 + $0x2b8] sm:$0xf]
    %v390 = vld [vmem:[#allocation4 + $0x2bc] sm:$0xf]
    %v391 = vld [vmem:[#allocation4 + $0x2c0] sm:$0xf]
    %v392 = vld [vmem:[#allocation4 + $0x2c4] sm:$0xf]
    %v393 = vld [vmem:[#allocation4 + $0x2c8] sm:$0xf]
    %v394 = vld [vmem:[#allocation4 + $0x2cc] sm:$0xf]
    %v395 = vld [vmem:[#allocation4 + $0x2d0] sm:$0xf]
    %v396 = vld [vmem:[#allocation4 + $0x2d4] sm:$0xf]
    %v397 = vld [vmem:[#allocation4 + $0x2d8] sm:$0xf]
    %v398 = vld [vmem:[#allocation4 + $0x2dc] sm:$0xf]
    %v399 = vld [vmem:[#allocation4 + $0x2e0] sm:$0xf]
    %v400 = vld [vmem:[#allocation4 + $0x2e4] sm:$0xf]
    %v401 = vld [vmem:[#allocation4 + $0x2e8] sm:$0xf]
    %v402 = vld [vmem:[#allocation4 + $0x2ec] sm:$0xf]
    %v403 = vld [vmem:[#allocation4 + $0x2f0] sm:$0xf]
    %v404 = vld [vmem:[#allocation4 + $0x2f4] sm:$0xf]
    %v405 = vld [vmem:[#allocation4 + $0x2f8] sm:$0xf]
    %v406 = vld [vmem:[#allocation4 + $0x2fc] sm:$0xf]
    %v407 = vld [vmem:[#allocation4 + $0x300] sm:$0xf]
    %v408 = vld [vmem:[#allocation4 + $0x304] sm:$0xf]
    %v409 = vld [vmem:[#allocation4 + $0x308] sm:$0xf]
    %v410 = vld [vmem:[#allocation4 + $0x30c] sm:$0xf]
    %v411 = vld [vmem:[#allocation4 + $0x310] sm:$0xf]
    %v412 = vld [vmem:[#allocation4 + $0x314] sm:$0xf]
    %v413 = vld [vmem:[#allocation4 + $0x318] sm:$0xf]
    %v414 = vld [vmem:[#allocation4 + $0x31c] sm:$0xf]
    %v415 = vld [vmem:[#allocation4 + $0x320] sm:$0xf]
    %v416 = vld [vmem:[#allocation4 + $0x324] sm:$0xf]
    %v417 = vld [vmem:[#allocation4 + $0x328] sm:$0xf]
    %v418 = vld [vmem:[#allocation4 + $0x32c] sm:$0xf]
    %v419 = vld [vmem:[#allocation4 + $0x330] sm:$0xf]
    %v420 = vld [vmem:[#allocation4 + $0x334] sm:$0xf]
    %v421 = vld [vmem:[#allocation4 + $0x338] sm:$0xf]
    %v422 = vld [vmem:[#allocation4 + $0x33c] sm:$0xf]
    %v423 = vld [vmem:[#allocation4 + $0x340] sm:$0xf]
    %v424 = vld [vmem:[#allocation4 + $0x344] sm:$0xf]
    %v425 = vld [vmem:[#allocation4 + $0x348] sm:$0xf]
    %v426 = vld [vmem:[#allocation4 + $0x34c] sm:$0xf]
    %v427 = vld [vmem:[#allocation4 + $0x350] sm:$0xf]
    %v428 = vld [vmem:[#allocation4 + $0x354] sm:$0xf]
    %v429 = vld [vmem:[#allocation4 + $0x358] sm:$0xf]
    %v430 = vld [vmem:[#allocation4 + $0x35c] sm:$0xf]
    %v431 = vld [vmem:[#allocation4 + $0x360] sm:$0xf]
    %v432 = vld [vmem:[#allocation4 + $0x364] sm:$0xf]
    %v433 = vld [vmem:[#allocation4 + $0x368] sm:$0xf]
    %v434 = vld [vmem:[#allocation4 + $0x36c] sm:$0xf]
    %v435 = vld [vmem:[#allocation4 + $0x370] sm:$0xf]
    %v436 = vld [vmem:[#allocation4 + $0x374] sm:$0xf]
    %v437 = vld [vmem:[#allocation4 + $0x378] sm:$0xf]
    %v438 = vld [vmem:[#allocation4 + $0x37c] sm:$0xf]
    %v439 = vld [vmem:[#allocation4 + $0x380] sm:$0xf]
    %v440 = vld [vmem:[#allocation4 + $0x384] sm:$0xf]
    %v441 = vld [vmem:[#allocation4 + $0x388] sm:$0xf]
    %v442 = vld [vmem:[#allocation4 + $0x38c] sm:$0xf]
    %v443 = vld [vmem:[#allocation4 + $0x390] sm:$0xf]
    %v444 = vld [vmem:[#allocation4 + $0x394] sm:$0xf]
    %v445 = vld [vmem:[#allocation4 + $0x398] sm:$0xf]
    %v446 = vld [vmem:[#allocation4 + $0x39c] sm:$0xf]
    %v447 = vld [vmem:[#allocation4 + $0x3a0] sm:$0xf]
    %v448 = vld [vmem:[#allocation4 + $0x3a4] sm:$0xf]
    %v449 = vld [vmem:[#allocation4 + $0x3a8] sm:$0xf]
    %v450 = vld [vmem:[#allocation4 + $0x3ac] sm:$0xf]
    %v451 = vld [vmem:[#allocation4 + $0x3b0] sm:$0xf]
    %v452 = vld [vmem:[#allocation4 + $0x3b4] sm:$0xf]
    %v453 = vld [vmem:[#allocation4 + $0x3b8] sm:$0xf]
    %v454 = vld [vmem:[#allocation4 + $0x3bc] sm:$0xf]
    %v455 = vld [vmem:[#allocation4 + $0x3c0] sm:$0xf]
    %v456 = vld [vmem:[#allocation4 + $0x3c4] sm:$0xf]
    %v457 = vld [vmem:[#allocation4 + $0x3c8] sm:$0xf]
    %v458 = vld [vmem:[#allocation4 + $0x3cc] sm:$0xf]
    %v459 = vld [vmem:[#allocation4 + $0x3d0] sm:$0xf]
    %v460 = vld [vmem:[#allocation4 + $0x3d4] sm:$0xf]
    %v461 = vld [vmem:[#allocation4 + $0x3d8] sm:$0xf]
    %v462 = vld [vmem:[#allocation4 + $0x3dc] sm:$0xf]
    %v463 = vld [vmem:[#allocation4 + $0x3e0] sm:$0xf]
    %v464 = vld [vmem:[#allocation4 + $0x3e4] sm:$0xf]
    %v465 = vld [vmem:[#allocation4 + $0x3e8] sm:$0xf]
    %v466 = vld [vmem:[#allocation4 + $0x3ec] sm:$0xf]
    %v467 = vld [vmem:[#allocation4 + $0x3f0] sm:$0xf]
    %v468 = vld [vmem:[#allocation4 + $0x3f4] sm:$0xf]
    %v469 = vld [vmem:[#allocation4 + $0x3f8] sm:$0xf]
    %v470 = vld [vmem:[#allocation4 + $0x3fc] sm:$0xf]
    %v471 = vld [vmem:[#allocation4 + $0x400] sm:$0xf]
    %v472 = vld [vmem:[#allocation4 + $0x404] sm:$0xf]
    %v473 = vld [vmem:[#allocation4 + $0x408] sm:$0xf]
    %v474 = vld [vmem:[#allocation4 + $0x40c] sm:$0xf]
    %v475 = vld [vmem:[#allocation4 + $0x410] sm:$0xf]
    %v476 = vld [vmem:[#allocation4 + $0x414] sm:$0xf]
    %v477 = vld [vmem:[#allocation4 + $0x418] sm:$0xf]
    %v478 = vld [vmem:[#allocation4 + $0x41c] sm:$0xf]
    %v479 = vld [vmem:[#allocation4 + $0x420] sm:$0xf]
    %v480 = vld [vmem:[#allocation4 + $0x424] sm:$0xf]
    %v481 = vld [vmem:[#allocation4 + $0x428] sm:$0xf]
    %v482 = vld [vmem:[#allocation4 + $0x42c] sm:$0xf]
    %v483 = vld [vmem:[#allocation4 + $0x430] sm:$0xf]
    %v484 = vld [vmem:[#allocation4 + $0x434] sm:$0xf]
    %v485 = vld [vmem:[#allocation4 + $0x438] sm:$0xf]
    %v486 = vld [vmem:[#allocation4 + $0x43c] sm:$0xf]
    %v487 = vld [vmem:[#allocation4 + $0x440] sm:$0xf]
    %v488 = vld [vmem:[#allocation4 + $0x444] sm:$0xf]
    %v489 = vld [vmem:[#allocation4 + $0x448] sm:$0xf]
    %v490 = vld [vmem:[#allocation4 + $0x44c] sm:$0xf]
    %v491 = vld [vmem:[#allocation4 + $0x450] sm:$0xf]
    %v492 = vld [vmem:[#allocation4 + $0x454] sm:$0xf]
    %v493 = vld [vmem:[#allocation4 + $0x458] sm:$0xf]
    %v494 = vld [vmem:[#allocation4 + $0x45c] sm:$0xf]
    %v495 = vld [vmem:[#allocation4 + $0x460] sm:$0xf]
    %v496 = vld [vmem:[#allocation4 + $0x464] sm:$0xf]
    %v497 = vld [vmem:[#allocation4 + $0x468] sm:$0xf]
    %v498 = vld [vmem:[#allocation4 + $0x46c] sm:$0xf]
    %v499 = vld [vmem:[#allocation4 + $0x470] sm:$0xf]
    %v500 = vld [vmem:[#allocation4 + $0x474] sm:$0xf]
    %v501 = vld [vmem:[#allocation4 + $0x478] sm:$0xf]
    %v502 = vld [vmem:[#allocation4 + $0x47c] sm:$0xf]
    %v503 = vld [vmem:[#allocation4 + $0x480] sm:$0xf]
    %v504 = vld [vmem:[#allocation4 + $0x484] sm:$0xf]
    %v505 = vld [vmem:[#allocation4 + $0x488] sm:$0xf]
    %v506 = vld [vmem:[#allocation4 + $0x48c] sm:$0xf]
    %v507 = vld [vmem:[#allocation4 + $0x490] sm:$0xf]
    %v508 = vld [vmem:[#allocation4 + $0x494] sm:$0xf]
    %v509 = vld [vmem:[#allocation4 + $0x498] sm:$0xf]
    %v510 = vld [vmem:[#allocation4 + $0x49c] sm:$0xf]
    %v511 = vld [vmem:[#allocation4 + $0x4a0] sm:$0xf]
    %v512 = vld [vmem:[#allocation4 + $0x4a4] sm:$0xf]
    %v513 = vld [vmem:[#allocation4 + $0x4a8] sm:$0xf]
    %v514 = vld [vmem:[#allocation4 + $0x4ac] sm:$0xf]
    %v515 = vld [vmem:[#allocation4 + $0x4b0] sm:$0xf]
    %v516 = vld [vmem:[#allocation4 + $0x4b4] sm:$0xf]
    %v517 = vld [vmem:[#allocation4 + $0x4b8] sm:$0xf]
    %v518 = vld [vmem:[#allocation4 + $0x4bc] sm:$0xf]
    %v519 = vld [vmem:[#allocation4 + $0x4c0] sm:$0xf]
    %v520 = vld [vmem:[#allocation4 + $0x4c4] sm:$0xf]
    %v521 = vld [vmem:[#allocation4 + $0x4c8] sm:$0xf]
    %v522 = vld [vmem:[#allocation4 + $0x4cc] sm:$0xf]
    %v523 = vld [vmem:[#allocation4 + $0x4d0] sm:$0xf]
    %v524 = vld [vmem:[#allocation4 + $0x4d4] sm:$0xf]
    %v525 = vld [vmem:[#allocation4 + $0x4d8] sm:$0xf]
    %v526 = vld [vmem:[#allocation4 + $0x4dc] sm:$0xf]
    %v527 = vld [vmem:[#allocation4 + $0x4e0] sm:$0xf]
    %v528 = vld [vmem:[#allocation4 + $0x4e4] sm:$0xf]
    %v529 = vld [vmem:[#allocation4 + $0x4e8] sm:$0xf]
    %v530 = vld [vmem:[#allocation4 + $0x4ec] sm:$0xf]
    %v531 = vld [vmem:[#allocation4 + $0x4f0] sm:$0xf]
    %v532 = vld [vmem:[#allocation4 + $0x4f4] sm:$0xf]
    %v533 = vld [vmem:[#allocation4 + $0x4f8] sm:$0xf]
    %v534 = vld [vmem:[#allocation4 + $0x4fc] sm:$0xf]
    %v535 = vld [vmem:[#allocation4 + $0x500] sm:$0xf]
    %v536 = vld [vmem:[#allocation4 + $0x504] sm:$0xf]
    %v537 = vld [vmem:[#allocation4 + $0x508] sm:$0xf]
    %v538 = vld [vmem:[#allocation4 + $0x50c] sm:$0xf]
    %v539 = vld [vmem:[#allocation4 + $0x510] sm:$0xf]
    %v540 = vld [vmem:[#allocation4 + $0x514] sm:$0xf]
    %v541 = vld [vmem:[#allocation4 + $0x518] sm:$0xf]
    %v542 = vld [vmem:[#allocation4 + $0x51c] sm:$0xf]
    %v543 = vld [vmem:[#allocation4 + $0x520] sm:$0xf]
    %v544 = vld [vmem:[#allocation4 + $0x524] sm:$0xf]
    %v545 = vld [vmem:[#allocation4 + $0x528] sm:$0xf]
    %v546 = vld [vmem:[#allocation4 + $0x52c] sm:$0xf]
    %v547 = vld [vmem:[#allocation4 + $0x530] sm:$0xf]
    %v548 = vld [vmem:[#allocation4 + $0x534] sm:$0xf]
    %v549 = vld [vmem:[#allocation4 + $0x538] sm:$0xf]
    %v550 = vld [vmem:[#allocation4 + $0x53c] sm:$0xf]
    %v551 = vld [vmem:[#allocation4 + $0x540] sm:$0xf]
    %v552 = vld [vmem:[#allocation4 + $0x544] sm:$0xf]
    %v553 = vld [vmem:[#allocation4 + $0x548] sm:$0xf]
    %v554 = vld [vmem:[#allocation4 + $0x54c] sm:$0xf]
    %v555 = vld [vmem:[#allocation4 + $0x550] sm:$0xf]
    %v556 = vld [vmem:[#allocation4 + $0x554] sm:$0xf]
    %v557 = vld [vmem:[#allocation4 + $0x558] sm:$0xf]
    %v558 = vld [vmem:[#allocation4 + $0x55c] sm:$0xf]
    %v559 = vld [vmem:[#allocation4 + $0x560] sm:$0xf]
    %v560 = vld [vmem:[#allocation4 + $0x564] sm:$0xf]
    %v561 = vld [vmem:[#allocation4 + $0x568] sm:$0xf]
    %v562 = vld [vmem:[#allocation4 + $0x56c] sm:$0xf]
    %v563 = vld [vmem:[#allocation4 + $0x570] sm:$0xf]
    %v564 = vld [vmem:[#allocation4 + $0x574] sm:$0xf]
    %v565 = vld [vmem:[#allocation4 + $0x578] sm:$0xf]
    %v566 = vld [vmem:[#allocation4 + $0x57c] sm:$0xf]
    %v567 = vld [vmem:[#allocation4 + $0x580] sm:$0xf]
    %v568 = vld [vmem:[#allocation4 + $0x584] sm:$0xf]
    %v569 = vld [vmem:[#allocation4 + $0x588] sm:$0xf]
    %v570 = vld [vmem:[#allocation4 + $0x58c] sm:$0xf]
    %v571 = vld [vmem:[#allocation4 + $0x590] sm:$0xf]
    %v572 = vld [vmem:[#allocation4 + $0x594] sm:$0xf]
    %v573 = vld [vmem:[#allocation4 + $0x598] sm:$0xf]
    %v574 = vld [vmem:[#allocation4 + $0x59c] sm:$0xf]
    %v575 = vld [vmem:[#allocation4 + $0x5a0] sm:$0xf]
    %v576 = vld [vmem:[#allocation4 + $0x5a4] sm:$0xf]
    %v577 = vld [vmem:[#allocation4 + $0x5a8] sm:$0xf]
    %v578 = vld [vmem:[#allocation4 + $0x5ac] sm:$0xf]
    %v579 = vld [vmem:[#allocation4 + $0x5b0] sm:$0xf]
    %v580 = vld [vmem:[#allocation4 + $0x5b4] sm:$0xf]
    %v581 = vld [vmem:[#allocation4 + $0x5b8] sm:$0xf]
    %v582 = vld [vmem:[#allocation4 + $0x5bc] sm:$0xf]
    %v583 = vld [vmem:[#allocation4 + $0x5c0] sm:$0xf]
    %v584 = vld [vmem:[#allocation4 + $0x5c4] sm:$0xf]
    %v585 = vld [vmem:[#allocation4 + $0x5c8] sm:$0xf]
    %v586 = vld [vmem:[#allocation4 + $0x5cc] sm:$0xf]
    %v587 = vld [vmem:[#allocation4 + $0x5d0] sm:$0xf]
    %v588 = vld [vmem:[#allocation4 + $0x5d4] sm:$0xf]
    %v589 = vld [vmem:[#allocation4 + $0x5d8] sm:$0xf]
    %v590 = vld [vmem:[#allocation4 + $0x5dc] sm:$0xf]
    %v591 = vld [vmem:[#allocation4 + $0x5e0] sm:$0xf]
    %v592 = vld [vmem:[#allocation4 + $0x5e4] sm:$0xf]
    %v593 = vld [vmem:[#allocation4 + $0x5e8] sm:$0xf]
    %v594 = vld [vmem:[#allocation4 + $0x5ec] sm:$0xf]
    %v595 = vld [vmem:[#allocation4 + $0x5f0] sm:$0xf]
    %v596 = vld [vmem:[#allocation4 + $0x5f4] sm:$0xf]
    %v597 = vld [vmem:[#allocation4 + $0x5f8] sm:$0xf]
    %v598 = vld [vmem:[#allocation4 + $0x5fc] sm:$0xf]
    %v599 = vld [vmem:[#allocation4 + $0x600] sm:$0xf]
    %v600 = vld [vmem:[#allocation4 + $0x604] sm:$0xf]
    %v601 = vld [vmem:[#allocation4 + $0x608] sm:$0xf]
    %v602 = vld [vmem:[#allocation4 + $0x60c] sm:$0xf]
    %v603 = vld [vmem:[#allocation4 + $0x610] sm:$0xf]
    %v604 = vld [vmem:[#allocation4 + $0x614] sm:$0xf]
    %v605 = vld [vmem:[#allocation4 + $0x618] sm:$0xf]
    %v606 = vld [vmem:[#allocation4 + $0x61c] sm:$0xf]
    %v607 = vld [vmem:[#allocation4 + $0x620] sm:$0xf]
    %v608 = vld [vmem:[#allocation4 + $0x624] sm:$0xf]
    %v609 = vld [vmem:[#allocation4 + $0x628] sm:$0xf]
    %v610 = vld [vmem:[#allocation4 + $0x62c] sm:$0xf]
    %v611 = vld [vmem:[#allocation4 + $0x630] sm:$0xf]
    %v612 = vld [vmem:[#allocation4 + $0x634] sm:$0xf]
    %v613 = vld [vmem:[#allocation4 + $0x638] sm:$0xf]
    %v614 = vld [vmem:[#allocation4 + $0x63c] sm:$0xf]
    %v615 = vld [vmem:[#allocation4 + $0x640] sm:$0xf]
    %v616 = vld [vmem:[#allocation4 + $0x644] sm:$0xf]
    %v617 = vld [vmem:[#allocation4 + $0x648] sm:$0xf]
    %v618 = vld [vmem:[#allocation4 + $0x64c] sm:$0xf]
    %v619 = vld [vmem:[#allocation4 + $0x650] sm:$0xf]
    %v620 = vld [vmem:[#allocation4 + $0x654] sm:$0xf]
    %v621 = vld [vmem:[#allocation4 + $0x658] sm:$0xf]
    %v622 = vld [vmem:[#allocation4 + $0x65c] sm:$0xf]
    %v623 = vld [vmem:[#allocation4 + $0x660] sm:$0xf]
    %v624 = vld [vmem:[#allocation4 + $0x664] sm:$0xf]
    %v625 = vld [vmem:[#allocation4 + $0x668] sm:$0xf]
    %v626 = vld [vmem:[#allocation4 + $0x66c] sm:$0xf]
    %v627 = vld [vmem:[#allocation4 + $0x670] sm:$0xf]
    %v628 = vld [vmem:[#allocation4 + $0x674] sm:$0xf]
    %v629 = vld [vmem:[#allocation4 + $0x678] sm:$0xf]
    %v630 = vld [vmem:[#allocation4 + $0x67c] sm:$0xf]
    %v631 = vld [vmem:[#allocation4 + $0x680] sm:$0xf]
    %v632 = vld [vmem:[#allocation4 + $0x684] sm:$0xf]
    %v633 = vld [vmem:[#allocation4 + $0x688] sm:$0xf]
    %v634 = vld [vmem:[#allocation4 + $0x68c] sm:$0xf]
    %v635 = vld [vmem:[#allocation4 + $0x690] sm:$0xf]
    %v636 = vld [vmem:[#allocation4 + $0x694] sm:$0xf]
    %v637 = vld [vmem:[#allocation4 + $0x698] sm:$0xf]
    %v638 = vld [vmem:[#allocation4 + $0x69c] sm:$0xf]
    %v639 = vld [vmem:[#allocation4 + $0x6a0] sm:$0xf]
    %v640 = vld [vmem:[#allocation4 + $0x6a4] sm:$0xf]
    %v641 = vld [vmem:[#allocation4 + $0x6a8] sm:$0xf]
    %v642 = vld [vmem:[#allocation4 + $0x6ac] sm:$0xf]
    %v643 = vld [vmem:[#allocation4 + $0x6b0] sm:$0xf]
    %v644 = vld [vmem:[#allocation4 + $0x6b4] sm:$0xf]
    %v645 = vld [vmem:[#allocation4 + $0x6b8] sm:$0xf]
    %v646 = vld [vmem:[#allocation4 + $0x6bc] sm:$0xf]
    %v647 = vld [vmem:[#allocation4 + $0x6c0] sm:$0xf]
    %v648 = vld [vmem:[#allocation4 + $0x6c4] sm:$0xf]
    %v649 = vld [vmem:[#allocation4 + $0x6c8] sm:$0xf]
    %v650 = vld [vmem:[#allocation4 + $0x6cc] sm:$0xf]
    %v651 = vld [vmem:[#allocation4 + $0x6d0] sm:$0xf]
    %v652 = vld [vmem:[#allocation4 + $0x6d4] sm:$0xf]
    %v653 = vld [vmem:[#allocation4 + $0x6d8] sm:$0xf]
    %v654 = vld [vmem:[#allocation4 + $0x6dc] sm:$0xf]
    %v655 = vld [vmem:[#allocation4 + $0x6e0] sm:$0xf]
    %v656 = vld [vmem:[#allocation4 + $0x6e4] sm:$0xf]
    %v657 = vld [vmem:[#allocation4 + $0x6e8] sm:$0xf]
    %v658 = vld [vmem:[#allocation4 + $0x6ec] sm:$0xf]
    %v659 = vld [vmem:[#allocation4 + $0x6f0] sm:$0xf]
    %v660 = vld [vmem:[#allocation4 + $0x6f4] sm:$0xf]
    %v661 = vld [vmem:[#allocation4 + $0x6f8] sm:$0xf]
    %v662 = vld [vmem:[#allocation4 + $0x6fc] sm:$0xf]
    %v663 = vld [vmem:[#allocation4 + $0x700] sm:$0xf]
    %v664 = vld [vmem:[#allocation4 + $0x704] sm:$0xf]
    %v665 = vld [vmem:[#allocation4 + $0x708] sm:$0xf]
    %v666 = vld [vmem:[#allocation4 + $0x70c] sm:$0xf]
    %v667 = vld [vmem:[#allocation4 + $0x710] sm:$0xf]
    %v668 = vld [vmem:[#allocation4 + $0x714] sm:$0xf]
    %v669 = vld [vmem:[#allocation4 + $0x718] sm:$0xf]
    %v670 = vld [vmem:[#allocation4 + $0x71c] sm:$0xf]
    %v671 = vld [vmem:[#allocation4 + $0x720] sm:$0xf]
    %v672 = vld [vmem:[#allocation4 + $0x724] sm:$0xf]
    %v673 = vld [vmem:[#allocation4 + $0x728] sm:$0xf]
    %v674 = vld [vmem:[#allocation4 + $0x72c] sm:$0xf]
    %v675 = vld [vmem:[#allocation4 + $0x730] sm:$0xf]
    %v676 = vld [vmem:[#allocation4 + $0x734] sm:$0xf]
    %v677 = vld [vmem:[#allocation4 + $0x738] sm:$0xf]
    %v678 = vld [vmem:[#allocation4 + $0x73c] sm:$0xf]
    %v679 = vld [vmem:[#allocation4 + $0x740] sm:$0xf]
    %v680 = vld [vmem:[#allocation4 + $0x744] sm:$0xf]
    %v681 = vld [vmem:[#allocation4 + $0x748] sm:$0xf]
    %v682 = vld [vmem:[#allocation4 + $0x74c] sm:$0xf]
    %v683 = vld [vmem:[#allocation4 + $0x750] sm:$0xf]
    %v684 = vld [vmem:[#allocation4 + $0x754] sm:$0xf]
    %v685 = vld [vmem:[#allocation4 + $0x758] sm:$0xf]
    %v686 = vld [vmem:[#allocation4 + $0x75c] sm:$0xf]
    %v687 = vld [vmem:[#allocation4 + $0x760] sm:$0xf]
    %v688 = vld [vmem:[#allocation4 + $0x764] sm:$0xf]
    %v689 = vld [vmem:[#allocation4 + $0x768] sm:$0xf]
    %v690 = vld [vmem:[#allocation4 + $0x76c] sm:$0xf]
    %v691 = vld [vmem:[#allocation4 + $0x770] sm:$0xf]
    %v692 = vld [vmem:[#allocation4 + $0x774] sm:$0xf]
    %v693 = vld [vmem:[#allocation4 + $0x778] sm:$0xf]
    %v694 = vld [vmem:[#allocation4 + $0x77c] sm:$0xf]
    %v695 = vld [vmem:[#allocation4 + $0x780] sm:$0xf]
    %v696 = vld [vmem:[#allocation4 + $0x784] sm:$0xf]
    %v697 = vld [vmem:[#allocation4 + $0x788] sm:$0xf]
    %v698 = vld [vmem:[#allocation4 + $0x78c] sm:$0xf]
    %v699 = vld [vmem:[#allocation4 + $0x790] sm:$0xf]
    %v700 = vld [vmem:[#allocation4 + $0x794] sm:$0xf]
    %v701 = vld [vmem:[#allocation4 + $0x798] sm:$0xf]
    %v702 = vld [vmem:[#allocation4 + $0x79c] sm:$0xf]
    %v703 = vld [vmem:[#allocation4 + $0x7a0] sm:$0xf]
    %v704 = vld [vmem:[#allocation4 + $0x7a4] sm:$0xf]
    %v705 = vld [vmem:[#allocation4 + $0x7a8] sm:$0xf]
    %v706 = vld [vmem:[#allocation4 + $0x7ac] sm:$0xf]
    %v707 = vld [vmem:[#allocation4 + $0x7b0] sm:$0xf]
    %v708 = vld [vmem:[#allocation4 + $0x7b4] sm:$0xf]
    %v709 = vld [vmem:[#allocation4 + $0x7b8] sm:$0xf]
    %v710 = vld [vmem:[#allocation4 + $0x7bc] sm:$0xf]
    %v711 = vld [vmem:[#allocation4 + $0x7c0] sm:$0xf]
    %v712 = vld [vmem:[#allocation4 + $0x7c4] sm:$0xf]
    %v713 = vld [vmem:[#allocation4 + $0x7c8] sm:$0xf]
    %v714 = vld [vmem:[#allocation4 + $0x7cc] sm:$0xf]
    %v715 = vld [vmem:[#allocation4 + $0x7d0] sm:$0xf]
    %v716 = vld [vmem:[#allocation4 + $0x7d4] sm:$0xf]
    %v717 = vld [vmem:[#allocation4 + $0x7d8] sm:$0xf]
    %v718 = vld [vmem:[#allocation4 + $0x7dc] sm:$0xf]
    %v719 = vld [vmem:[#allocation4 + $0x7e0] sm:$0xf]
    %v720 = vld [vmem:[#allocation4 + $0x7e4] sm:$0xf]
    %v721 = vld [vmem:[#allocation4 + $0x7e8] sm:$0xf]
    %v722 = vld [vmem:[#allocation4 + $0x7ec] sm:$0xf]
    %v723 = vld [vmem:[#allocation4 + $0x7f0] sm:$0xf]
    %v724 = vld [vmem:[#allocation4 + $0x7f4] sm:$0xf]
    %v725 = vld [vmem:[#allocation4 + $0x7f8] sm:$0xf]
    %v726 = vld [vmem:[#allocation4 + $0x7fc] sm:$0xf]
    %v727 = vld [vmem:[#allocation4 + $0x800] sm:$0xf]
    %v728 = vld [vmem:[#allocation4 + $0x804] sm:$0xf]
    %v729 = vld [vmem:[#allocation4 + $0x808] sm:$0xf]
    %v730 = vld [vmem:[#allocation4 + $0x80c] sm:$0xf]
    %v731 = vld [vmem:[#allocation4 + $0x810] sm:$0xf]
    %v732 = vld [vmem:[#allocation4 + $0x814] sm:$0xf]
    %v733 = vld [vmem:[#allocation4 + $0x818] sm:$0xf]
    %v734 = vld [vmem:[#allocation4 + $0x81c] sm:$0xf]
    %v735 = vld [vmem:[#allocation4 + $0x820] sm:$0xf]
    %v736 = vld [vmem:[#allocation4 + $0x824] sm:$0xf]
    %v737 = vld [vmem:[#allocation4 + $0x828] sm:$0xf]
    %v738 = vld [vmem:[#allocation4 + $0x82c] sm:$0xf]
    %v739 = vld [vmem:[#allocation4 + $0x830] sm:$0xf]
    %v740 = vld [vmem:[#allocation4 + $0x834] sm:$0xf]
    %v741 = vld [vmem:[#allocation4 + $0x838] sm:$0xf]
    %v742 = vld [vmem:[#allocation4 + $0x83c] sm:$0xf]
    %v743 = vld [vmem:[#allocation4 + $0x840] sm:$0xf]
    %v744 = vld [vmem:[#allocation4 + $0x844] sm:$0xf]
    %v745 = vld [vmem:[#allocation4 + $0x848] sm:$0xf]
    %v746 = vld [vmem:[#allocation4 + $0x84c] sm:$0xf]
    %v747 = vld [vmem:[#allocation4 + $0x850] sm:$0xf]
    %v748 = vld [vmem:[#allocation4 + $0x854] sm:$0xf]
    %v749 = vld [vmem:[#allocation4 + $0x858] sm:$0xf]
    %v750 = vld [vmem:[#allocation4 + $0x85c] sm:$0xf]
    %v751 = vld [vmem:[#allocation4 + $0x860] sm:$0xf]
    %v752 = vld [vmem:[#allocation4 + $0x864] sm:$0xf]
    %v753 = vld [vmem:[#allocation4 + $0x868] sm:$0xf]
    %v754 = vld [vmem:[#allocation4 + $0x86c] sm:$0xf]
    %v755 = vld [vmem:[#allocation4 + $0x870] sm:$0xf]
    %v756 = vld [vmem:[#allocation4 + $0x874] sm:$0xf]
    %v757 = vld [vmem:[#allocation4 + $0x878] sm:$0xf]
    %v758 = vld [vmem:[#allocation4 + $0x87c] sm:$0xf]
    %v759 = vld [vmem:[#allocation4 + $0x880] sm:$0xf]
    %v760 = vld [vmem:[#allocation4 + $0x884] sm:$0xf]
    %v761 = vld [vmem:[#allocation4 + $0x888] sm:$0xf]
    %v762 = vld [vmem:[#allocation4 + $0x88c] sm:$0xf]
    %v763 = vld [vmem:[#allocation4 + $0x890] sm:$0xf]
    %v764 = vld [vmem:[#allocation4 + $0x894] sm:$0xf]
    %v765 = vld [vmem:[#allocation4 + $0x898] sm:$0xf]
    %v766 = vld [vmem:[#allocation4 + $0x89c] sm:$0xf]
    %v767 = vld [vmem:[#allocation4 + $0x8a0] sm:$0xf]
    %v768 = vld [vmem:[#allocation4 + $0x8a4] sm:$0xf]
    %v769 = vld [vmem:[#allocation4 + $0x8a8] sm:$0xf]
    %v770 = vld [vmem:[#allocation4 + $0x8ac] sm:$0xf]
    %v771 = vld [vmem:[#allocation4 + $0x8b0] sm:$0xf]
    %v772 = vld [vmem:[#allocation4 + $0x8b4] sm:$0xf]
    %v773 = vld [vmem:[#allocation4 + $0x8b8] sm:$0xf]
    %v774 = vld [vmem:[#allocation4 + $0x8bc] sm:$0xf]
    %v775 = vld [vmem:[#allocation4 + $0x8c0] sm:$0xf]
    %v776 = vld [vmem:[#allocation4 + $0x8c4] sm:$0xf]
    %v777 = vld [vmem:[#allocation4 + $0x8c8] sm:$0xf]
    %v778 = vld [vmem:[#allocation4 + $0x8cc] sm:$0xf]
    %v779 = vld [vmem:[#allocation4 + $0x8d0] sm:$0xf]
    %v780 = vld [vmem:[#allocation4 + $0x8d4] sm:$0xf]
    %v781 = vld [vmem:[#allocation4 + $0x8d8] sm:$0xf]
    %v782 = vld [vmem:[#allocation4 + $0x8dc] sm:$0xf]
    %v783 = vld [vmem:[#allocation4 + $0x8e0] sm:$0xf]
    %v784 = vld [vmem:[#allocation4 + $0x8e4] sm:$0xf]
    %v785 = vld [vmem:[#allocation4 + $0x8e8] sm:$0xf]
    %v786 = vld [vmem:[#allocation4 + $0x8ec] sm:$0xf]
    %v787 = vld [vmem:[#allocation4 + $0x8f0] sm:$0xf]
    %v788 = vld [vmem:[#allocation4 + $0x8f4] sm:$0xf]
    %v789 = vld [vmem:[#allocation4 + $0x8f8] sm:$0xf]
    %v790 = vld [vmem:[#allocation4 + $0x8fc] sm:$0xf]
    %v791 = vld [vmem:[#allocation4 + $0x900] sm:$0xf]
    %v792 = vld [vmem:[#allocation4 + $0x904] sm:$0xf]
    %v793 = vld [vmem:[#allocation4 + $0x908] sm:$0xf]
    %v794 = vld [vmem:[#allocation4 + $0x90c] sm:$0xf]
    %v795 = vld [vmem:[#allocation4 + $0x910] sm:$0xf]
    %v796 = vld [vmem:[#allocation4 + $0x914] sm:$0xf]
    %v797 = vld [vmem:[#allocation4 + $0x918] sm:$0xf]
    %v798 = vld [vmem:[#allocation4 + $0x91c] sm:$0xf]
    %v799 = vld [vmem:[#allocation4 + $0x920] sm:$0xf]
    %v800 = vld [vmem:[#allocation4 + $0x924] sm:$0xf]
    %v801 = vld [vmem:[#allocation4 + $0x928] sm:$0xf]
    %v802 = vld [vmem:[#allocation4 + $0x92c] sm:$0xf]
    %v803 = vld [vmem:[#allocation4 + $0x930] sm:$0xf]
    %v804 = vld [vmem:[#allocation4 + $0x934] sm:$0xf]
    %v805 = vld [vmem:[#allocation4 + $0x938] sm:$0xf]
    %v806 = vld [vmem:[#allocation4 + $0x93c] sm:$0xf]
    %v807 = vld [vmem:[#allocation4 + $0x940] sm:$0xf]
    %v808 = vld [vmem:[#allocation4 + $0x944] sm:$0xf]
    %v809 = vld [vmem:[#allocation4 + $0x948] sm:$0xf]
    %v810 = vld [vmem:[#allocation4 + $0x94c] sm:$0xf]
    %v811 = vld [vmem:[#allocation4 + $0x950] sm:$0xf]
    %v812 = vld [vmem:[#allocation4 + $0x954] sm:$0xf]
    %v813 = vld [vmem:[#allocation4 + $0x958] sm:$0xf]
    %v814 = vld [vmem:[#allocation4 + $0x95c] sm:$0xf]
    %v815 = vld [vmem:[#allocation4 + $0x960] sm:$0xf]
    %v816 = vld [vmem:[#allocation4 + $0x964] sm:$0xf]
    %v817 = vld [vmem:[#allocation4 + $0x968] sm:$0xf]
    %v818 = vld [vmem:[#allocation4 + $0x96c] sm:$0xf]
    %v819 = vld [vmem:[#allocation4 + $0x970] sm:$0xf]
    %v820 = vld [vmem:[#allocation4 + $0x974] sm:$0xf]
    %v821 = vld [vmem:[#allocation4 + $0x978] sm:$0xf]
    %v822 = vld [vmem:[#allocation4 + $0x97c] sm:$0xf]
    %v823 = vld [vmem:[#allocation4 + $0x980] sm:$0xf]
    %v824 = vld [vmem:[#allocation4 + $0x984] sm:$0xf]
    %v825 = vld [vmem:[#allocation4 + $0x988] sm:$0xf]
    %v826 = vld [vmem:[#allocation4 + $0x98c] sm:$0xf]
    %v827 = vld [vmem:[#allocation4 + $0x990] sm:$0xf]
    %v828 = vld [vmem:[#allocation4 + $0x994] sm:$0xf]
    %v829 = vld [vmem:[#allocation4 + $0x998] sm:$0xf]
    %v830 = vld [vmem:[#allocation4 + $0x99c] sm:$0xf]
    %v831 = vld [vmem:[#allocation4 + $0x9a0] sm:$0xf]
    %v832 = vld [vmem:[#allocation4 + $0x9a4] sm:$0xf]
    %v833 = vld [vmem:[#allocation4 + $0x9a8] sm:$0xf]
    %v834 = vld [vmem:[#allocation4 + $0x9ac] sm:$0xf]
    %v835 = vld [vmem:[#allocation4 + $0x9b0] sm:$0xf]
    %v836 = vld [vmem:[#allocation4 + $0x9b4] sm:$0xf]
    %v837 = vld [vmem:[#allocation4 + $0x9b8] sm:$0xf]
    %v838 = vld [vmem:[#allocation4 + $0x9bc] sm:$0xf]
    %v839 = vld [vmem:[#allocation4 + $0x9c0] sm:$0xf]
    %v840 = vld [vmem:[#allocation4 + $0x9c4] sm:$0xf]
    %v841 = vld [vmem:[#allocation4 + $0x9c8] sm:$0xf]
    %v842 = vld [vmem:[#allocation4 + $0x9cc] sm:$0xf]
    %v843 = vld [vmem:[#allocation4 + $0x9d0] sm:$0xf]
    %v844 = vld [vmem:[#allocation4 + $0x9d4] sm:$0xf]
    %v845 = vld [vmem:[#allocation4 + $0x9d8] sm:$0xf]
    %v846 = vld [vmem:[#allocation4 + $0x9dc] sm:$0xf]
    %v847 = vld [vmem:[#allocation4 + $0x9e0] sm:$0xf]
    %v848 = vld [vmem:[#allocation4 + $0x9e4] sm:$0xf]
    %v849 = vld [vmem:[#allocation4 + $0x9e8] sm:$0xf]
    %v850 = vld [vmem:[#allocation4 + $0x9ec] sm:$0xf]
    %v851 = vld [vmem:[#allocation4 + $0x9f0] sm:$0xf]
    %v852 = vld [vmem:[#allocation4 + $0x9f4] sm:$0xf]
    %v853 = vld [vmem:[#allocation4 + $0x9f8] sm:$0xf]
    %v854 = vld [vmem:[#allocation4 + $0x9fc] sm:$0xf]
    %v855 = vld [vmem:[#allocation4 + $0xa00] sm:$0xf]
    %v856 = vld [vmem:[#allocation4 + $0xa04] sm:$0xf]
    %v857 = vld [vmem:[#allocation4 + $0xa08] sm:$0xf]
    %v858 = vld [vmem:[#allocation4 + $0xa0c] sm:$0xf]
    %v859 = vld [vmem:[#allocation4 + $0xa10] sm:$0xf]
    %v860 = vld [vmem:[#allocation4 + $0xa14] sm:$0xf]
    %v861 = vld [vmem:[#allocation4 + $0xa18] sm:$0xf]
    %v862 = vld [vmem:[#allocation4 + $0xa1c] sm:$0xf]
    %v863 = vld [vmem:[#allocation4 + $0xa20] sm:$0xf]
    %v864 = vld [vmem:[#allocation4 + $0xa24] sm:$0xf]
    %v865 = vld [vmem:[#allocation4 + $0xa28] sm:$0xf]
    %v866 = vld [vmem:[#allocation4 + $0xa2c] sm:$0xf]
    %v867 = vld [vmem:[#allocation4 + $0xa30] sm:$0xf]
    %v868 = vld [vmem:[#allocation4 + $0xa34] sm:$0xf]
    %v869 = vld [vmem:[#allocation4 + $0xa38] sm:$0xf]
    %v870 = vld [vmem:[#allocation4 + $0xa3c] sm:$0xf]
    %v871 = vld [vmem:[#allocation4 + $0xa40] sm:$0xf]
    %v872 = vld [vmem:[#allocation4 + $0xa44] sm:$0xf]
    %v873 = vld [vmem:[#allocation4 + $0xa48] sm:$0xf]
    %v874 = vld [vmem:[#allocation4 + $0xa4c] sm:$0xf]
    %v875 = vld [vmem:[#allocation4 + $0xa50] sm:$0xf]
    %v876 = vld [vmem:[#allocation4 + $0xa54] sm:$0xf]
    %v877 = vld [vmem:[#allocation4 + $0xa58] sm:$0xf]
    %v878 = vld [vmem:[#allocation4 + $0xa5c] sm:$0xf]
    %v879 = vld [vmem:[#allocation4 + $0xa60] sm:$0xf]
    %v880 = vld [vmem:[#allocation4 + $0xa64] sm:$0xf]
    %v881 = vld [vmem:[#allocation4 + $0xa68] sm:$0xf]
    %v882 = vld [vmem:[#allocation4 + $0xa6c] sm:$0xf]
    %v883 = vld [vmem:[#allocation4 + $0xa70] sm:$0xf]
    %v884 = vld [vmem:[#allocation4 + $0xa74] sm:$0xf]
    %v885 = vld [vmem:[#allocation4 + $0xa78] sm:$0xf]
    %v886 = vld [vmem:[#allocation4 + $0xa7c] sm:$0xf]
    %v887 = vld [vmem:[#allocation4 + $0xa80] sm:$0xf]
    %v888 = vld [vmem:[#allocation4 + $0xa84] sm:$0xf]
    %v889 = vld [vmem:[#allocation4 + $0xa88] sm:$0xf]
    %v890 = vld [vmem:[#allocation4 + $0xa8c] sm:$0xf]
    %v891 = vld [vmem:[#allocation4 + $0xa90] sm:$0xf]
    %v892 = vld [vmem:[#allocation4 + $0xa94] sm:$0xf]
    %v893 = vld [vmem:[#allocation4 + $0xa98] sm:$0xf]
    %v894 = vld [vmem:[#allocation4 + $0xa9c] sm:$0xf]
    %v895 = vld [vmem:[#allocation4 + $0xaa0] sm:$0xf]
    %v896 = vld [vmem:[#allocation4 + $0xaa4] sm:$0xf]
    %v897 = vld [vmem:[#allocation4 + $0xaa8] sm:$0xf]
    %v898 = vld [vmem:[#allocation4 + $0xaac] sm:$0xf]
    %v899 = vld [vmem:[#allocation4 + $0xab0] sm:$0xf]
    %v900 = vld [vmem:[#allocation4 + $0xab4] sm:$0xf]
    %v901 = vld [vmem:[#allocation4 + $0xab8] sm:$0xf]
    %v902 = vld [vmem:[#allocation4 + $0xabc] sm:$0xf]
    %v903 = vld [vmem:[#allocation4 + $0xac0] sm:$0xf]
    %v904 = vld [vmem:[#allocation4 + $0xac4] sm:$0xf]
    %v905 = vld [vmem:[#allocation4 + $0xac8] sm:$0xf]
    %v906 = vld [vmem:[#allocation4 + $0xacc] sm:$0xf]
    %v907 = vld [vmem:[#allocation4 + $0xad0] sm:$0xf]
    %v908 = vld [vmem:[#allocation4 + $0xad4] sm:$0xf]
    %v909 = vld [vmem:[#allocation4 + $0xad8] sm:$0xf]
    %v910 = vld [vmem:[#allocation4 + $0xadc] sm:$0xf]
    %v911 = vld [vmem:[#allocation4 + $0xae0] sm:$0xf]
    %v912 = vld [vmem:[#allocation4 + $0xae4] sm:$0xf]
    %v913 = vld [vmem:[#allocation4 + $0xae8] sm:$0xf]
    %v914 = vld [vmem:[#allocation4 + $0xaec] sm:$0xf]
    %v915 = vld [vmem:[#allocation4 + $0xaf0] sm:$0xf]
    %v916 = vld [vmem:[#allocation4 + $0xaf4] sm:$0xf]
    %v917 = vld [vmem:[#allocation4 + $0xaf8] sm:$0xf]
    %v918 = vld [vmem:[#allocation4 + $0xafc] sm:$0xf]
    %v919 = vld [vmem:[#allocation4 + $0xb00] sm:$0xf]
    %v920 = vld [vmem:[#allocation4 + $0xb04] sm:$0xf]
    %v921 = vld [vmem:[#allocation4 + $0xb08] sm:$0xf]
    %v922 = vld [vmem:[#allocation4 + $0xb0c] sm:$0xf]
    %v923 = vld [vmem:[#allocation4 + $0xb10] sm:$0xf]
    %v924 = vld [vmem:[#allocation4 + $0xb14] sm:$0xf]
    %v925 = vld [vmem:[#allocation4 + $0xb18] sm:$0xf]
    %v926 = vld [vmem:[#allocation4 + $0xb1c] sm:$0xf]
    %v927 = vld [vmem:[#allocation4 + $0xb20] sm:$0xf]
    %v928 = vld [vmem:[#allocation4 + $0xb24] sm:$0xf]
    %v929 = vld [vmem:[#allocation4 + $0xb28] sm:$0xf]
    %v930 = vld [vmem:[#allocation4 + $0xb2c] sm:$0xf]
    %v931 = vld [vmem:[#allocation4 + $0xb30] sm:$0xf]
    %v932 = vld [vmem:[#allocation4 + $0xb34] sm:$0xf]
    %v933 = vld [vmem:[#allocation4 + $0xb38] sm:$0xf]
    %v934 = vld [vmem:[#allocation4 + $0xb3c] sm:$0xf]
    %v935 = vld [vmem:[#allocation4 + $0xb40] sm:$0xf]
    %v936 = vld [vmem:[#allocation4 + $0xb44] sm:$0xf]
    %v937 = vld [vmem:[#allocation4 + $0xb48] sm:$0xf]
    %v938 = vld [vmem:[#allocation4 + $0xb4c] sm:$0xf]
    %v939 = vld [vmem:[#allocation4 + $0xb50] sm:$0xf]
    %v940 = vld [vmem:[#allocation4 + $0xb54] sm:$0xf]
    %v941 = vld [vmem:[#allocation4 + $0xb58] sm:$0xf]
    %v942 = vld [vmem:[#allocation4 + $0xb5c] sm:$0xf]
    %v943 = vld [vmem:[#allocation4 + $0xb60] sm:$0xf]
    %v944 = vld [vmem:[#allocation4 + $0xb64] sm:$0xf]
    %v945 = vld [vmem:[#allocation4 + $0xb68] sm:$0xf]
    %v946 = vld [vmem:[#allocation4 + $0xb6c] sm:$0xf]
    %v947 = vld [vmem:[#allocation4 + $0xb70] sm:$0xf]
    %v948 = vld [vmem:[#allocation4 + $0xb74] sm:$0xf]
    %v949 = vld [vmem:[#allocation4 + $0xb78] sm:$0xf]
    %v950 = vld [vmem:[#allocation4 + $0xb7c] sm:$0xf]
    %v951 = vld [vmem:[#allocation4 + $0xb80] sm:$0xf]
    %v952 = vld [vmem:[#allocation4 + $0xb84] sm:$0xf]
    %v953 = vld [vmem:[#allocation4 + $0xb88] sm:$0xf]
    %v954 = vld [vmem:[#allocation4 + $0xb8c] sm:$0xf]
    %v955 = vld [vmem:[#allocation4 + $0xb90] sm:$0xf]
    %v956 = vld [vmem:[#allocation4 + $0xb94] sm:$0xf]
    %v957 = vld [vmem:[#allocation4 + $0xb98] sm:$0xf]
    %v958 = vld [vmem:[#allocation4 + $0xb9c] sm:$0xf]
    %v959 = vld [vmem:[#allocation4 + $0xba0] sm:$0xf]
    %v960 = vld [vmem:[#allocation4 + $0xba4] sm:$0xf]
    %v961 = vld [vmem:[#allocation4 + $0xba8] sm:$0xf]
    %v962 = vld [vmem:[#allocation4 + $0xbac] sm:$0xf]
    %v963 = vld [vmem:[#allocation4 + $0xbb0] sm:$0xf]
    %v964 = vld [vmem:[#allocation4 + $0xbb4] sm:$0xf]
    %v965 = vld [vmem:[#allocation4 + $0xbb8] sm:$0xf]
    %v966 = vld [vmem:[#allocation4 + $0xbbc] sm:$0xf]
    %v967 = vld [vmem:[#allocation4 + $0xbc0] sm:$0xf]
    %v968 = vld [vmem:[#allocation4 + $0xbc4] sm:$0xf]
    %v969 = vld [vmem:[#allocation4 + $0xbc8] sm:$0xf]
    %v970 = vld [vmem:[#allocation4 + $0xbcc] sm:$0xf]
    %v971 = vld [vmem:[#allocation4 + $0xbd0] sm:$0xf]
    %v972 = vld [vmem:[#allocation4 + $0xbd4] sm:$0xf]
    %v973 = vld [vmem:[#allocation4 + $0xbd8] sm:$0xf]
    %v974 = vld [vmem:[#allocation4 + $0xbdc] sm:$0xf]
    %v975 = vld [vmem:[#allocation4 + $0xbe0] sm:$0xf]
    %v976 = vld [vmem:[#allocation4 + $0xbe4] sm:$0xf]
    %v977 = vld [vmem:[#allocation4 + $0xbe8] sm:$0xf]
    %v978 = vld [vmem:[#allocation4 + $0xbec] sm:$0xf]
    %v979 = vld [vmem:[#allocation4 + $0xbf0] sm:$0xf]
    %v980 = vld [vmem:[#allocation4 + $0xbf4] sm:$0xf]
    %v981 = vld [vmem:[#allocation4 + $0xbf8] sm:$0xf]
    %v982 = vld [vmem:[#allocation4 + $0xbfc] sm:$0xf]
    %v983 = vld [vmem:[#allocation4 + $0xc00] sm:$0xf]
    %v984 = vld [vmem:[#allocation4 + $0xc04] sm:$0xf]
    %v985 = vld [vmem:[#allocation4 + $0xc08] sm:$0xf]
    %v986 = vld [vmem:[#allocation4 + $0xc0c] sm:$0xf]
    %v987 = vld [vmem:[#allocation4 + $0xc10] sm:$0xf]
    %v988 = vld [vmem:[#allocation4 + $0xc14] sm:$0xf]
    %v989 = vld [vmem:[#allocation4 + $0xc18] sm:$0xf]
    %v990 = vld [vmem:[#allocation4 + $0xc1c] sm:$0xf]
    %v991 = vld [vmem:[#allocation4 + $0xc20] sm:$0xf]
    %v992 = vld [vmem:[#allocation4 + $0xc24] sm:$0xf]
    %v993 = vld [vmem:[#allocation4 + $0xc28] sm:$0xf]
    %v994 = vld [vmem:[#allocation4 + $0xc2c] sm:$0xf]
    %v995 = vld [vmem:[#allocation4 + $0xc30] sm:$0xf]
    %v996 = vld [vmem:[#allocation4 + $0xc34] sm:$0xf]
    %v997 = vld [vmem:[#allocation4 + $0xc38] sm:$0xf]
    %v998 = vld [vmem:[#allocation4 + $0xc3c] sm:$0xf]
    %v999 = vld [vmem:[#allocation4 + $0xc40] sm:$0xf]
    %v1000 = vld [vmem:[#allocation4 + $0xc44] sm:$0xf]
    %v1001 = vld [vmem:[#allocation4 + $0xc48] sm:$0xf]
    %v1002 = vld [vmem:[#allocation4 + $0xc4c] sm:$0xf]
    %v1003 = vld [vmem:[#allocation4 + $0xc50] sm:$0xf]
    %v1004 = vld [vmem:[#allocation4 + $0xc54] sm:$0xf]
    %v1005 = vld [vmem:[#allocation4 + $0xc58] sm:$0xf]
    %v1006 = vld [vmem:[#allocation4 + $0xc5c] sm:$0xf]
    %v1007 = vld [vmem:[#allocation4 + $0xc60] sm:$0xf]
    %v1008 = vld [vmem:[#allocation4 + $0xc64] sm:$0xf]
    %v1009 = vld [vmem:[#allocation4 + $0xc68] sm:$0xf]
    %v1010 = vld [vmem:[#allocation4 + $0xc6c] sm:$0xf]
    %v1011 = vld [vmem:[#allocation4 + $0xc70] sm:$0xf]
    %v1012 = vld [vmem:[#allocation4 + $0xc74] sm:$0xf]
    %v1013 = vld [vmem:[#allocation4 + $0xc78] sm:$0xf]
    %v1014 = vld [vmem:[#allocation4 + $0xc7c] sm:$0xf]
    %v1015 = vld [vmem:[#allocation4 + $0xc80] sm:$0xf]
    %v1016 = vld [vmem:[#allocation4 + $0xc84] sm:$0xf]
    %v1017 = vld [vmem:[#allocation4 + $0xc88] sm:$0xf]
    %v1018 = vld [vmem:[#allocation4 + $0xc8c] sm:$0xf]
    %v1019 = vld [vmem:[#allocation4 + $0xc90] sm:$0xf]
    %v1020 = vld [vmem:[#allocation4 + $0xc94] sm:$0xf]
    %v1021 = vld [vmem:[#allocation4 + $0xc98] sm:$0xf]
    %v1022 = vld [vmem:[#allocation4 + $0xc9c] sm:$0xf]
    %v1023 = vld [vmem:[#allocation4 + $0xca0] sm:$0xf]
    %v1024 = vld [vmem:[#allocation4 + $0xca4] sm:$0xf]
    %v1025 = vld [vmem:[#allocation4 + $0xca8] sm:$0xf]
    %v1026 = vld [vmem:[#allocation4 + $0xcac] sm:$0xf]
    %v1027 = vld [vmem:[#allocation4 + $0xcb0] sm:$0xf]
    %v1028 = vld [vmem:[#allocation4 + $0xcb4] sm:$0xf]
    %v1029 = vld [vmem:[#allocation4 + $0xcb8] sm:$0xf]
    %v1030 = vld [vmem:[#allocation4 + $0xcbc] sm:$0xf]
    %v1031 = vld [vmem:[#allocation4 + $0xcc0] sm:$0xf]
    %v1032 = vld [vmem:[#allocation4 + $0xcc4] sm:$0xf]
    %v1033 = vld [vmem:[#allocation4 + $0xcc8] sm:$0xf]
    %v1034 = vld [vmem:[#allocation4 + $0xccc] sm:$0xf]
    %v1035 = vld [vmem:[#allocation4 + $0xcd0] sm:$0xf]
    %v1036 = vld [vmem:[#allocation4 + $0xcd4] sm:$0xf]
    %v1037 = vld [vmem:[#allocation4 + $0xcd8] sm:$0xf]
    %v1038 = vld [vmem:[#allocation4 + $0xcdc] sm:$0xf]
    %v1039 = vld [vmem:[#allocation4 + $0xce0] sm:$0xf]
    %v1040 = vld [vmem:[#allocation4 + $0xce4] sm:$0xf]
    %v1041 = vld [vmem:[#allocation4 + $0xce8] sm:$0xf]
    %v1042 = vld [vmem:[#allocation4 + $0xcec] sm:$0xf]
    %v1043 = vld [vmem:[#allocation4 + $0xcf0] sm:$0xf]
    %v1044 = vld [vmem:[#allocation4 + $0xcf4] sm:$0xf]
    %v1045 = vld [vmem:[#allocation4 + $0xcf8] sm:$0xf]
    %v1046 = vld [vmem:[#allocation4 + $0xcfc] sm:$0xf]
    %v1047 = vld [vmem:[#allocation4 + $0xd00] sm:$0xf]
    %v1048 = vld [vmem:[#allocation4 + $0xd04] sm:$0xf]
    %v1049 = vld [vmem:[#allocation4 + $0xd08] sm:$0xf]
    %v1050 = vld [vmem:[#allocation4 + $0xd0c] sm:$0xf]
    %v1051 = vld [vmem:[#allocation4 + $0xd10] sm:$0xf]
    %v1052 = vld [vmem:[#allocation4 + $0xd14] sm:$0xf]
    %v1053 = vld [vmem:[#allocation4 + $0xd18] sm:$0xf]
    %v1054 = vld [vmem:[#allocation4 + $0xd1c] sm:$0xf]
    %v1055 = vld [vmem:[#allocation4 + $0xd20] sm:$0xf]
    %v1056 = vld [vmem:[#allocation4 + $0xd24] sm:$0xf]
    %v1057 = vld [vmem:[#allocation4 + $0xd28] sm:$0xf]
    %v1058 = vld [vmem:[#allocation4 + $0xd2c] sm:$0xf]
    %v1059 = vld [vmem:[#allocation4 + $0xd30] sm:$0xf]
    %v1060 = vld [vmem:[#allocation4 + $0xd34] sm:$0xf]
    %v1061 = vld [vmem:[#allocation4 + $0xd38] sm:$0xf]
    %v1062 = vld [vmem:[#allocation4 + $0xd3c] sm:$0xf]
    %v1063 = vld [vmem:[#allocation4 + $0xd40] sm:$0xf]
    %v1064 = vld [vmem:[#allocation4 + $0xd44] sm:$0xf]
    %v1065 = vld [vmem:[#allocation4 + $0xd48] sm:$0xf]
    %v1066 = vld [vmem:[#allocation4 + $0xd4c] sm:$0xf]
    %v1067 = vld [vmem:[#allocation4 + $0xd50] sm:$0xf]
    %v1068 = vld [vmem:[#allocation4 + $0xd54] sm:$0xf]
    %v1069 = vld [vmem:[#allocation4 + $0xd58] sm:$0xf]
    %v1070 = vld [vmem:[#allocation4 + $0xd5c] sm:$0xf]
    %v1071 = vld [vmem:[#allocation4 + $0xd60] sm:$0xf]
    %v1072 = vld [vmem:[#allocation4 + $0xd64] sm:$0xf]
    %v1073 = vld [vmem:[#allocation4 + $0xd68] sm:$0xf]
    %v1074 = vld [vmem:[#allocation4 + $0xd6c] sm:$0xf]
    %v1075 = vld [vmem:[#allocation4 + $0xd70] sm:$0xf]
    %v1076 = vld [vmem:[#allocation4 + $0xd74] sm:$0xf]
    %v1077 = vld [vmem:[#allocation4 + $0xd78] sm:$0xf]
    %v1078 = vld [vmem:[#allocation4 + $0xd7c] sm:$0xf]
    %v1079 = vld [vmem:[#allocation4 + $0xd80] sm:$0xf]
    %v1080 = vld [vmem:[#allocation4 + $0xd84] sm:$0xf]
    %v1081 = vld [vmem:[#allocation4 + $0xd88] sm:$0xf]
    %v1082 = vld [vmem:[#allocation4 + $0xd8c] sm:$0xf]
    %v1083 = vld [vmem:[#allocation4 + $0xd90] sm:$0xf]
    %v1084 = vld [vmem:[#allocation4 + $0xd94] sm:$0xf]
    %v1085 = vld [vmem:[#allocation4 + $0xd98] sm:$0xf]
    %v1086 = vld [vmem:[#allocation4 + $0xd9c] sm:$0xf]
    %v1087 = vld [vmem:[#allocation4 + $0xda0] sm:$0xf]
    %v1088 = vld [vmem:[#allocation4 + $0xda4] sm:$0xf]
    %v1089 = vld [vmem:[#allocation4 + $0xda8] sm:$0xf]
    %v1090 = vld [vmem:[#allocation4 + $0xdac] sm:$0xf]
    %v1091 = vld [vmem:[#allocation4 + $0xdb0] sm:$0xf]
    %v1092 = vld [vmem:[#allocation4 + $0xdb4] sm:$0xf]
    %v1093 = vld [vmem:[#allocation4 + $0xdb8] sm:$0xf]
    %v1094 = vld [vmem:[#allocation4 + $0xdbc] sm:$0xf]
    %v1095 = vld [vmem:[#allocation4 + $0xdc0] sm:$0xf]
    %v1096 = vld [vmem:[#allocation4 + $0xdc4] sm:$0xf]
    %v1097 = vld [vmem:[#allocation4 + $0xdc8] sm:$0xf]
    %v1098 = vld [vmem:[#allocation4 + $0xdcc] sm:$0xf]
    %v1099 = vld [vmem:[#allocation4 + $0xdd0] sm:$0xf]
    %v1100 = vld [vmem:[#allocation4 + $0xdd4] sm:$0xf]
    %v1101 = vld [vmem:[#allocation4 + $0xdd8] sm:$0xf]
    %v1102 = vld [vmem:[#allocation4 + $0xddc] sm:$0xf]
    %v1103 = vld [vmem:[#allocation4 + $0xde0] sm:$0xf]
    %v1104 = vld [vmem:[#allocation4 + $0xde4] sm:$0xf]
    %v1105 = vld [vmem:[#allocation4 + $0xde8] sm:$0xf]
    %v1106 = vld [vmem:[#allocation4 + $0xdec] sm:$0xf]
    %v1107 = vld [vmem:[#allocation4 + $0xdf0] sm:$0xf]
    %v1108 = vld [vmem:[#allocation4 + $0xdf4] sm:$0xf]
    %v1109 = vld [vmem:[#allocation4 + $0xdf8] sm:$0xf]
    %v1110 = vld [vmem:[#allocation4 + $0xdfc] sm:$0xf]
    %v1111 = vld [vmem:[#allocation4 + $0xe00] sm:$0xf]
    %v1112 = vld [vmem:[#allocation4 + $0xe04] sm:$0xf]
    %v1113 = vld [vmem:[#allocation4 + $0xe08] sm:$0xf]
    %v1114 = vld [vmem:[#allocation4 + $0xe0c] sm:$0xf]
    %v1115 = vld [vmem:[#allocation4 + $0xe10] sm:$0xf]
    %v1116 = vld [vmem:[#allocation4 + $0xe14] sm:$0xf]
    %v1117 = vld [vmem:[#allocation4 + $0xe18] sm:$0xf]
    %v1118 = vld [vmem:[#allocation4 + $0xe1c] sm:$0xf]
    %v1119 = vld [vmem:[#allocation4 + $0xe20] sm:$0xf]
    %v1120 = vld [vmem:[#allocation4 + $0xe24] sm:$0xf]
    %v1121 = vld [vmem:[#allocation4 + $0xe28] sm:$0xf]
    %v1122 = vld [vmem:[#allocation4 + $0xe2c] sm:$0xf]
    %v1123 = vld [vmem:[#allocation4 + $0xe30] sm:$0xf]
    %v1124 = vld [vmem:[#allocation4 + $0xe34] sm:$0xf]
    %v1125 = vld [vmem:[#allocation4 + $0xe38] sm:$0xf]
    %v1126 = vld [vmem:[#allocation4 + $0xe3c] sm:$0xf]
    %v1127 = vld [vmem:[#allocation4 + $0xe40] sm:$0xf]
    %v1128 = vld [vmem:[#allocation4 + $0xe44] sm:$0xf]
    %v1129 = vld [vmem:[#allocation4 + $0xe48] sm:$0xf]
    %v1130 = vld [vmem:[#allocation4 + $0xe4c] sm:$0xf]
    %v1131 = vld [vmem:[#allocation4 + $0xe50] sm:$0xf]
    %v1132 = vld [vmem:[#allocation4 + $0xe54] sm:$0xf]
    %v1133 = vld [vmem:[#allocation4 + $0xe58] sm:$0xf]
    %v1134 = vld [vmem:[#allocation4 + $0xe5c] sm:$0xf]
    %v1135 = vld [vmem:[#allocation4 + $0xe60] sm:$0xf]
    %v1136 = vld [vmem:[#allocation4 + $0xe64] sm:$0xf]
    %v1137 = vld [vmem:[#allocation4 + $0xe68] sm:$0xf]
    %v1138 = vld [vmem:[#allocation4 + $0xe6c] sm:$0xf]
    %v1139 = vld [vmem:[#allocation4 + $0xe70] sm:$0xf]
    %v1140 = vld [vmem:[#allocation4 + $0xe74] sm:$0xf]
    %v1141 = vld [vmem:[#allocation4 + $0xe78] sm:$0xf]
    %v1142 = vld [vmem:[#allocation4 + $0xe7c] sm:$0xf]
    %v1143 = vld [vmem:[#allocation4 + $0xe80] sm:$0xf]
    %v1144 = vld [vmem:[#allocation4 + $0xe84] sm:$0xf]
    %v1145 = vld [vmem:[#allocation4 + $0xe88] sm:$0xf]
    %v1146 = vld [vmem:[#allocation4 + $0xe8c] sm:$0xf]
    %v1147 = vld [vmem:[#allocation4 + $0xe90] sm:$0xf]
    %v1148 = vld [vmem:[#allocation4 + $0xe94] sm:$0xf]
    %v1149 = vld [vmem:[#allocation4 + $0xe98] sm:$0xf]
    %v1150 = vld [vmem:[#allocation4 + $0xe9c] sm:$0xf]
    %v1151 = vld [vmem:[#allocation4 + $0xea0] sm:$0xf]
    %v1152 = vld [vmem:[#allocation4 + $0xea4] sm:$0xf]
    %v1153 = vld [vmem:[#allocation4 + $0xea8] sm:$0xf]
    %v1154 = vld [vmem:[#allocation4 + $0xeac] sm:$0xf]
    %v1155 = vld [vmem:[#allocation4 + $0xeb0] sm:$0xf]
    %v1156 = vld [vmem:[#allocation4 + $0xeb4] sm:$0xf]
    %v1157 = vld [vmem:[#allocation4 + $0xeb8] sm:$0xf]
    %v1158 = vld [vmem:[#allocation4 + $0xebc] sm:$0xf]
    %v1159 = vld [vmem:[#allocation4 + $0xec0] sm:$0xf]
    %v1160 = vld [vmem:[#allocation4 + $0xec4] sm:$0xf]
    %v1161 = vld [vmem:[#allocation4 + $0xec8] sm:$0xf]
    %v1162 = vld [vmem:[#allocation4 + $0xecc] sm:$0xf]
    %v1163 = vld [vmem:[#allocation4 + $0xed0] sm:$0xf]
    %v1164 = vld [vmem:[#allocation4 + $0xed4] sm:$0xf]
    %v1165 = vld [vmem:[#allocation4 + $0xed8] sm:$0xf]
    %v1166 = vld [vmem:[#allocation4 + $0xedc] sm:$0xf]
    %v1167 = vld [vmem:[#allocation4 + $0xee0] sm:$0xf]
    %v1168 = vld [vmem:[#allocation4 + $0xee4] sm:$0xf]
    %v1169 = vld [vmem:[#allocation4 + $0xee8] sm:$0xf]
    %v1170 = vld [vmem:[#allocation4 + $0xeec] sm:$0xf]
    %v1171 = vld [vmem:[#allocation4 + $0xef0] sm:$0xf]
    %v1172 = vld [vmem:[#allocation4 + $0xef4] sm:$0xf]
    %v1173 = vld [vmem:[#allocation4 + $0xef8] sm:$0xf]
    %v1174 = vld [vmem:[#allocation4 + $0xefc] sm:$0xf]
    %v1175 = vld [vmem:[#allocation4 + $0xf00] sm:$0xf]
    %v1176 = vld [vmem:[#allocation4 + $0xf04] sm:$0xf]
    %v1177 = vld [vmem:[#allocation4 + $0xf08] sm:$0xf]
    %v1178 = vld [vmem:[#allocation4 + $0xf0c] sm:$0xf]
    %v1179 = vld [vmem:[#allocation4 + $0xf10] sm:$0xf]
    %v1180 = vld [vmem:[#allocation4 + $0xf14] sm:$0xf]
    %v1181 = vld [vmem:[#allocation4 + $0xf18] sm:$0xf]
    %v1182 = vld [vmem:[#allocation4 + $0xf1c] sm:$0xf]
    %v1183 = vld [vmem:[#allocation4 + $0xf20] sm:$0xf]
    %v1184 = vld [vmem:[#allocation4 + $0xf24] sm:$0xf]
    %v1185 = vld [vmem:[#allocation4 + $0xf28] sm:$0xf]
    %v1186 = vld [vmem:[#allocation4 + $0xf2c] sm:$0xf]
    %v1187 = vld [vmem:[#allocation4 + $0xf30] sm:$0xf]
    %v1188 = vld [vmem:[#allocation4 + $0xf34] sm:$0xf]
    %v1189 = vld [vmem:[#allocation4 + $0xf38] sm:$0xf]
    %v1190 = vld [vmem:[#allocation4 + $0xf3c] sm:$0xf]
    %v1191 = vld [vmem:[#allocation4 + $0xf40] sm:$0xf]
    %v1192 = vld [vmem:[#allocation4 + $0xf44] sm:$0xf]
    %v1193 = vld [vmem:[#allocation4 + $0xf48] sm:$0xf]
    %v1194 = vld [vmem:[#allocation4 + $0xf4c] sm:$0xf]
    %v1195 = vld [vmem:[#allocation4 + $0xf50] sm:$0xf]
    %v1196 = vld [vmem:[#allocation4 + $0xf54] sm:$0xf]
    %v1197 = vld [vmem:[#allocation4 + $0xf58] sm:$0xf]
    %v1198 = vld [vmem:[#allocation4 + $0xf5c] sm:$0xf]
    %v1199 = vld [vmem:[#allocation4 + $0xf60] sm:$0xf]
    %v1200 = vld [vmem:[#allocation4 + $0xf64] sm:$0xf]
    %v1201 = vld [vmem:[#allocation4 + $0xf68] sm:$0xf]
    %v1202 = vld [vmem:[#allocation4 + $0xf6c] sm:$0xf]
    %v1203 = vld [vmem:[#allocation4 + $0xf70] sm:$0xf]
    %v1204 = vld [vmem:[#allocation4 + $0xf74] sm:$0xf]
    %v1205 = vld [vmem:[#allocation4 + $0xf78] sm:$0xf]
    %v1206 = vld [vmem:[#allocation4 + $0xf7c] sm:$0xf]
    %v1207 = vld [vmem:[#allocation4 + $0xf80] sm:$0xf]
    %v1208 = vld [vmem:[#allocation4 + $0xf84] sm:$0xf]
    %v1209 = vld [vmem:[#allocation4 + $0xf88] sm:$0xf]
    %v1210 = vld [vmem:[#allocation4 + $0xf8c] sm:$0xf]
    %v1211 = vld [vmem:[#allocation4 + $0xf90] sm:$0xf]
    %v1212 = vld [vmem:[#allocation4 + $0xf94] sm:$0xf]
    %v1213 = vld [vmem:[#allocation4 + $0xf98] sm:$0xf]
    %v1214 = vld [vmem:[#allocation4 + $0xf9c] sm:$0xf]
    %v1215 = vld [vmem:[#allocation4 + $0xfa0] sm:$0xf]
    %v1216 = vld [vmem:[#allocation4 + $0xfa4] sm:$0xf]
    %v1217 = vld [vmem:[#allocation4 + $0xfa8] sm:$0xf]
    %v1218 = vld [vmem:[#allocation4 + $0xfac] sm:$0xf]
    %v1219 = vld [vmem:[#allocation4 + $0xfb0] sm:$0xf]
    %v1220 = vld [vmem:[#allocation4 + $0xfb4] sm:$0xf]
    %v1221 = vld [vmem:[#allocation4 + $0xfb8] sm:$0xf]
    %v1222 = vld [vmem:[#allocation4 + $0xfbc] sm:$0xf]
    %v1223 = vld [vmem:[#allocation4 + $0xfc0] sm:$0xf]
    %v1224 = vld [vmem:[#allocation4 + $0xfc4] sm:$0xf]
    %v1225 = vld [vmem:[#allocation4 + $0xfc8] sm:$0xf]
    %v1226 = vld [vmem:[#allocation4 + $0xfcc] sm:$0xf]
    %v1227 = vld [vmem:[#allocation4 + $0xfd0] sm:$0xf]
    %v1228 = vld [vmem:[#allocation4 + $0xfd4] sm:$0xf]
    %v1229 = vld [vmem:[#allocation4 + $0xfd8] sm:$0xf]
    %v1230 = vld [vmem:[#allocation4 + $0xfdc] sm:$0xf]
    %v1231 = vld [vmem:[#allocation4 + $0xfe0] sm:$0xf]
    %v1232 = vld [vmem:[#allocation4 + $0xfe4] sm:$0xf]
    %v1233 = vld [vmem:[#allocation4 + $0xfe8] sm:$0xf]
    %v1234 = vld [vmem:[#allocation4 + $0xfec] sm:$0xf]
    %v1235 = vld [vmem:[#allocation4 + $0xff0] sm:$0xf]
    %v1236 = vld [vmem:[#allocation4 + $0xff4] sm:$0xf]
    %v1237 = vld [vmem:[#allocation4 + $0xff8] sm:$0xf]
    %v1238 = vld [vmem:[#allocation4 + $0xffc] sm:$0xf]
    %v1239 = vld [vmem:[#allocation6] sm:$0x1]
    %v1241 = vlaneseq
    %v1242 = vshrl.u32 %v1241, 7
    %v1243 = vsub.s32 0, %v1242
    %v1244 = vrot.slane %v1239, %v1243
    %v2270 = vunpack.c.l.b16 %v215
    %v2271 = vunpack.c.l.b16 %v216
    %v2272 = vunpack.c.l.b16 %v217
    %v2273 = vunpack.c.l.b16 %v218
    %v2274 = vunpack.c.l.b16 %v219
    %v2275 = vunpack.c.l.b16 %v220
    %v2276 = vunpack.c.l.b16 %v221
    %v2277 = vunpack.c.l.b16 %v222
    %v2278 = vunpack.c.l.b16 %v223
    %v2279 = vunpack.c.l.b16 %v224
    %v2280 = vunpack.c.l.b16 %v225
    %v2281 = vunpack.c.l.b16 %v226
    %v2282 = vunpack.c.l.b16 %v227
    %v2283 = vunpack.c.l.b16 %v228
    %v2284 = vunpack.c.l.b16 %v229
    %v2285 = vunpack.c.l.b16 %v230
    %v2286 = vunpack.c.l.b16 %v231
    %v2287 = vunpack.c.l.b16 %v232
    %v2288 = vunpack.c.l.b16 %v233
    %v2289 = vunpack.c.l.b16 %v234
    %v2290 = vunpack.c.l.b16 %v235
    %v2291 = vunpack.c.l.b16 %v236
    %v2292 = vunpack.c.l.b16 %v237
    %v2293 = vunpack.c.l.b16 %v238
    %v2294 = vunpack.c.l.b16 %v239
    %v2295 = vunpack.c.l.b16 %v240
    %v2296 = vunpack.c.l.b16 %v241
    %v2297 = vunpack.c.l.b16 %v242
    %v2298 = vunpack.c.l.b16 %v243
    %v2299 = vunpack.c.l.b16 %v244
    %v2300 = vunpack.c.l.b16 %v245
    %v2301 = vunpack.c.l.b16 %v246
    %v2302 = vunpack.c.l.b16 %v247
    %v2303 = vunpack.c.l.b16 %v248
    %v2304 = vunpack.c.l.b16 %v249
    %v2305 = vunpack.c.l.b16 %v250
    %v2306 = vunpack.c.l.b16 %v251
    %v2307 = vunpack.c.l.b16 %v252
    %v2308 = vunpack.c.l.b16 %v253
    %v2309 = vunpack.c.l.b16 %v254
    %v2310 = vunpack.c.l.b16 %v255
    %v2311 = vunpack.c.l.b16 %v256
    %v2312 = vunpack.c.l.b16 %v257
    %v2313 = vunpack.c.l.b16 %v258
    %v2314 = vunpack.c.l.b16 %v259
    %v2315 = vunpack.c.l.b16 %v260
    %v2316 = vunpack.c.l.b16 %v261
    %v2317 = vunpack.c.l.b16 %v262
    %v2318 = vunpack.c.l.b16 %v263
    %v2319 = vunpack.c.l.b16 %v264
    %v2320 = vunpack.c.l.b16 %v265
    %v2321 = vunpack.c.l.b16 %v266
    %v2322 = vunpack.c.l.b16 %v267
    %v2323 = vunpack.c.l.b16 %v268
    %v2324 = vunpack.c.l.b16 %v269
    %v2325 = vunpack.c.l.b16 %v270
    %v2326 = vunpack.c.l.b16 %v271
    %v2327 = vunpack.c.l.b16 %v272
    %v2328 = vunpack.c.l.b16 %v273
    %v2329 = vunpack.c.l.b16 %v274
    %v2330 = vunpack.c.l.b16 %v275
    %v2331 = vunpack.c.l.b16 %v276
    %v2332 = vunpack.c.l.b16 %v277
    %v2333 = vunpack.c.l.b16 %v278
    %v2334 = vunpack.c.l.b16 %v279
    %v2335 = vunpack.c.l.b16 %v280
    %v2336 = vunpack.c.l.b16 %v281
    %v2337 = vunpack.c.l.b16 %v282
    %v2338 = vunpack.c.l.b16 %v283
    %v2339 = vunpack.c.l.b16 %v284
    %v2340 = vunpack.c.l.b16 %v285
    %v2341 = vunpack.c.l.b16 %v286
    %v2342 = vunpack.c.l.b16 %v287
    %v2343 = vunpack.c.l.b16 %v288
    %v2344 = vunpack.c.l.b16 %v289
    %v2345 = vunpack.c.l.b16 %v290
    %v2346 = vunpack.c.l.b16 %v291
    %v2347 = vunpack.c.l.b16 %v292
    %v2348 = vunpack.c.l.b16 %v293
    %v2349 = vunpack.c.l.b16 %v294
    %v2350 = vunpack.c.l.b16 %v295
    %v2351 = vunpack.c.l.b16 %v296
    %v2352 = vunpack.c.l.b16 %v297
    %v2353 = vunpack.c.l.b16 %v298
    %v2354 = vunpack.c.l.b16 %v299
    %v2355 = vunpack.c.l.b16 %v300
    %v2356 = vunpack.c.l.b16 %v301
    %v2357 = vunpack.c.l.b16 %v302
    %v2358 = vunpack.c.l.b16 %v303
    %v2359 = vunpack.c.l.b16 %v304
    %v2360 = vunpack.c.l.b16 %v305
    %v2361 = vunpack.c.l.b16 %v306
    %v2362 = vunpack.c.l.b16 %v307
    %v2363 = vunpack.c.l.b16 %v308
    %v2364 = vunpack.c.l.b16 %v309
    %v2365 = vunpack.c.l.b16 %v310
    %v2366 = vunpack.c.l.b16 %v311
    %v2367 = vunpack.c.l.b16 %v312
    %v2368 = vunpack.c.l.b16 %v313
    %v2369 = vunpack.c.l.b16 %v314
    %v2370 = vunpack.c.l.b16 %v315
    %v2371 = vunpack.c.l.b16 %v316
    %v2372 = vunpack.c.l.b16 %v317
    %v2373 = vunpack.c.l.b16 %v318
    %v2374 = vunpack.c.l.b16 %v319
    %v2375 = vunpack.c.l.b16 %v320
    %v2376 = vunpack.c.l.b16 %v321
    %v2377 = vunpack.c.l.b16 %v322
    %v2378 = vunpack.c.l.b16 %v323
    %v2379 = vunpack.c.l.b16 %v324
    %v2380 = vunpack.c.l.b16 %v325
    %v2381 = vunpack.c.l.b16 %v326
    %v2382 = vunpack.c.l.b16 %v327
    %v2383 = vunpack.c.l.b16 %v328
    %v2384 = vunpack.c.l.b16 %v329
    %v2385 = vunpack.c.l.b16 %v330
    %v2386 = vunpack.c.l.b16 %v331
    %v2387 = vunpack.c.l.b16 %v332
    %v2388 = vunpack.c.l.b16 %v333
    %v2389 = vunpack.c.l.b16 %v334
    %v2390 = vunpack.c.l.b16 %v335
    %v2391 = vunpack.c.l.b16 %v336
    %v2392 = vunpack.c.l.b16 %v337
    %v2393 = vunpack.c.l.b16 %v338
    %v2394 = vunpack.c.l.b16 %v339
    %v2395 = vunpack.c.l.b16 %v340
    %v2396 = vunpack.c.l.b16 %v341
    %v2397 = vunpack.c.l.b16 %v342
    %v2398 = vunpack.c.l.b16 %v343
    %v2399 = vunpack.c.l.b16 %v344
    %v2400 = vunpack.c.l.b16 %v345
    %v2401 = vunpack.c.l.b16 %v346
    %v2402 = vunpack.c.l.b16 %v347
    %v2403 = vunpack.c.l.b16 %v348
    %v2404 = vunpack.c.l.b16 %v349
    %v2405 = vunpack.c.l.b16 %v350
    %v2406 = vunpack.c.l.b16 %v351
    %v2407 = vunpack.c.l.b16 %v352
    %v2408 = vunpack.c.l.b16 %v353
    %v2409 = vunpack.c.l.b16 %v354
    %v2410 = vunpack.c.l.b16 %v355
    %v2411 = vunpack.c.l.b16 %v356
    %v2412 = vunpack.c.l.b16 %v357
    %v2413 = vunpack.c.l.b16 %v358
    %v2414 = vunpack.c.l.b16 %v359
    %v2415 = vunpack.c.l.b16 %v360
    %v2416 = vunpack.c.l.b16 %v361
    %v2417 = vunpack.c.l.b16 %v362
    %v2418 = vunpack.c.l.b16 %v363
    %v2419 = vunpack.c.l.b16 %v364
    %v2420 = vunpack.c.l.b16 %v365
    %v2421 = vunpack.c.l.b16 %v366
    %v2422 = vunpack.c.l.b16 %v367
    %v2423 = vunpack.c.l.b16 %v368
    %v2424 = vunpack.c.l.b16 %v369
    %v2425 = vunpack.c.l.b16 %v370
    %v2426 = vunpack.c.l.b16 %v371
    %v2427 = vunpack.c.l.b16 %v372
    %v2428 = vunpack.c.l.b16 %v373
    %v2429 = vunpack.c.l.b16 %v374
    %v2430 = vunpack.c.l.b16 %v375
    %v2431 = vunpack.c.l.b16 %v376
    %v2432 = vunpack.c.l.b16 %v377
    %v2433 = vunpack.c.l.b16 %v378
    %v2434 = vunpack.c.l.b16 %v379
    %v2435 = vunpack.c.l.b16 %v380
    %v2436 = vunpack.c.l.b16 %v381
    %v2437 = vunpack.c.l.b16 %v382
    %v2438 = vunpack.c.l.b16 %v383
    %v2439 = vunpack.c.l.b16 %v384
    %v2440 = vunpack.c.l.b16 %v385
    %v2441 = vunpack.c.l.b16 %v386
    %v2442 = vunpack.c.l.b16 %v387
    %v2443 = vunpack.c.l.b16 %v388
    %v2444 = vunpack.c.l.b16 %v389
    %v2445 = vunpack.c.l.b16 %v390
    %v2446 = vunpack.c.l.b16 %v391
    %v2447 = vunpack.c.l.b16 %v392
    %v2448 = vunpack.c.l.b16 %v393
    %v2449 = vunpack.c.l.b16 %v394
    %v2450 = vunpack.c.l.b16 %v395
    %v2451 = vunpack.c.l.b16 %v396
    %v2452 = vunpack.c.l.b16 %v397
    %v2453 = vunpack.c.l.b16 %v398
    %v2454 = vunpack.c.l.b16 %v399
    %v2455 = vunpack.c.l.b16 %v400
    %v2456 = vunpack.c.l.b16 %v401
    %v2457 = vunpack.c.l.b16 %v402
    %v2458 = vunpack.c.l.b16 %v403
    %v2459 = vunpack.c.l.b16 %v404
    %v2460 = vunpack.c.l.b16 %v405
    %v2461 = vunpack.c.l.b16 %v406
    %v2462 = vunpack.c.l.b16 %v407
    %v2463 = vunpack.c.l.b16 %v408
    %v2464 = vunpack.c.l.b16 %v409
    %v2465 = vunpack.c.l.b16 %v410
    %v2466 = vunpack.c.l.b16 %v411
    %v2467 = vunpack.c.l.b16 %v412
    %v2468 = vunpack.c.l.b16 %v413
    %v2469 = vunpack.c.l.b16 %v414
    %v2470 = vunpack.c.l.b16 %v415
    %v2471 = vunpack.c.l.b16 %v416
    %v2472 = vunpack.c.l.b16 %v417
    %v2473 = vunpack.c.l.b16 %v418
    %v2474 = vunpack.c.l.b16 %v419
    %v2475 = vunpack.c.l.b16 %v420
    %v2476 = vunpack.c.l.b16 %v421
    %v2477 = vunpack.c.l.b16 %v422
    %v2478 = vunpack.c.l.b16 %v423
    %v2479 = vunpack.c.l.b16 %v424
    %v2480 = vunpack.c.l.b16 %v425
    %v2481 = vunpack.c.l.b16 %v426
    %v2482 = vunpack.c.l.b16 %v427
    %v2483 = vunpack.c.l.b16 %v428
    %v2484 = vunpack.c.l.b16 %v429
    %v2485 = vunpack.c.l.b16 %v430
    %v2486 = vunpack.c.l.b16 %v431
    %v2487 = vunpack.c.l.b16 %v432
    %v2488 = vunpack.c.l.b16 %v433
    %v2489 = vunpack.c.l.b16 %v434
    %v2490 = vunpack.c.l.b16 %v435
    %v2491 = vunpack.c.l.b16 %v436
    %v2492 = vunpack.c.l.b16 %v437
    %v2493 = vunpack.c.l.b16 %v438
    %v2494 = vunpack.c.l.b16 %v439
    %v2495 = vunpack.c.l.b16 %v440
    %v2496 = vunpack.c.l.b16 %v441
    %v2497 = vunpack.c.l.b16 %v442
    %v2498 = vunpack.c.l.b16 %v443
    %v2499 = vunpack.c.l.b16 %v444
    %v2500 = vunpack.c.l.b16 %v445
    %v2501 = vunpack.c.l.b16 %v446
    %v2502 = vunpack.c.l.b16 %v447
    %v2503 = vunpack.c.l.b16 %v448
    %v2504 = vunpack.c.l.b16 %v449
    %v2505 = vunpack.c.l.b16 %v450
    %v2506 = vunpack.c.l.b16 %v451
    %v2507 = vunpack.c.l.b16 %v452
    %v2508 = vunpack.c.l.b16 %v453
    %v2509 = vunpack.c.l.b16 %v454
    %v2510 = vunpack.c.l.b16 %v455
    %v2511 = vunpack.c.l.b16 %v456
    %v2512 = vunpack.c.l.b16 %v457
    %v2513 = vunpack.c.l.b16 %v458
    %v2514 = vunpack.c.l.b16 %v459
    %v2515 = vunpack.c.l.b16 %v460
    %v2516 = vunpack.c.l.b16 %v461
    %v2517 = vunpack.c.l.b16 %v462
    %v2518 = vunpack.c.l.b16 %v463
    %v2519 = vunpack.c.l.b16 %v464
    %v2520 = vunpack.c.l.b16 %v465
    %v2521 = vunpack.c.l.b16 %v466
    %v2522 = vunpack.c.l.b16 %v467
    %v2523 = vunpack.c.l.b16 %v468
    %v2524 = vunpack.c.l.b16 %v469
    %v2525 = vunpack.c.l.b16 %v470
    %v2526 = vunpack.c.l.b16 %v471
    %v2527 = vunpack.c.l.b16 %v472
    %v2528 = vunpack.c.l.b16 %v473
    %v2529 = vunpack.c.l.b16 %v474
    %v2530 = vunpack.c.l.b16 %v475
    %v2531 = vunpack.c.l.b16 %v476
    %v2532 = vunpack.c.l.b16 %v477
    %v2533 = vunpack.c.l.b16 %v478
    %v2534 = vunpack.c.l.b16 %v479
    %v2535 = vunpack.c.l.b16 %v480
    %v2536 = vunpack.c.l.b16 %v481
    %v2537 = vunpack.c.l.b16 %v482
    %v2538 = vunpack.c.l.b16 %v483
    %v2539 = vunpack.c.l.b16 %v484
    %v2540 = vunpack.c.l.b16 %v485
    %v2541 = vunpack.c.l.b16 %v486
    %v2542 = vunpack.c.l.b16 %v487
    %v2543 = vunpack.c.l.b16 %v488
    %v2544 = vunpack.c.l.b16 %v489
    %v2545 = vunpack.c.l.b16 %v490
    %v2546 = vunpack.c.l.b16 %v491
    %v2547 = vunpack.c.l.b16 %v492
    %v2548 = vunpack.c.l.b16 %v493
    %v2549 = vunpack.c.l.b16 %v494
    %v2550 = vunpack.c.l.b16 %v495
    %v2551 = vunpack.c.l.b16 %v496
    %v2552 = vunpack.c.l.b16 %v497
    %v2553 = vunpack.c.l.b16 %v498
    %v2554 = vunpack.c.l.b16 %v499
    %v2555 = vunpack.c.l.b16 %v500
    %v2556 = vunpack.c.l.b16 %v501
    %v2557 = vunpack.c.l.b16 %v502
    %v2558 = vunpack.c.l.b16 %v503
    %v2559 = vunpack.c.l.b16 %v504
    %v2560 = vunpack.c.l.b16 %v505
    %v2561 = vunpack.c.l.b16 %v506
    %v2562 = vunpack.c.l.b16 %v507
    %v2563 = vunpack.c.l.b16 %v508
    %v2564 = vunpack.c.l.b16 %v509
    %v2565 = vunpack.c.l.b16 %v510
    %v2566 = vunpack.c.l.b16 %v511
    %v2567 = vunpack.c.l.b16 %v512
    %v2568 = vunpack.c.l.b16 %v513
    %v2569 = vunpack.c.l.b16 %v514
    %v2570 = vunpack.c.l.b16 %v515
    %v2571 = vunpack.c.l.b16 %v516
    %v2572 = vunpack.c.l.b16 %v517
    %v2573 = vunpack.c.l.b16 %v518
    %v2574 = vunpack.c.l.b16 %v519
    %v2575 = vunpack.c.l.b16 %v520
    %v2576 = vunpack.c.l.b16 %v521
    %v2577 = vunpack.c.l.b16 %v522
    %v2578 = vunpack.c.l.b16 %v523
    %v2579 = vunpack.c.l.b16 %v524
    %v2580 = vunpack.c.l.b16 %v525
    %v2581 = vunpack.c.l.b16 %v526
    %v2582 = vunpack.c.l.b16 %v527
    %v2583 = vunpack.c.l.b16 %v528
    %v2584 = vunpack.c.l.b16 %v529
    %v2585 = vunpack.c.l.b16 %v530
    %v2586 = vunpack.c.l.b16 %v531
    %v2587 = vunpack.c.l.b16 %v532
    %v2588 = vunpack.c.l.b16 %v533
    %v2589 = vunpack.c.l.b16 %v534
    %v2590 = vunpack.c.l.b16 %v535
    %v2591 = vunpack.c.l.b16 %v536
    %v2592 = vunpack.c.l.b16 %v537
    %v2593 = vunpack.c.l.b16 %v538
    %v2594 = vunpack.c.l.b16 %v539
    %v2595 = vunpack.c.l.b16 %v540
    %v2596 = vunpack.c.l.b16 %v541
    %v2597 = vunpack.c.l.b16 %v542
    %v2598 = vunpack.c.l.b16 %v543
    %v2599 = vunpack.c.l.b16 %v544
    %v2600 = vunpack.c.l.b16 %v545
    %v2601 = vunpack.c.l.b16 %v546
    %v2602 = vunpack.c.l.b16 %v547
    %v2603 = vunpack.c.l.b16 %v548
    %v2604 = vunpack.c.l.b16 %v549
    %v2605 = vunpack.c.l.b16 %v550
    %v2606 = vunpack.c.l.b16 %v551
    %v2607 = vunpack.c.l.b16 %v552
    %v2608 = vunpack.c.l.b16 %v553
    %v2609 = vunpack.c.l.b16 %v554
    %v2610 = vunpack.c.l.b16 %v555
    %v2611 = vunpack.c.l.b16 %v556
    %v2612 = vunpack.c.l.b16 %v557
    %v2613 = vunpack.c.l.b16 %v558
    %v2614 = vunpack.c.l.b16 %v559
    %v2615 = vunpack.c.l.b16 %v560
    %v2616 = vunpack.c.l.b16 %v561
    %v2617 = vunpack.c.l.b16 %v562
    %v2618 = vunpack.c.l.b16 %v563
    %v2619 = vunpack.c.l.b16 %v564
    %v2620 = vunpack.c.l.b16 %v565
    %v2621 = vunpack.c.l.b16 %v566
    %v2622 = vunpack.c.l.b16 %v567
    %v2623 = vunpack.c.l.b16 %v568
    %v2624 = vunpack.c.l.b16 %v569
    %v2625 = vunpack.c.l.b16 %v570
    %v2626 = vunpack.c.l.b16 %v571
    %v2627 = vunpack.c.l.b16 %v572
    %v2628 = vunpack.c.l.b16 %v573
    %v2629 = vunpack.c.l.b16 %v574
    %v2630 = vunpack.c.l.b16 %v575
    %v2631 = vunpack.c.l.b16 %v576
    %v2632 = vunpack.c.l.b16 %v577
    %v2633 = vunpack.c.l.b16 %v578
    %v2634 = vunpack.c.l.b16 %v579
    %v2635 = vunpack.c.l.b16 %v580
    %v2636 = vunpack.c.l.b16 %v581
    %v2637 = vunpack.c.l.b16 %v582
    %v2638 = vunpack.c.l.b16 %v583
    %v2639 = vunpack.c.l.b16 %v584
    %v2640 = vunpack.c.l.b16 %v585
    %v2641 = vunpack.c.l.b16 %v586
    %v2642 = vunpack.c.l.b16 %v587
    %v2643 = vunpack.c.l.b16 %v588
    %v2644 = vunpack.c.l.b16 %v589
    %v2645 = vunpack.c.l.b16 %v590
    %v2646 = vunpack.c.l.b16 %v591
    %v2647 = vunpack.c.l.b16 %v592
    %v2648 = vunpack.c.l.b16 %v593
    %v2649 = vunpack.c.l.b16 %v594
    %v2650 = vunpack.c.l.b16 %v595
    %v2651 = vunpack.c.l.b16 %v596
    %v2652 = vunpack.c.l.b16 %v597
    %v2653 = vunpack.c.l.b16 %v598
    %v2654 = vunpack.c.l.b16 %v599
    %v2655 = vunpack.c.l.b16 %v600
    %v2656 = vunpack.c.l.b16 %v601
    %v2657 = vunpack.c.l.b16 %v602
    %v2658 = vunpack.c.l.b16 %v603
    %v2659 = vunpack.c.l.b16 %v604
    %v2660 = vunpack.c.l.b16 %v605
    %v2661 = vunpack.c.l.b16 %v606
    %v2662 = vunpack.c.l.b16 %v607
    %v2663 = vunpack.c.l.b16 %v608
    %v2664 = vunpack.c.l.b16 %v609
    %v2665 = vunpack.c.l.b16 %v610
    %v2666 = vunpack.c.l.b16 %v611
    %v2667 = vunpack.c.l.b16 %v612
    %v2668 = vunpack.c.l.b16 %v613
    %v2669 = vunpack.c.l.b16 %v614
    %v2670 = vunpack.c.l.b16 %v615
    %v2671 = vunpack.c.l.b16 %v616
    %v2672 = vunpack.c.l.b16 %v617
    %v2673 = vunpack.c.l.b16 %v618
    %v2674 = vunpack.c.l.b16 %v619
    %v2675 = vunpack.c.l.b16 %v620
    %v2676 = vunpack.c.l.b16 %v621
    %v2677 = vunpack.c.l.b16 %v622
    %v2678 = vunpack.c.l.b16 %v623
    %v2679 = vunpack.c.l.b16 %v624
    %v2680 = vunpack.c.l.b16 %v625
    %v2681 = vunpack.c.l.b16 %v626
    %v2682 = vunpack.c.l.b16 %v627
    %v2683 = vunpack.c.l.b16 %v628
    %v2684 = vunpack.c.l.b16 %v629
    %v2685 = vunpack.c.l.b16 %v630
    %v2686 = vunpack.c.l.b16 %v631
    %v2687 = vunpack.c.l.b16 %v632
    %v2688 = vunpack.c.l.b16 %v633
    %v2689 = vunpack.c.l.b16 %v634
    %v2690 = vunpack.c.l.b16 %v635
    %v2691 = vunpack.c.l.b16 %v636
    %v2692 = vunpack.c.l.b16 %v637
    %v2693 = vunpack.c.l.b16 %v638
    %v2694 = vunpack.c.l.b16 %v639
    %v2695 = vunpack.c.l.b16 %v640
    %v2696 = vunpack.c.l.b16 %v641
    %v2697 = vunpack.c.l.b16 %v642
    %v2698 = vunpack.c.l.b16 %v643
    %v2699 = vunpack.c.l.b16 %v644
    %v2700 = vunpack.c.l.b16 %v645
    %v2701 = vunpack.c.l.b16 %v646
    %v2702 = vunpack.c.l.b16 %v647
    %v2703 = vunpack.c.l.b16 %v648
    %v2704 = vunpack.c.l.b16 %v649
    %v2705 = vunpack.c.l.b16 %v650
    %v2706 = vunpack.c.l.b16 %v651
    %v2707 = vunpack.c.l.b16 %v652
    %v2708 = vunpack.c.l.b16 %v653
    %v2709 = vunpack.c.l.b16 %v654
    %v2710 = vunpack.c.l.b16 %v655
    %v2711 = vunpack.c.l.b16 %v656
    %v2712 = vunpack.c.l.b16 %v657
    %v2713 = vunpack.c.l.b16 %v658
    %v2714 = vunpack.c.l.b16 %v659
    %v2715 = vunpack.c.l.b16 %v660
    %v2716 = vunpack.c.l.b16 %v661
    %v2717 = vunpack.c.l.b16 %v662
    %v2718 = vunpack.c.l.b16 %v663
    %v2719 = vunpack.c.l.b16 %v664
    %v2720 = vunpack.c.l.b16 %v665
    %v2721 = vunpack.c.l.b16 %v666
    %v2722 = vunpack.c.l.b16 %v667
    %v2723 = vunpack.c.l.b16 %v668
    %v2724 = vunpack.c.l.b16 %v669
    %v2725 = vunpack.c.l.b16 %v670
    %v2726 = vunpack.c.l.b16 %v671
    %v2727 = vunpack.c.l.b16 %v672
    %v2728 = vunpack.c.l.b16 %v673
    %v2729 = vunpack.c.l.b16 %v674
    %v2730 = vunpack.c.l.b16 %v675
    %v2731 = vunpack.c.l.b16 %v676
    %v2732 = vunpack.c.l.b16 %v677
    %v2733 = vunpack.c.l.b16 %v678
    %v2734 = vunpack.c.l.b16 %v679
    %v2735 = vunpack.c.l.b16 %v680
    %v2736 = vunpack.c.l.b16 %v681
    %v2737 = vunpack.c.l.b16 %v682
    %v2738 = vunpack.c.l.b16 %v683
    %v2739 = vunpack.c.l.b16 %v684
    %v2740 = vunpack.c.l.b16 %v685
    %v2741 = vunpack.c.l.b16 %v686
    %v2742 = vunpack.c.l.b16 %v687
    %v2743 = vunpack.c.l.b16 %v688
    %v2744 = vunpack.c.l.b16 %v689
    %v2745 = vunpack.c.l.b16 %v690
    %v2746 = vunpack.c.l.b16 %v691
    %v2747 = vunpack.c.l.b16 %v692
    %v2748 = vunpack.c.l.b16 %v693
    %v2749 = vunpack.c.l.b16 %v694
    %v2750 = vunpack.c.l.b16 %v695
    %v2751 = vunpack.c.l.b16 %v696
    %v2752 = vunpack.c.l.b16 %v697
    %v2753 = vunpack.c.l.b16 %v698
    %v2754 = vunpack.c.l.b16 %v699
    %v2755 = vunpack.c.l.b16 %v700
    %v2756 = vunpack.c.l.b16 %v701
    %v2757 = vunpack.c.l.b16 %v702
    %v2758 = vunpack.c.l.b16 %v703
    %v2759 = vunpack.c.l.b16 %v704
    %v2760 = vunpack.c.l.b16 %v705
    %v2761 = vunpack.c.l.b16 %v706
    %v2762 = vunpack.c.l.b16 %v707
    %v2763 = vunpack.c.l.b16 %v708
    %v2764 = vunpack.c.l.b16 %v709
    %v2765 = vunpack.c.l.b16 %v710
    %v2766 = vunpack.c.l.b16 %v711
    %v2767 = vunpack.c.l.b16 %v712
    %v2768 = vunpack.c.l.b16 %v713
    %v2769 = vunpack.c.l.b16 %v714
    %v2770 = vunpack.c.l.b16 %v715
    %v2771 = vunpack.c.l.b16 %v716
    %v2772 = vunpack.c.l.b16 %v717
    %v2773 = vunpack.c.l.b16 %v718
    %v2774 = vunpack.c.l.b16 %v719
    %v2775 = vunpack.c.l.b16 %v720
    %v2776 = vunpack.c.l.b16 %v721
    %v2777 = vunpack.c.l.b16 %v722
    %v2778 = vunpack.c.l.b16 %v723
    %v2779 = vunpack.c.l.b16 %v724
    %v2780 = vunpack.c.l.b16 %v725
    %v2781 = vunpack.c.l.b16 %v726
    %v2782 = vunpack.c.l.b16 %v727
    %v2783 = vunpack.c.l.b16 %v728
    %v2784 = vunpack.c.l.b16 %v729
    %v2785 = vunpack.c.l.b16 %v730
    %v2786 = vunpack.c.l.b16 %v731
    %v2787 = vunpack.c.l.b16 %v732
    %v2788 = vunpack.c.l.b16 %v733
    %v2789 = vunpack.c.l.b16 %v734
    %v2790 = vunpack.c.l.b16 %v735
    %v2791 = vunpack.c.l.b16 %v736
    %v2792 = vunpack.c.l.b16 %v737
    %v2793 = vunpack.c.l.b16 %v738
    %v2794 = vunpack.c.l.b16 %v739
    %v2795 = vunpack.c.l.b16 %v740
    %v2796 = vunpack.c.l.b16 %v741
    %v2797 = vunpack.c.l.b16 %v742
    %v2798 = vunpack.c.l.b16 %v743
    %v2799 = vunpack.c.l.b16 %v744
    %v2800 = vunpack.c.l.b16 %v745
    %v2801 = vunpack.c.l.b16 %v746
    %v2802 = vunpack.c.l.b16 %v747
    %v2803 = vunpack.c.l.b16 %v748
    %v2804 = vunpack.c.l.b16 %v749
    %v2805 = vunpack.c.l.b16 %v750
    %v2806 = vunpack.c.l.b16 %v751
    %v2807 = vunpack.c.l.b16 %v752
    %v2808 = vunpack.c.l.b16 %v753
    %v2809 = vunpack.c.l.b16 %v754
    %v2810 = vunpack.c.l.b16 %v755
    %v2811 = vunpack.c.l.b16 %v756
    %v2812 = vunpack.c.l.b16 %v757
    %v2813 = vunpack.c.l.b16 %v758
    %v2814 = vunpack.c.l.b16 %v759
    %v2815 = vunpack.c.l.b16 %v760
    %v2816 = vunpack.c.l.b16 %v761
    %v2817 = vunpack.c.l.b16 %v762
    %v2818 = vunpack.c.l.b16 %v763
    %v2819 = vunpack.c.l.b16 %v764
    %v2820 = vunpack.c.l.b16 %v765
    %v2821 = vunpack.c.l.b16 %v766
    %v2822 = vunpack.c.l.b16 %v767
    %v2823 = vunpack.c.l.b16 %v768
    %v2824 = vunpack.c.l.b16 %v769
    %v2825 = vunpack.c.l.b16 %v770
    %v2826 = vunpack.c.l.b16 %v771
    %v2827 = vunpack.c.l.b16 %v772
    %v2828 = vunpack.c.l.b16 %v773
    %v2829 = vunpack.c.l.b16 %v774
    %v2830 = vunpack.c.l.b16 %v775
    %v2831 = vunpack.c.l.b16 %v776
    %v2832 = vunpack.c.l.b16 %v777
    %v2833 = vunpack.c.l.b16 %v778
    %v2834 = vunpack.c.l.b16 %v779
    %v2835 = vunpack.c.l.b16 %v780
    %v2836 = vunpack.c.l.b16 %v781
    %v2837 = vunpack.c.l.b16 %v782
    %v2838 = vunpack.c.l.b16 %v783
    %v2839 = vunpack.c.l.b16 %v784
    %v2840 = vunpack.c.l.b16 %v785
    %v2841 = vunpack.c.l.b16 %v786
    %v2842 = vunpack.c.l.b16 %v787
    %v2843 = vunpack.c.l.b16 %v788
    %v2844 = vunpack.c.l.b16 %v789
    %v2845 = vunpack.c.l.b16 %v790
    %v2846 = vunpack.c.l.b16 %v791
    %v2847 = vunpack.c.l.b16 %v792
    %v2848 = vunpack.c.l.b16 %v793
    %v2849 = vunpack.c.l.b16 %v794
    %v2850 = vunpack.c.l.b16 %v795
    %v2851 = vunpack.c.l.b16 %v796
    %v2852 = vunpack.c.l.b16 %v797
    %v2853 = vunpack.c.l.b16 %v798
    %v2854 = vunpack.c.l.b16 %v799
    %v2855 = vunpack.c.l.b16 %v800
    %v2856 = vunpack.c.l.b16 %v801
    %v2857 = vunpack.c.l.b16 %v802
    %v2858 = vunpack.c.l.b16 %v803
    %v2859 = vunpack.c.l.b16 %v804
    %v2860 = vunpack.c.l.b16 %v805
    %v2861 = vunpack.c.l.b16 %v806
    %v2862 = vunpack.c.l.b16 %v807
    %v2863 = vunpack.c.l.b16 %v808
    %v2864 = vunpack.c.l.b16 %v809
    %v2865 = vunpack.c.l.b16 %v810
    %v2866 = vunpack.c.l.b16 %v811
    %v2867 = vunpack.c.l.b16 %v812
    %v2868 = vunpack.c.l.b16 %v813
    %v2869 = vunpack.c.l.b16 %v814
    %v2870 = vunpack.c.l.b16 %v815
    %v2871 = vunpack.c.l.b16 %v816
    %v2872 = vunpack.c.l.b16 %v817
    %v2873 = vunpack.c.l.b16 %v818
    %v2874 = vunpack.c.l.b16 %v819
    %v2875 = vunpack.c.l.b16 %v820
    %v2876 = vunpack.c.l.b16 %v821
    %v2877 = vunpack.c.l.b16 %v822
    %v2878 = vunpack.c.l.b16 %v823
    %v2879 = vunpack.c.l.b16 %v824
    %v2880 = vunpack.c.l.b16 %v825
    %v2881 = vunpack.c.l.b16 %v826
    %v2882 = vunpack.c.l.b16 %v827
    %v2883 = vunpack.c.l.b16 %v828
    %v2884 = vunpack.c.l.b16 %v829
    %v2885 = vunpack.c.l.b16 %v830
    %v2886 = vunpack.c.l.b16 %v831
    %v2887 = vunpack.c.l.b16 %v832
    %v2888 = vunpack.c.l.b16 %v833
    %v2889 = vunpack.c.l.b16 %v834
    %v2890 = vunpack.c.l.b16 %v835
    %v2891 = vunpack.c.l.b16 %v836
    %v2892 = vunpack.c.l.b16 %v837
    %v2893 = vunpack.c.l.b16 %v838
    %v2894 = vunpack.c.l.b16 %v839
    %v2895 = vunpack.c.l.b16 %v840
    %v2896 = vunpack.c.l.b16 %v841
    %v2897 = vunpack.c.l.b16 %v842
    %v2898 = vunpack.c.l.b16 %v843
    %v2899 = vunpack.c.l.b16 %v844
    %v2900 = vunpack.c.l.b16 %v845
    %v2901 = vunpack.c.l.b16 %v846
    %v2902 = vunpack.c.l.b16 %v847
    %v2903 = vunpack.c.l.b16 %v848
    %v2904 = vunpack.c.l.b16 %v849
    %v2905 = vunpack.c.l.b16 %v850
    %v2906 = vunpack.c.l.b16 %v851
    %v2907 = vunpack.c.l.b16 %v852
    %v2908 = vunpack.c.l.b16 %v853
    %v2909 = vunpack.c.l.b16 %v854
    %v2910 = vunpack.c.l.b16 %v855
    %v2911 = vunpack.c.l.b16 %v856
    %v2912 = vunpack.c.l.b16 %v857
    %v2913 = vunpack.c.l.b16 %v858
    %v2914 = vunpack.c.l.b16 %v859
    %v2915 = vunpack.c.l.b16 %v860
    %v2916 = vunpack.c.l.b16 %v861
    %v2917 = vunpack.c.l.b16 %v862
    %v2918 = vunpack.c.l.b16 %v863
    %v2919 = vunpack.c.l.b16 %v864
    %v2920 = vunpack.c.l.b16 %v865
    %v2921 = vunpack.c.l.b16 %v866
    %v2922 = vunpack.c.l.b16 %v867
    %v2923 = vunpack.c.l.b16 %v868
    %v2924 = vunpack.c.l.b16 %v869
    %v2925 = vunpack.c.l.b16 %v870
    %v2926 = vunpack.c.l.b16 %v871
    %v2927 = vunpack.c.l.b16 %v872
    %v2928 = vunpack.c.l.b16 %v873
    %v2929 = vunpack.c.l.b16 %v874
    %v2930 = vunpack.c.l.b16 %v875
    %v2931 = vunpack.c.l.b16 %v876
    %v2932 = vunpack.c.l.b16 %v877
    %v2933 = vunpack.c.l.b16 %v878
    %v2934 = vunpack.c.l.b16 %v879
    %v2935 = vunpack.c.l.b16 %v880
    %v2936 = vunpack.c.l.b16 %v881
    %v2937 = vunpack.c.l.b16 %v882
    %v2938 = vunpack.c.l.b16 %v883
    %v2939 = vunpack.c.l.b16 %v884
    %v2940 = vunpack.c.l.b16 %v885
    %v2941 = vunpack.c.l.b16 %v886
    %v2942 = vunpack.c.l.b16 %v887
    %v2943 = vunpack.c.l.b16 %v888
    %v2944 = vunpack.c.l.b16 %v889
    %v2945 = vunpack.c.l.b16 %v890
    %v2946 = vunpack.c.l.b16 %v891
    %v2947 = vunpack.c.l.b16 %v892
    %v2948 = vunpack.c.l.b16 %v893
    %v2949 = vunpack.c.l.b16 %v894
    %v2950 = vunpack.c.l.b16 %v895
    %v2951 = vunpack.c.l.b16 %v896
    %v2952 = vunpack.c.l.b16 %v897
    %v2953 = vunpack.c.l.b16 %v898
    %v2954 = vunpack.c.l.b16 %v899
    %v2955 = vunpack.c.l.b16 %v900
    %v2956 = vunpack.c.l.b16 %v901
    %v2957 = vunpack.c.l.b16 %v902
    %v2958 = vunpack.c.l.b16 %v903
    %v2959 = vunpack.c.l.b16 %v904
    %v2960 = vunpack.c.l.b16 %v905
    %v2961 = vunpack.c.l.b16 %v906
    %v2962 = vunpack.c.l.b16 %v907
    %v2963 = vunpack.c.l.b16 %v908
    %v2964 = vunpack.c.l.b16 %v909
    %v2965 = vunpack.c.l.b16 %v910
    %v2966 = vunpack.c.l.b16 %v911
    %v2967 = vunpack.c.l.b16 %v912
    %v2968 = vunpack.c.l.b16 %v913
    %v2969 = vunpack.c.l.b16 %v914
    %v2970 = vunpack.c.l.b16 %v915
    %v2971 = vunpack.c.l.b16 %v916
    %v2972 = vunpack.c.l.b16 %v917
    %v2973 = vunpack.c.l.b16 %v918
    %v2974 = vunpack.c.l.b16 %v919
    %v2975 = vunpack.c.l.b16 %v920
    %v2976 = vunpack.c.l.b16 %v921
    %v2977 = vunpack.c.l.b16 %v922
    %v2978 = vunpack.c.l.b16 %v923
    %v2979 = vunpack.c.l.b16 %v924
    %v2980 = vunpack.c.l.b16 %v925
    %v2981 = vunpack.c.l.b16 %v926
    %v2982 = vunpack.c.l.b16 %v927
    %v2983 = vunpack.c.l.b16 %v928
    %v2984 = vunpack.c.l.b16 %v929
    %v2985 = vunpack.c.l.b16 %v930
    %v2986 = vunpack.c.l.b16 %v931
    %v2987 = vunpack.c.l.b16 %v932
    %v2988 = vunpack.c.l.b16 %v933
    %v2989 = vunpack.c.l.b16 %v934
    %v2990 = vunpack.c.l.b16 %v935
    %v2991 = vunpack.c.l.b16 %v936
    %v2992 = vunpack.c.l.b16 %v937
    %v2993 = vunpack.c.l.b16 %v938
    %v2994 = vunpack.c.l.b16 %v939
    %v2995 = vunpack.c.l.b16 %v940
    %v2996 = vunpack.c.l.b16 %v941
    %v2997 = vunpack.c.l.b16 %v942
    %v2998 = vunpack.c.l.b16 %v943
    %v2999 = vunpack.c.l.b16 %v944
    %v3000 = vunpack.c.l.b16 %v945
    %v3001 = vunpack.c.l.b16 %v946
    %v3002 = vunpack.c.l.b16 %v947
    %v3003 = vunpack.c.l.b16 %v948
    %v3004 = vunpack.c.l.b16 %v949
    %v3005 = vunpack.c.l.b16 %v950
    %v3006 = vunpack.c.l.b16 %v951
    %v3007 = vunpack.c.l.b16 %v952
    %v3008 = vunpack.c.l.b16 %v953
    %v3009 = vunpack.c.l.b16 %v954
    %v3010 = vunpack.c.l.b16 %v955
    %v3011 = vunpack.c.l.b16 %v956
    %v3012 = vunpack.c.l.b16 %v957
    %v3013 = vunpack.c.l.b16 %v958
    %v3014 = vunpack.c.l.b16 %v959
    %v3015 = vunpack.c.l.b16 %v960
    %v3016 = vunpack.c.l.b16 %v961
    %v3017 = vunpack.c.l.b16 %v962
    %v3018 = vunpack.c.l.b16 %v963
    %v3019 = vunpack.c.l.b16 %v964
    %v3020 = vunpack.c.l.b16 %v965
    %v3021 = vunpack.c.l.b16 %v966
    %v3022 = vunpack.c.l.b16 %v967
    %v3023 = vunpack.c.l.b16 %v968
    %v3024 = vunpack.c.l.b16 %v969
    %v3025 = vunpack.c.l.b16 %v970
    %v3026 = vunpack.c.l.b16 %v971
    %v3027 = vunpack.c.l.b16 %v972
    %v3028 = vunpack.c.l.b16 %v973
    %v3029 = vunpack.c.l.b16 %v974
    %v3030 = vunpack.c.l.b16 %v975
    %v3031 = vunpack.c.l.b16 %v976
    %v3032 = vunpack.c.l.b16 %v977
    %v3033 = vunpack.c.l.b16 %v978
    %v3034 = vunpack.c.l.b16 %v979
    %v3035 = vunpack.c.l.b16 %v980
    %v3036 = vunpack.c.l.b16 %v981
    %v3037 = vunpack.c.l.b16 %v982
    %v3038 = vunpack.c.l.b16 %v983
    %v3039 = vunpack.c.l.b16 %v984
    %v3040 = vunpack.c.l.b16 %v985
    %v3041 = vunpack.c.l.b16 %v986
    %v3042 = vunpack.c.l.b16 %v987
    %v3043 = vunpack.c.l.b16 %v988
    %v3044 = vunpack.c.l.b16 %v989
    %v3045 = vunpack.c.l.b16 %v990
    %v3046 = vunpack.c.l.b16 %v991
    %v3047 = vunpack.c.l.b16 %v992
    %v3048 = vunpack.c.l.b16 %v993
    %v3049 = vunpack.c.l.b16 %v994
    %v3050 = vunpack.c.l.b16 %v995
    %v3051 = vunpack.c.l.b16 %v996
    %v3052 = vunpack.c.l.b16 %v997
    %v3053 = vunpack.c.l.b16 %v998
    %v3054 = vunpack.c.l.b16 %v999
    %v3055 = vunpack.c.l.b16 %v1000
    %v3056 = vunpack.c.l.b16 %v1001
    %v3057 = vunpack.c.l.b16 %v1002
    %v3058 = vunpack.c.l.b16 %v1003
    %v3059 = vunpack.c.l.b16 %v1004
    %v3060 = vunpack.c.l.b16 %v1005
    %v3061 = vunpack.c.l.b16 %v1006
    %v3062 = vunpack.c.l.b16 %v1007
    %v3063 = vunpack.c.l.b16 %v1008
    %v3064 = vunpack.c.l.b16 %v1009
    %v3065 = vunpack.c.l.b16 %v1010
    %v3066 = vunpack.c.l.b16 %v1011
    %v3067 = vunpack.c.l.b16 %v1012
    %v3068 = vunpack.c.l.b16 %v1013
    %v3069 = vunpack.c.l.b16 %v1014
    %v3070 = vunpack.c.l.b16 %v1015
    %v3071 = vunpack.c.l.b16 %v1016
    %v3072 = vunpack.c.l.b16 %v1017
    %v3073 = vunpack.c.l.b16 %v1018
    %v3074 = vunpack.c.l.b16 %v1019
    %v3075 = vunpack.c.l.b16 %v1020
    %v3076 = vunpack.c.l.b16 %v1021
    %v3077 = vunpack.c.l.b16 %v1022
    %v3078 = vunpack.c.l.b16 %v1023
    %v3079 = vunpack.c.l.b16 %v1024
    %v3080 = vunpack.c.l.b16 %v1025
    %v3081 = vunpack.c.l.b16 %v1026
    %v3082 = vunpack.c.l.b16 %v1027
    %v3083 = vunpack.c.l.b16 %v1028
    %v3084 = vunpack.c.l.b16 %v1029
    %v3085 = vunpack.c.l.b16 %v1030
    %v3086 = vunpack.c.l.b16 %v1031
    %v3087 = vunpack.c.l.b16 %v1032
    %v3088 = vunpack.c.l.b16 %v1033
    %v3089 = vunpack.c.l.b16 %v1034
    %v3090 = vunpack.c.l.b16 %v1035
    %v3091 = vunpack.c.l.b16 %v1036
    %v3092 = vunpack.c.l.b16 %v1037
    %v3093 = vunpack.c.l.b16 %v1038
    %v3094 = vunpack.c.l.b16 %v1039
    %v3095 = vunpack.c.l.b16 %v1040
    %v3096 = vunpack.c.l.b16 %v1041
    %v3097 = vunpack.c.l.b16 %v1042
    %v3098 = vunpack.c.l.b16 %v1043
    %v3099 = vunpack.c.l.b16 %v1044
    %v3100 = vunpack.c.l.b16 %v1045
    %v3101 = vunpack.c.l.b16 %v1046
    %v3102 = vunpack.c.l.b16 %v1047
    %v3103 = vunpack.c.l.b16 %v1048
    %v3104 = vunpack.c.l.b16 %v1049
    %v3105 = vunpack.c.l.b16 %v1050
    %v3106 = vunpack.c.l.b16 %v1051
    %v3107 = vunpack.c.l.b16 %v1052
    %v3108 = vunpack.c.l.b16 %v1053
    %v3109 = vunpack.c.l.b16 %v1054
    %v3110 = vunpack.c.l.b16 %v1055
    %v3111 = vunpack.c.l.b16 %v1056
    %v3112 = vunpack.c.l.b16 %v1057
    %v3113 = vunpack.c.l.b16 %v1058
    %v3114 = vunpack.c.l.b16 %v1059
    %v3115 = vunpack.c.l.b16 %v1060
    %v3116 = vunpack.c.l.b16 %v1061
    %v3117 = vunpack.c.l.b16 %v1062
    %v3118 = vunpack.c.l.b16 %v1063
    %v3119 = vunpack.c.l.b16 %v1064
    %v3120 = vunpack.c.l.b16 %v1065
    %v3121 = vunpack.c.l.b16 %v1066
    %v3122 = vunpack.c.l.b16 %v1067
    %v3123 = vunpack.c.l.b16 %v1068
    %v3124 = vunpack.c.l.b16 %v1069
    %v3125 = vunpack.c.l.b16 %v1070
    %v3126 = vunpack.c.l.b16 %v1071
    %v3127 = vunpack.c.l.b16 %v1072
    %v3128 = vunpack.c.l.b16 %v1073
    %v3129 = vunpack.c.l.b16 %v1074
    %v3130 = vunpack.c.l.b16 %v1075
    %v3131 = vunpack.c.l.b16 %v1076
    %v3132 = vunpack.c.l.b16 %v1077
    %v3133 = vunpack.c.l.b16 %v1078
    %v3134 = vunpack.c.l.b16 %v1079
    %v3135 = vunpack.c.l.b16 %v1080
    %v3136 = vunpack.c.l.b16 %v1081
    %v3137 = vunpack.c.l.b16 %v1082
    %v3138 = vunpack.c.l.b16 %v1083
    %v3139 = vunpack.c.l.b16 %v1084
    %v3140 = vunpack.c.l.b16 %v1085
    %v3141 = vunpack.c.l.b16 %v1086
    %v3142 = vunpack.c.l.b16 %v1087
    %v3143 = vunpack.c.l.b16 %v1088
    %v3144 = vunpack.c.l.b16 %v1089
    %v3145 = vunpack.c.l.b16 %v1090
    %v3146 = vunpack.c.l.b16 %v1091
    %v3147 = vunpack.c.l.b16 %v1092
    %v3148 = vunpack.c.l.b16 %v1093
    %v3149 = vunpack.c.l.b16 %v1094
    %v3150 = vunpack.c.l.b16 %v1095
    %v3151 = vunpack.c.l.b16 %v1096
    %v3152 = vunpack.c.l.b16 %v1097
    %v3153 = vunpack.c.l.b16 %v1098
    %v3154 = vunpack.c.l.b16 %v1099
    %v3155 = vunpack.c.l.b16 %v1100
    %v3156 = vunpack.c.l.b16 %v1101
    %v3157 = vunpack.c.l.b16 %v1102
    %v3158 = vunpack.c.l.b16 %v1103
    %v3159 = vunpack.c.l.b16 %v1104
    %v3160 = vunpack.c.l.b16 %v1105
    %v3161 = vunpack.c.l.b16 %v1106
    %v3162 = vunpack.c.l.b16 %v1107
    %v3163 = vunpack.c.l.b16 %v1108
    %v3164 = vunpack.c.l.b16 %v1109
    %v3165 = vunpack.c.l.b16 %v1110
    %v3166 = vunpack.c.l.b16 %v1111
    %v3167 = vunpack.c.l.b16 %v1112
    %v3168 = vunpack.c.l.b16 %v1113
    %v3169 = vunpack.c.l.b16 %v1114
    %v3170 = vunpack.c.l.b16 %v1115
    %v3171 = vunpack.c.l.b16 %v1116
    %v3172 = vunpack.c.l.b16 %v1117
    %v3173 = vunpack.c.l.b16 %v1118
    %v3174 = vunpack.c.l.b16 %v1119
    %v3175 = vunpack.c.l.b16 %v1120
    %v3176 = vunpack.c.l.b16 %v1121
    %v3177 = vunpack.c.l.b16 %v1122
    %v3178 = vunpack.c.l.b16 %v1123
    %v3179 = vunpack.c.l.b16 %v1124
    %v3180 = vunpack.c.l.b16 %v1125
    %v3181 = vunpack.c.l.b16 %v1126
    %v3182 = vunpack.c.l.b16 %v1127
    %v3183 = vunpack.c.l.b16 %v1128
    %v3184 = vunpack.c.l.b16 %v1129
    %v3185 = vunpack.c.l.b16 %v1130
    %v3186 = vunpack.c.l.b16 %v1131
    %v3187 = vunpack.c.l.b16 %v1132
    %v3188 = vunpack.c.l.b16 %v1133
    %v3189 = vunpack.c.l.b16 %v1134
    %v3190 = vunpack.c.l.b16 %v1135
    %v3191 = vunpack.c.l.b16 %v1136
    %v3192 = vunpack.c.l.b16 %v1137
    %v3193 = vunpack.c.l.b16 %v1138
    %v3194 = vunpack.c.l.b16 %v1139
    %v3195 = vunpack.c.l.b16 %v1140
    %v3196 = vunpack.c.l.b16 %v1141
    %v3197 = vunpack.c.l.b16 %v1142
    %v3198 = vunpack.c.l.b16 %v1143
    %v3199 = vunpack.c.l.b16 %v1144
    %v3200 = vunpack.c.l.b16 %v1145
    %v3201 = vunpack.c.l.b16 %v1146
    %v3202 = vunpack.c.l.b16 %v1147
    %v3203 = vunpack.c.l.b16 %v1148
    %v3204 = vunpack.c.l.b16 %v1149
    %v3205 = vunpack.c.l.b16 %v1150
    %v3206 = vunpack.c.l.b16 %v1151
    %v3207 = vunpack.c.l.b16 %v1152
    %v3208 = vunpack.c.l.b16 %v1153
    %v3209 = vunpack.c.l.b16 %v1154
    %v3210 = vunpack.c.l.b16 %v1155
    %v3211 = vunpack.c.l.b16 %v1156
    %v3212 = vunpack.c.l.b16 %v1157
    %v3213 = vunpack.c.l.b16 %v1158
    %v3214 = vunpack.c.l.b16 %v1159
    %v3215 = vunpack.c.l.b16 %v1160
    %v3216 = vunpack.c.l.b16 %v1161
    %v3217 = vunpack.c.l.b16 %v1162
    %v3218 = vunpack.c.l.b16 %v1163
    %v3219 = vunpack.c.l.b16 %v1164
    %v3220 = vunpack.c.l.b16 %v1165
    %v3221 = vunpack.c.l.b16 %v1166
    %v3222 = vunpack.c.l.b16 %v1167
    %v3223 = vunpack.c.l.b16 %v1168
    %v3224 = vunpack.c.l.b16 %v1169
    %v3225 = vunpack.c.l.b16 %v1170
    %v3226 = vunpack.c.l.b16 %v1171
    %v3227 = vunpack.c.l.b16 %v1172
    %v3228 = vunpack.c.l.b16 %v1173
    %v3229 = vunpack.c.l.b16 %v1174
    %v3230 = vunpack.c.l.b16 %v1175
    %v3231 = vunpack.c.l.b16 %v1176
    %v3232 = vunpack.c.l.b16 %v1177
    %v3233 = vunpack.c.l.b16 %v1178
    %v3234 = vunpack.c.l.b16 %v1179
    %v3235 = vunpack.c.l.b16 %v1180
    %v3236 = vunpack.c.l.b16 %v1181
    %v3237 = vunpack.c.l.b16 %v1182
    %v3238 = vunpack.c.l.b16 %v1183
    %v3239 = vunpack.c.l.b16 %v1184
    %v3240 = vunpack.c.l.b16 %v1185
    %v3241 = vunpack.c.l.b16 %v1186
    %v3242 = vunpack.c.l.b16 %v1187
    %v3243 = vunpack.c.l.b16 %v1188
    %v3244 = vunpack.c.l.b16 %v1189
    %v3245 = vunpack.c.l.b16 %v1190
    %v3246 = vunpack.c.l.b16 %v1191
    %v3247 = vunpack.c.l.b16 %v1192
    %v3248 = vunpack.c.l.b16 %v1193
    %v3249 = vunpack.c.l.b16 %v1194
    %v3250 = vunpack.c.l.b16 %v1195
    %v3251 = vunpack.c.l.b16 %v1196
    %v3252 = vunpack.c.l.b16 %v1197
    %v3253 = vunpack.c.l.b16 %v1198
    %v3254 = vunpack.c.l.b16 %v1199
    %v3255 = vunpack.c.l.b16 %v1200
    %v3256 = vunpack.c.l.b16 %v1201
    %v3257 = vunpack.c.l.b16 %v1202
    %v3258 = vunpack.c.l.b16 %v1203
    %v3259 = vunpack.c.l.b16 %v1204
    %v3260 = vunpack.c.l.b16 %v1205
    %v3261 = vunpack.c.l.b16 %v1206
    %v3262 = vunpack.c.l.b16 %v1207
    %v3263 = vunpack.c.l.b16 %v1208
    %v3264 = vunpack.c.l.b16 %v1209
    %v3265 = vunpack.c.l.b16 %v1210
    %v3266 = vunpack.c.l.b16 %v1211
    %v3267 = vunpack.c.l.b16 %v1212
    %v3268 = vunpack.c.l.b16 %v1213
    %v3269 = vunpack.c.l.b16 %v1214
    %v3270 = vunpack.c.l.b16 %v1215
    %v3271 = vunpack.c.l.b16 %v1216
    %v3272 = vunpack.c.l.b16 %v1217
    %v3273 = vunpack.c.l.b16 %v1218
    %v3274 = vunpack.c.l.b16 %v1219
    %v3275 = vunpack.c.l.b16 %v1220
    %v3276 = vunpack.c.l.b16 %v1221
    %v3277 = vunpack.c.l.b16 %v1222
    %v3278 = vunpack.c.l.b16 %v1223
    %v3279 = vunpack.c.l.b16 %v1224
    %v3280 = vunpack.c.l.b16 %v1225
    %v3281 = vunpack.c.l.b16 %v1226
    %v3282 = vunpack.c.l.b16 %v1227
    %v3283 = vunpack.c.l.b16 %v1228
    %v3284 = vunpack.c.l.b16 %v1229
    %v3285 = vunpack.c.l.b16 %v1230
    %v3286 = vunpack.c.l.b16 %v1231
    %v3287 = vunpack.c.l.b16 %v1232
    %v3288 = vunpack.c.l.b16 %v1233
    %v3289 = vunpack.c.l.b16 %v1234
    %v3290 = vunpack.c.l.b16 %v1235
    %v3291 = vunpack.c.l.b16 %v1236
    %v3292 = vunpack.c.l.b16 %v1237
    %v3293 = vunpack.c.l.b16 %v1238
    %v3294 = vpack.c.b16 %v2271, %v2270
    %v3295 = vpack.c.b16 %v2273, %v2272
    %v3296 = vpack.c.b16 %v2275, %v2274
    %v3297 = vpack.c.b16 %v2277, %v2276
    %v3298 = vpack.c.b16 %v2279, %v2278
    %v3299 = vpack.c.b16 %v2281, %v2280
    %v3300 = vpack.c.b16 %v2283, %v2282
    %v3301 = vpack.c.b16 %v2285, %v2284
    %v3302 = vpack.c.b16 %v2287, %v2286
    %v3303 = vpack.c.b16 %v2289, %v2288
    %v3304 = vpack.c.b16 %v2291, %v2290
    %v3305 = vpack.c.b16 %v2293, %v2292
    %v3306 = vpack.c.b16 %v2295, %v2294
    %v3307 = vpack.c.b16 %v2297, %v2296
    %v3308 = vpack.c.b16 %v2299, %v2298
    %v3309 = vpack.c.b16 %v2301, %v2300
    %v3310 = vpack.c.b16 %v2303, %v2302
    %v3311 = vpack.c.b16 %v2305, %v2304
    %v3312 = vpack.c.b16 %v2307, %v2306
    %v3313 = vpack.c.b16 %v2309, %v2308
    %v3314 = vpack.c.b16 %v2311, %v2310
    %v3315 = vpack.c.b16 %v2313, %v2312
    %v3316 = vpack.c.b16 %v2315, %v2314
    %v3317 = vpack.c.b16 %v2317, %v2316
    %v3318 = vpack.c.b16 %v2319, %v2318
    %v3319 = vpack.c.b16 %v2321, %v2320
    %v3320 = vpack.c.b16 %v2323, %v2322
    %v3321 = vpack.c.b16 %v2325, %v2324
    %v3322 = vpack.c.b16 %v2327, %v2326
    %v3323 = vpack.c.b16 %v2329, %v2328
    %v3324 = vpack.c.b16 %v2331, %v2330
    %v3325 = vpack.c.b16 %v2333, %v2332
    %v3326 = vpack.c.b16 %v2335, %v2334
    %v3327 = vpack.c.b16 %v2337, %v2336
    %v3328 = vpack.c.b16 %v2339, %v2338
    %v3329 = vpack.c.b16 %v2341, %v2340
    %v3330 = vpack.c.b16 %v2343, %v2342
    %v3331 = vpack.c.b16 %v2345, %v2344
    %v3332 = vpack.c.b16 %v2347, %v2346
    %v3333 = vpack.c.b16 %v2349, %v2348
    %v3334 = vpack.c.b16 %v2351, %v2350
    %v3335 = vpack.c.b16 %v2353, %v2352
    %v3336 = vpack.c.b16 %v2355, %v2354
    %v3337 = vpack.c.b16 %v2357, %v2356
    %v3338 = vpack.c.b16 %v2359, %v2358
    %v3339 = vpack.c.b16 %v2361, %v2360
    %v3340 = vpack.c.b16 %v2363, %v2362
    %v3341 = vpack.c.b16 %v2365, %v2364
    %v3342 = vpack.c.b16 %v2367, %v2366
    %v3343 = vpack.c.b16 %v2369, %v2368
    %v3344 = vpack.c.b16 %v2371, %v2370
    %v3345 = vpack.c.b16 %v2373, %v2372
    %v3346 = vpack.c.b16 %v2375, %v2374
    %v3347 = vpack.c.b16 %v2377, %v2376
    %v3348 = vpack.c.b16 %v2379, %v2378
    %v3349 = vpack.c.b16 %v2381, %v2380
    %v3350 = vpack.c.b16 %v2383, %v2382
    %v3351 = vpack.c.b16 %v2385, %v2384
    %v3352 = vpack.c.b16 %v2387, %v2386
    %v3353 = vpack.c.b16 %v2389, %v2388
    %v3354 = vpack.c.b16 %v2391, %v2390
    %v3355 = vpack.c.b16 %v2393, %v2392
    %v3356 = vpack.c.b16 %v2395, %v2394
    %v3357 = vpack.c.b16 %v2397, %v2396
    %v3358 = vpack.c.b16 %v2399, %v2398
    %v3359 = vpack.c.b16 %v2401, %v2400
    %v3360 = vpack.c.b16 %v2403, %v2402
    %v3361 = vpack.c.b16 %v2405, %v2404
    %v3362 = vpack.c.b16 %v2407, %v2406
    %v3363 = vpack.c.b16 %v2409, %v2408
    %v3364 = vpack.c.b16 %v2411, %v2410
    %v3365 = vpack.c.b16 %v2413, %v2412
    %v3366 = vpack.c.b16 %v2415, %v2414
    %v3367 = vpack.c.b16 %v2417, %v2416
    %v3368 = vpack.c.b16 %v2419, %v2418
    %v3369 = vpack.c.b16 %v2421, %v2420
    %v3370 = vpack.c.b16 %v2423, %v2422
    %v3371 = vpack.c.b16 %v2425, %v2424
    %v3372 = vpack.c.b16 %v2427, %v2426
    %v3373 = vpack.c.b16 %v2429, %v2428
    %v3374 = vpack.c.b16 %v2431, %v2430
    %v3375 = vpack.c.b16 %v2433, %v2432
    %v3376 = vpack.c.b16 %v2435, %v2434
    %v3377 = vpack.c.b16 %v2437, %v2436
    %v3378 = vpack.c.b16 %v2439, %v2438
    %v3379 = vpack.c.b16 %v2441, %v2440
    %v3380 = vpack.c.b16 %v2443, %v2442
    %v3381 = vpack.c.b16 %v2445, %v2444
    %v3382 = vpack.c.b16 %v2447, %v2446
    %v3383 = vpack.c.b16 %v2449, %v2448
    %v3384 = vpack.c.b16 %v2451, %v2450
    %v3385 = vpack.c.b16 %v2453, %v2452
    %v3386 = vpack.c.b16 %v2455, %v2454
    %v3387 = vpack.c.b16 %v2457, %v2456
    %v3388 = vpack.c.b16 %v2459, %v2458
    %v3389 = vpack.c.b16 %v2461, %v2460
    %v3390 = vpack.c.b16 %v2463, %v2462
    %v3391 = vpack.c.b16 %v2465, %v2464
    %v3392 = vpack.c.b16 %v2467, %v2466
    %v3393 = vpack.c.b16 %v2469, %v2468
    %v3394 = vpack.c.b16 %v2471, %v2470
    %v3395 = vpack.c.b16 %v2473, %v2472
    %v3396 = vpack.c.b16 %v2475, %v2474
    %v3397 = vpack.c.b16 %v2477, %v2476
    %v3398 = vpack.c.b16 %v2479, %v2478
    %v3399 = vpack.c.b16 %v2481, %v2480
    %v3400 = vpack.c.b16 %v2483, %v2482
    %v3401 = vpack.c.b16 %v2485, %v2484
    %v3402 = vpack.c.b16 %v2487, %v2486
    %v3403 = vpack.c.b16 %v2489, %v2488
    %v3404 = vpack.c.b16 %v2491, %v2490
    %v3405 = vpack.c.b16 %v2493, %v2492
    %v3406 = vpack.c.b16 %v2495, %v2494
    %v3407 = vpack.c.b16 %v2497, %v2496
    %v3408 = vpack.c.b16 %v2499, %v2498
    %v3409 = vpack.c.b16 %v2501, %v2500
    %v3410 = vpack.c.b16 %v2503, %v2502
    %v3411 = vpack.c.b16 %v2505, %v2504
    %v3412 = vpack.c.b16 %v2507, %v2506
    %v3413 = vpack.c.b16 %v2509, %v2508
    %v3414 = vpack.c.b16 %v2511, %v2510
    %v3415 = vpack.c.b16 %v2513, %v2512
    %v3416 = vpack.c.b16 %v2515, %v2514
    %v3417 = vpack.c.b16 %v2517, %v2516
    %v3418 = vpack.c.b16 %v2519, %v2518
    %v3419 = vpack.c.b16 %v2521, %v2520
    %v3420 = vpack.c.b16 %v2523, %v2522
    %v3421 = vpack.c.b16 %v2525, %v2524
    %v3422 = vpack.c.b16 %v2527, %v2526
    %v3423 = vpack.c.b16 %v2529, %v2528
    %v3424 = vpack.c.b16 %v2531, %v2530
    %v3425 = vpack.c.b16 %v2533, %v2532
    %v3426 = vpack.c.b16 %v2535, %v2534
    %v3427 = vpack.c.b16 %v2537, %v2536
    %v3428 = vpack.c.b16 %v2539, %v2538
    %v3429 = vpack.c.b16 %v2541, %v2540
    %v3430 = vpack.c.b16 %v2543, %v2542
    %v3431 = vpack.c.b16 %v2545, %v2544
    %v3432 = vpack.c.b16 %v2547, %v2546
    %v3433 = vpack.c.b16 %v2549, %v2548
    %v3434 = vpack.c.b16 %v2551, %v2550
    %v3435 = vpack.c.b16 %v2553, %v2552
    %v3436 = vpack.c.b16 %v2555, %v2554
    %v3437 = vpack.c.b16 %v2557, %v2556
    %v3438 = vpack.c.b16 %v2559, %v2558
    %v3439 = vpack.c.b16 %v2561, %v2560
    %v3440 = vpack.c.b16 %v2563, %v2562
    %v3441 = vpack.c.b16 %v2565, %v2564
    %v3442 = vpack.c.b16 %v2567, %v2566
    %v3443 = vpack.c.b16 %v2569, %v2568
    %v3444 = vpack.c.b16 %v2571, %v2570
    %v3445 = vpack.c.b16 %v2573, %v2572
    %v3446 = vpack.c.b16 %v2575, %v2574
    %v3447 = vpack.c.b16 %v2577, %v2576
    %v3448 = vpack.c.b16 %v2579, %v2578
    %v3449 = vpack.c.b16 %v2581, %v2580
    %v3450 = vpack.c.b16 %v2583, %v2582
    %v3451 = vpack.c.b16 %v2585, %v2584
    %v3452 = vpack.c.b16 %v2587, %v2586
    %v3453 = vpack.c.b16 %v2589, %v2588
    %v3454 = vpack.c.b16 %v2591, %v2590
    %v3455 = vpack.c.b16 %v2593, %v2592
    %v3456 = vpack.c.b16 %v2595, %v2594
    %v3457 = vpack.c.b16 %v2597, %v2596
    %v3458 = vpack.c.b16 %v2599, %v2598
    %v3459 = vpack.c.b16 %v2601, %v2600
    %v3460 = vpack.c.b16 %v2603, %v2602
    %v3461 = vpack.c.b16 %v2605, %v2604
    %v3462 = vpack.c.b16 %v2607, %v2606
    %v3463 = vpack.c.b16 %v2609, %v2608
    %v3464 = vpack.c.b16 %v2611, %v2610
    %v3465 = vpack.c.b16 %v2613, %v2612
    %v3466 = vpack.c.b16 %v2615, %v2614
    %v3467 = vpack.c.b16 %v2617, %v2616
    %v3468 = vpack.c.b16 %v2619, %v2618
    %v3469 = vpack.c.b16 %v2621, %v2620
    %v3470 = vpack.c.b16 %v2623, %v2622
    %v3471 = vpack.c.b16 %v2625, %v2624
    %v3472 = vpack.c.b16 %v2627, %v2626
    %v3473 = vpack.c.b16 %v2629, %v2628
    %v3474 = vpack.c.b16 %v2631, %v2630
    %v3475 = vpack.c.b16 %v2633, %v2632
    %v3476 = vpack.c.b16 %v2635, %v2634
    %v3477 = vpack.c.b16 %v2637, %v2636
    %v3478 = vpack.c.b16 %v2639, %v2638
    %v3479 = vpack.c.b16 %v2641, %v2640
    %v3480 = vpack.c.b16 %v2643, %v2642
    %v3481 = vpack.c.b16 %v2645, %v2644
    %v3482 = vpack.c.b16 %v2647, %v2646
    %v3483 = vpack.c.b16 %v2649, %v2648
    %v3484 = vpack.c.b16 %v2651, %v2650
    %v3485 = vpack.c.b16 %v2653, %v2652
    %v3486 = vpack.c.b16 %v2655, %v2654
    %v3487 = vpack.c.b16 %v2657, %v2656
    %v3488 = vpack.c.b16 %v2659, %v2658
    %v3489 = vpack.c.b16 %v2661, %v2660
    %v3490 = vpack.c.b16 %v2663, %v2662
    %v3491 = vpack.c.b16 %v2665, %v2664
    %v3492 = vpack.c.b16 %v2667, %v2666
    %v3493 = vpack.c.b16 %v2669, %v2668
    %v3494 = vpack.c.b16 %v2671, %v2670
    %v3495 = vpack.c.b16 %v2673, %v2672
    %v3496 = vpack.c.b16 %v2675, %v2674
    %v3497 = vpack.c.b16 %v2677, %v2676
    %v3498 = vpack.c.b16 %v2679, %v2678
    %v3499 = vpack.c.b16 %v2681, %v2680
    %v3500 = vpack.c.b16 %v2683, %v2682
    %v3501 = vpack.c.b16 %v2685, %v2684
    %v3502 = vpack.c.b16 %v2687, %v2686
    %v3503 = vpack.c.b16 %v2689, %v2688
    %v3504 = vpack.c.b16 %v2691, %v2690
    %v3505 = vpack.c.b16 %v2693, %v2692
    %v3506 = vpack.c.b16 %v2695, %v2694
    %v3507 = vpack.c.b16 %v2697, %v2696
    %v3508 = vpack.c.b16 %v2699, %v2698
    %v3509 = vpack.c.b16 %v2701, %v2700
    %v3510 = vpack.c.b16 %v2703, %v2702
    %v3511 = vpack.c.b16 %v2705, %v2704
    %v3512 = vpack.c.b16 %v2707, %v2706
    %v3513 = vpack.c.b16 %v2709, %v2708
    %v3514 = vpack.c.b16 %v2711, %v2710
    %v3515 = vpack.c.b16 %v2713, %v2712
    %v3516 = vpack.c.b16 %v2715, %v2714
    %v3517 = vpack.c.b16 %v2717, %v2716
    %v3518 = vpack.c.b16 %v2719, %v2718
    %v3519 = vpack.c.b16 %v2721, %v2720
    %v3520 = vpack.c.b16 %v2723, %v2722
    %v3521 = vpack.c.b16 %v2725, %v2724
    %v3522 = vpack.c.b16 %v2727, %v2726
    %v3523 = vpack.c.b16 %v2729, %v2728
    %v3524 = vpack.c.b16 %v2731, %v2730
    %v3525 = vpack.c.b16 %v2733, %v2732
    %v3526 = vpack.c.b16 %v2735, %v2734
    %v3527 = vpack.c.b16 %v2737, %v2736
    %v3528 = vpack.c.b16 %v2739, %v2738
    %v3529 = vpack.c.b16 %v2741, %v2740
    %v3530 = vpack.c.b16 %v2743, %v2742
    %v3531 = vpack.c.b16 %v2745, %v2744
    %v3532 = vpack.c.b16 %v2747, %v2746
    %v3533 = vpack.c.b16 %v2749, %v2748
    %v3534 = vpack.c.b16 %v2751, %v2750
    %v3535 = vpack.c.b16 %v2753, %v2752
    %v3536 = vpack.c.b16 %v2755, %v2754
    %v3537 = vpack.c.b16 %v2757, %v2756
    %v3538 = vpack.c.b16 %v2759, %v2758
    %v3539 = vpack.c.b16 %v2761, %v2760
    %v3540 = vpack.c.b16 %v2763, %v2762
    %v3541 = vpack.c.b16 %v2765, %v2764
    %v3542 = vpack.c.b16 %v2767, %v2766
    %v3543 = vpack.c.b16 %v2769, %v2768
    %v3544 = vpack.c.b16 %v2771, %v2770
    %v3545 = vpack.c.b16 %v2773, %v2772
    %v3546 = vpack.c.b16 %v2775, %v2774
    %v3547 = vpack.c.b16 %v2777, %v2776
    %v3548 = vpack.c.b16 %v2779, %v2778
    %v3549 = vpack.c.b16 %v2781, %v2780
    %v3550 = vpack.c.b16 %v2783, %v2782
    %v3551 = vpack.c.b16 %v2785, %v2784
    %v3552 = vpack.c.b16 %v2787, %v2786
    %v3553 = vpack.c.b16 %v2789, %v2788
    %v3554 = vpack.c.b16 %v2791, %v2790
    %v3555 = vpack.c.b16 %v2793, %v2792
    %v3556 = vpack.c.b16 %v2795, %v2794
    %v3557 = vpack.c.b16 %v2797, %v2796
    %v3558 = vpack.c.b16 %v2799, %v2798
    %v3559 = vpack.c.b16 %v2801, %v2800
    %v3560 = vpack.c.b16 %v2803, %v2802
    %v3561 = vpack.c.b16 %v2805, %v2804
    %v3562 = vpack.c.b16 %v2807, %v2806
    %v3563 = vpack.c.b16 %v2809, %v2808
    %v3564 = vpack.c.b16 %v2811, %v2810
    %v3565 = vpack.c.b16 %v2813, %v2812
    %v3566 = vpack.c.b16 %v2815, %v2814
    %v3567 = vpack.c.b16 %v2817, %v2816
    %v3568 = vpack.c.b16 %v2819, %v2818
    %v3569 = vpack.c.b16 %v2821, %v2820
    %v3570 = vpack.c.b16 %v2823, %v2822
    %v3571 = vpack.c.b16 %v2825, %v2824
    %v3572 = vpack.c.b16 %v2827, %v2826
    %v3573 = vpack.c.b16 %v2829, %v2828
    %v3574 = vpack.c.b16 %v2831, %v2830
    %v3575 = vpack.c.b16 %v2833, %v2832
    %v3576 = vpack.c.b16 %v2835, %v2834
    %v3577 = vpack.c.b16 %v2837, %v2836
    %v3578 = vpack.c.b16 %v2839, %v2838
    %v3579 = vpack.c.b16 %v2841, %v2840
    %v3580 = vpack.c.b16 %v2843, %v2842
    %v3581 = vpack.c.b16 %v2845, %v2844
    %v3582 = vpack.c.b16 %v2847, %v2846
    %v3583 = vpack.c.b16 %v2849, %v2848
    %v3584 = vpack.c.b16 %v2851, %v2850
    %v3585 = vpack.c.b16 %v2853, %v2852
    %v3586 = vpack.c.b16 %v2855, %v2854
    %v3587 = vpack.c.b16 %v2857, %v2856
    %v3588 = vpack.c.b16 %v2859, %v2858
    %v3589 = vpack.c.b16 %v2861, %v2860
    %v3590 = vpack.c.b16 %v2863, %v2862
    %v3591 = vpack.c.b16 %v2865, %v2864
    %v3592 = vpack.c.b16 %v2867, %v2866
    %v3593 = vpack.c.b16 %v2869, %v2868
    %v3594 = vpack.c.b16 %v2871, %v2870
    %v3595 = vpack.c.b16 %v2873, %v2872
    %v3596 = vpack.c.b16 %v2875, %v2874
    %v3597 = vpack.c.b16 %v2877, %v2876
    %v3598 = vpack.c.b16 %v2879, %v2878
    %v3599 = vpack.c.b16 %v2881, %v2880
    %v3600 = vpack.c.b16 %v2883, %v2882
    %v3601 = vpack.c.b16 %v2885, %v2884
    %v3602 = vpack.c.b16 %v2887, %v2886
    %v3603 = vpack.c.b16 %v2889, %v2888
    %v3604 = vpack.c.b16 %v2891, %v2890
    %v3605 = vpack.c.b16 %v2893, %v2892
    %v3606 = vpack.c.b16 %v2895, %v2894
    %v3607 = vpack.c.b16 %v2897, %v2896
    %v3608 = vpack.c.b16 %v2899, %v2898
    %v3609 = vpack.c.b16 %v2901, %v2900
    %v3610 = vpack.c.b16 %v2903, %v2902
    %v3611 = vpack.c.b16 %v2905, %v2904
    %v3612 = vpack.c.b16 %v2907, %v2906
    %v3613 = vpack.c.b16 %v2909, %v2908
    %v3614 = vpack.c.b16 %v2911, %v2910
    %v3615 = vpack.c.b16 %v2913, %v2912
    %v3616 = vpack.c.b16 %v2915, %v2914
    %v3617 = vpack.c.b16 %v2917, %v2916
    %v3618 = vpack.c.b16 %v2919, %v2918
    %v3619 = vpack.c.b16 %v2921, %v2920
    %v3620 = vpack.c.b16 %v2923, %v2922
    %v3621 = vpack.c.b16 %v2925, %v2924
    %v3622 = vpack.c.b16 %v2927, %v2926
    %v3623 = vpack.c.b16 %v2929, %v2928
    %v3624 = vpack.c.b16 %v2931, %v2930
    %v3625 = vpack.c.b16 %v2933, %v2932
    %v3626 = vpack.c.b16 %v2935, %v2934
    %v3627 = vpack.c.b16 %v2937, %v2936
    %v3628 = vpack.c.b16 %v2939, %v2938
    %v3629 = vpack.c.b16 %v2941, %v2940
    %v3630 = vpack.c.b16 %v2943, %v2942
    %v3631 = vpack.c.b16 %v2945, %v2944
    %v3632 = vpack.c.b16 %v2947, %v2946
    %v3633 = vpack.c.b16 %v2949, %v2948
    %v3634 = vpack.c.b16 %v2951, %v2950
    %v3635 = vpack.c.b16 %v2953, %v2952
    %v3636 = vpack.c.b16 %v2955, %v2954
    %v3637 = vpack.c.b16 %v2957, %v2956
    %v3638 = vpack.c.b16 %v2959, %v2958
    %v3639 = vpack.c.b16 %v2961, %v2960
    %v3640 = vpack.c.b16 %v2963, %v2962
    %v3641 = vpack.c.b16 %v2965, %v2964
    %v3642 = vpack.c.b16 %v2967, %v2966
    %v3643 = vpack.c.b16 %v2969, %v2968
    %v3644 = vpack.c.b16 %v2971, %v2970
    %v3645 = vpack.c.b16 %v2973, %v2972
    %v3646 = vpack.c.b16 %v2975, %v2974
    %v3647 = vpack.c.b16 %v2977, %v2976
    %v3648 = vpack.c.b16 %v2979, %v2978
    %v3649 = vpack.c.b16 %v2981, %v2980
    %v3650 = vpack.c.b16 %v2983, %v2982
    %v3651 = vpack.c.b16 %v2985, %v2984
    %v3652 = vpack.c.b16 %v2987, %v2986
    %v3653 = vpack.c.b16 %v2989, %v2988
    %v3654 = vpack.c.b16 %v2991, %v2990
    %v3655 = vpack.c.b16 %v2993, %v2992
    %v3656 = vpack.c.b16 %v2995, %v2994
    %v3657 = vpack.c.b16 %v2997, %v2996
    %v3658 = vpack.c.b16 %v2999, %v2998
    %v3659 = vpack.c.b16 %v3001, %v3000
    %v3660 = vpack.c.b16 %v3003, %v3002
    %v3661 = vpack.c.b16 %v3005, %v3004
    %v3662 = vpack.c.b16 %v3007, %v3006
    %v3663 = vpack.c.b16 %v3009, %v3008
    %v3664 = vpack.c.b16 %v3011, %v3010
    %v3665 = vpack.c.b16 %v3013, %v3012
    %v3666 = vpack.c.b16 %v3015, %v3014
    %v3667 = vpack.c.b16 %v3017, %v3016
    %v3668 = vpack.c.b16 %v3019, %v3018
    %v3669 = vpack.c.b16 %v3021, %v3020
    %v3670 = vpack.c.b16 %v3023, %v3022
    %v3671 = vpack.c.b16 %v3025, %v3024
    %v3672 = vpack.c.b16 %v3027, %v3026
    %v3673 = vpack.c.b16 %v3029, %v3028
    %v3674 = vpack.c.b16 %v3031, %v3030
    %v3675 = vpack.c.b16 %v3033, %v3032
    %v3676 = vpack.c.b16 %v3035, %v3034
    %v3677 = vpack.c.b16 %v3037, %v3036
    %v3678 = vpack.c.b16 %v3039, %v3038
    %v3679 = vpack.c.b16 %v3041, %v3040
    %v3680 = vpack.c.b16 %v3043, %v3042
    %v3681 = vpack.c.b16 %v3045, %v3044
    %v3682 = vpack.c.b16 %v3047, %v3046
    %v3683 = vpack.c.b16 %v3049, %v3048
    %v3684 = vpack.c.b16 %v3051, %v3050
    %v3685 = vpack.c.b16 %v3053, %v3052
    %v3686 = vpack.c.b16 %v3055, %v3054
    %v3687 = vpack.c.b16 %v3057, %v3056
    %v3688 = vpack.c.b16 %v3059, %v3058
    %v3689 = vpack.c.b16 %v3061, %v3060
    %v3690 = vpack.c.b16 %v3063, %v3062
    %v3691 = vpack.c.b16 %v3065, %v3064
    %v3692 = vpack.c.b16 %v3067, %v3066
    %v3693 = vpack.c.b16 %v3069, %v3068
    %v3694 = vpack.c.b16 %v3071, %v3070
    %v3695 = vpack.c.b16 %v3073, %v3072
    %v3696 = vpack.c.b16 %v3075, %v3074
    %v3697 = vpack.c.b16 %v3077, %v3076
    %v3698 = vpack.c.b16 %v3079, %v3078
    %v3699 = vpack.c.b16 %v3081, %v3080
    %v3700 = vpack.c.b16 %v3083, %v3082
    %v3701 = vpack.c.b16 %v3085, %v3084
    %v3702 = vpack.c.b16 %v3087, %v3086
    %v3703 = vpack.c.b16 %v3089, %v3088
    %v3704 = vpack.c.b16 %v3091, %v3090
    %v3705 = vpack.c.b16 %v3093, %v3092
    %v3706 = vpack.c.b16 %v3095, %v3094
    %v3707 = vpack.c.b16 %v3097, %v3096
    %v3708 = vpack.c.b16 %v3099, %v3098
    %v3709 = vpack.c.b16 %v3101, %v3100
    %v3710 = vpack.c.b16 %v3103, %v3102
    %v3711 = vpack.c.b16 %v3105, %v3104
    %v3712 = vpack.c.b16 %v3107, %v3106
    %v3713 = vpack.c.b16 %v3109, %v3108
    %v3714 = vpack.c.b16 %v3111, %v3110
    %v3715 = vpack.c.b16 %v3113, %v3112
    %v3716 = vpack.c.b16 %v3115, %v3114
    %v3717 = vpack.c.b16 %v3117, %v3116
    %v3718 = vpack.c.b16 %v3119, %v3118
    %v3719 = vpack.c.b16 %v3121, %v3120
    %v3720 = vpack.c.b16 %v3123, %v3122
    %v3721 = vpack.c.b16 %v3125, %v3124
    %v3722 = vpack.c.b16 %v3127, %v3126
    %v3723 = vpack.c.b16 %v3129, %v3128
    %v3724 = vpack.c.b16 %v3131, %v3130
    %v3725 = vpack.c.b16 %v3133, %v3132
    %v3726 = vpack.c.b16 %v3135, %v3134
    %v3727 = vpack.c.b16 %v3137, %v3136
    %v3728 = vpack.c.b16 %v3139, %v3138
    %v3729 = vpack.c.b16 %v3141, %v3140
    %v3730 = vpack.c.b16 %v3143, %v3142
    %v3731 = vpack.c.b16 %v3145, %v3144
    %v3732 = vpack.c.b16 %v3147, %v3146
    %v3733 = vpack.c.b16 %v3149, %v3148
    %v3734 = vpack.c.b16 %v3151, %v3150
    %v3735 = vpack.c.b16 %v3153, %v3152
    %v3736 = vpack.c.b16 %v3155, %v3154
    %v3737 = vpack.c.b16 %v3157, %v3156
    %v3738 = vpack.c.b16 %v3159, %v3158
    %v3739 = vpack.c.b16 %v3161, %v3160
    %v3740 = vpack.c.b16 %v3163, %v3162
    %v3741 = vpack.c.b16 %v3165, %v3164
    %v3742 = vpack.c.b16 %v3167, %v3166
    %v3743 = vpack.c.b16 %v3169, %v3168
    %v3744 = vpack.c.b16 %v3171, %v3170
    %v3745 = vpack.c.b16 %v3173, %v3172
    %v3746 = vpack.c.b16 %v3175, %v3174
    %v3747 = vpack.c.b16 %v3177, %v3176
    %v3748 = vpack.c.b16 %v3179, %v3178
    %v3749 = vpack.c.b16 %v3181, %v3180
    %v3750 = vpack.c.b16 %v3183, %v3182
    %v3751 = vpack.c.b16 %v3185, %v3184
    %v3752 = vpack.c.b16 %v3187, %v3186
    %v3753 = vpack.c.b16 %v3189, %v3188
    %v3754 = vpack.c.b16 %v3191, %v3190
    %v3755 = vpack.c.b16 %v3193, %v3192
    %v3756 = vpack.c.b16 %v3195, %v3194
    %v3757 = vpack.c.b16 %v3197, %v3196
    %v3758 = vpack.c.b16 %v3199, %v3198
    %v3759 = vpack.c.b16 %v3201, %v3200
    %v3760 = vpack.c.b16 %v3203, %v3202
    %v3761 = vpack.c.b16 %v3205, %v3204
    %v3762 = vpack.c.b16 %v3207, %v3206
    %v3763 = vpack.c.b16 %v3209, %v3208
    %v3764 = vpack.c.b16 %v3211, %v3210
    %v3765 = vpack.c.b16 %v3213, %v3212
    %v3766 = vpack.c.b16 %v3215, %v3214
    %v3767 = vpack.c.b16 %v3217, %v3216
    %v3768 = vpack.c.b16 %v3219, %v3218
    %v3769 = vpack.c.b16 %v3221, %v3220
    %v3770 = vpack.c.b16 %v3223, %v3222
    %v3771 = vpack.c.b16 %v3225, %v3224
    %v3772 = vpack.c.b16 %v3227, %v3226
    %v3773 = vpack.c.b16 %v3229, %v3228
    %v3774 = vpack.c.b16 %v3231, %v3230
    %v3775 = vpack.c.b16 %v3233, %v3232
    %v3776 = vpack.c.b16 %v3235, %v3234
    %v3777 = vpack.c.b16 %v3237, %v3236
    %v3778 = vpack.c.b16 %v3239, %v3238
    %v3779 = vpack.c.b16 %v3241, %v3240
    %v3780 = vpack.c.b16 %v3243, %v3242
    %v3781 = vpack.c.b16 %v3245, %v3244
    %v3782 = vpack.c.b16 %v3247, %v3246
    %v3783 = vpack.c.b16 %v3249, %v3248
    %v3784 = vpack.c.b16 %v3251, %v3250
    %v3785 = vpack.c.b16 %v3253, %v3252
    %v3786 = vpack.c.b16 %v3255, %v3254
    %v3787 = vpack.c.b16 %v3257, %v3256
    %v3788 = vpack.c.b16 %v3259, %v3258
    %v3789 = vpack.c.b16 %v3261, %v3260
    %v3790 = vpack.c.b16 %v3263, %v3262
    %v3791 = vpack.c.b16 %v3265, %v3264
    %v3792 = vpack.c.b16 %v3267, %v3266
    %v3793 = vpack.c.b16 %v3269, %v3268
    %v3794 = vpack.c.b16 %v3271, %v3270
    %v3795 = vpack.c.b16 %v3273, %v3272
    %v3796 = vpack.c.b16 %v3275, %v3274
    %v3797 = vpack.c.b16 %v3277, %v3276
    %v3798 = vpack.c.b16 %v3279, %v3278
    %v3799 = vpack.c.b16 %v3281, %v3280
    %v3800 = vpack.c.b16 %v3283, %v3282
    %v3801 = vpack.c.b16 %v3285, %v3284
    %v3802 = vpack.c.b16 %v3287, %v3286
    %v3803 = vpack.c.b16 %v3289, %v3288
    %v3804 = vpack.c.b16 %v3291, %v3290
    %v3805 = vpack.c.b16 %v3293, %v3292
    %4318 = vmatprep.subr.bf16.mxu0 0
    %4319 = vmatpush1.bf16.msra.mxu0 %v3294
    %4320 = vmatprep.subr.bf16.mxu0 0
    %4321 = vmatpush1.bf16.msra.mxu0 %v3295
    %4322 = vmatprep.subr.bf16.mxu0 0
    %4323 = vmatpush1.bf16.msra.mxu0 %v3296
    %4324 = vmatprep.subr.bf16.mxu0 0
    %4325 = vmatpush1.bf16.msra.mxu0 %v3297
    %4326 = vmatprep.subr.bf16.mxu0 0
    %4327 = vmatpush1.bf16.msra.mxu0 %v3298
    %4328 = vmatprep.subr.bf16.mxu0 0
    %4329 = vmatpush1.bf16.msra.mxu0 %v3299
    %4330 = vmatprep.subr.bf16.mxu0 0
    %4331 = vmatpush1.bf16.msra.mxu0 %v3300
    %4332 = vmatprep.subr.bf16.mxu0 0
    %4333 = vmatpush1.bf16.msra.mxu0 %v3301
    %4334 = vmatprep.subr.bf16.mxu0 0
    %4335 = vmatpush1.bf16.msra.mxu0 %v3302
    %4336 = vmatprep.subr.bf16.mxu0 0
    %4337 = vmatpush1.bf16.msra.mxu0 %v3303
    %4338 = vmatprep.subr.bf16.mxu0 0
    %4339 = vmatpush1.bf16.msra.mxu0 %v3304
    %4340 = vmatprep.subr.bf16.mxu0 0
    %4341 = vmatpush1.bf16.msra.mxu0 %v3305
    %4342 = vmatprep.subr.bf16.mxu0 0
    %4343 = vmatpush1.bf16.msra.mxu0 %v3306
    %4344 = vmatprep.subr.bf16.mxu0 0
    %4345 = vmatpush1.bf16.msra.mxu0 %v3307
    %4346 = vmatprep.subr.bf16.mxu0 0
    %4347 = vmatpush1.bf16.msra.mxu0 %v3308
    %4348 = vmatprep.subr.bf16.mxu0 0
    %4349 = vmatpush1.bf16.msra.mxu0 %v3309
    %4350 = vmatprep.mubr.bf16.mxu0 %v152
    %4351 = vmatmul.mubr.bf16.gmra.mrb[0].mxu0 %v151
    %v4352 = vpop.f32.mrb[0].mxu0
    %v4353 = vadd.f32 %v1244, %v4352
    %v4354 = vpop.f32.mrb[0].mxu0
    %v4355 = vpop.f32.mrb[0].mxu0
    %v4356 = vpop.f32.mrb[0].mxu0
    %4357 = vdwg.mxu0
    %4358 = vmatprep.subr.bf16.mxu0 0
    %4359 = vmatpush1.bf16.msra.mxu0 %v3310
    %4360 = vmatprep.subr.bf16.mxu0 0
    %4361 = vmatpush1.bf16.msra.mxu0 %v3311
    %4362 = vmatprep.subr.bf16.mxu0 0
    %4363 = vmatpush1.bf16.msra.mxu0 %v3312
    %4364 = vmatprep.subr.bf16.mxu0 0
    %4365 = vmatpush1.bf16.msra.mxu0 %v3313
    %4366 = vmatprep.subr.bf16.mxu0 0
    %4367 = vmatpush1.bf16.msra.mxu0 %v3314
    %4368 = vmatprep.subr.bf16.mxu0 0
    %4369 = vmatpush1.bf16.msra.mxu0 %v3315
    %4370 = vmatprep.subr.bf16.mxu0 0
    %4371 = vmatpush1.bf16.msra.mxu0 %v3316
    %4372 = vmatprep.subr.bf16.mxu0 0
    %4373 = vmatpush1.bf16.msra.mxu0 %v3317
    %4374 = vmatprep.subr.bf16.mxu0 0
    %4375 = vmatpush1.bf16.msra.mxu0 %v3318
    %4376 = vmatprep.subr.bf16.mxu0 0
    %4377 = vmatpush1.bf16.msra.mxu0 %v3319
    %4378 = vmatprep.subr.bf16.mxu0 0
    %4379 = vmatpush1.bf16.msra.mxu0 %v3320
    %4380 = vmatprep.subr.bf16.mxu0 0
    %4381 = vmatpush1.bf16.msra.mxu0 %v3321
    %4382 = vmatprep.subr.bf16.mxu0 0
    %4383 = vmatpush1.bf16.msra.mxu0 %v3322
    %4384 = vmatprep.subr.bf16.mxu0 0
    %4385 = vmatpush1.bf16.msra.mxu0 %v3323
    %4386 = vmatprep.subr.bf16.mxu0 0
    %4387 = vmatpush1.bf16.msra.mxu0 %v3324
    %4388 = vmatprep.subr.bf16.mxu0 0
    %4389 = vmatpush1.bf16.msra.mxu0 %v3325
    %4390 = vmatprep.mubr.bf16.mxu0 %v154
    %4391 = vmatmul.mubr.bf16.gmra.mrb[0].mxu0 %v153
    %v4392 = vpop.f32.mrb[0].mxu0
    %v4393 = vadd.f32 %v4353, %v4392
    %v4394 = vpop.f32.mrb[0].mxu0
    %v4395 = vpop.f32.mrb[0].mxu0
    %v4396 = vpop.f32.mrb[0].mxu0
    %4397 = vdwg.mxu0
    %4398 = vmatprep.subr.bf16.mxu0 0
    %4399 = vmatpush1.bf16.msra.mxu0 %v3326
    %4400 = vmatprep.subr.bf16.mxu0 0
    %4401 = vmatpush1.bf16.msra.mxu0 %v3327
    %4402 = vmatprep.subr.bf16.mxu0 0
    %4403 = vmatpush1.bf16.msra.mxu0 %v3328
    %4404 = vmatprep.subr.bf16.mxu0 0
    %4405 = vmatpush1.bf16.msra.mxu0 %v3329
    %4406 = vmatprep.subr.bf16.mxu0 0
    %4407 = vmatpush1.bf16.msra.mxu0 %v3330
    %4408 = vmatprep.subr.bf16.mxu0 0
    %4409 = vmatpush1.bf16.msra.mxu0 %v3331
    %4410 = vmatprep.subr.bf16.mxu0 0
    %4411 = vmatpush1.bf16.msra.mxu0 %v3332
    %4412 = vmatprep.subr.bf16.mxu0 0
    %4413 = vmatpush1.bf16.msra.mxu0 %v3333
    %4414 = vmatprep.subr.bf16.mxu0 0
    %4415 = vmatpush1.bf16.msra.mxu0 %v3334
    %4416 = vmatprep.subr.bf16.mxu0 0
    %4417 = vmatpush1.bf16.msra.mxu0 %v3335
    %4418 = vmatprep.subr.bf16.mxu0 0
    %4419 = vmatpush1.bf16.msra.mxu0 %v3336
    %4420 = vmatprep.subr.bf16.mxu0 0
    %4421 = vmatpush1.bf16.msra.mxu0 %v3337
    %4422 = vmatprep.subr.bf16.mxu0 0
    %4423 = vmatpush1.bf16.msra.mxu0 %v3338
    %4424 = vmatprep.subr.bf16.mxu0 0
    %4425 = vmatpush1.bf16.msra.mxu0 %v3339
    %4426 = vmatprep.subr.bf16.mxu0 0
    %4427 = vmatpush1.bf16.msra.mxu0 %v3340
    %4428 = vmatprep.subr.bf16.mxu0 0
    %4429 = vmatpush1.bf16.msra.mxu0 %v3341
    %4430 = vmatprep.mubr.bf16.mxu0 %v156
    %4431 = vmatmul.mubr.bf16.gmra.mrb[0].mxu0 %v155
    %v4432 = vpop.f32.mrb[0].mxu0
    %v4433 = vadd.f32 %v4393, %v4432
    %v4434 = vpop.f32.mrb[0].mxu0
    %v4435 = vpop.f32.mrb[0].mxu0
    %v4436 = vpop.f32.mrb[0].mxu0
    %4437 = vdwg.mxu0
    %4438 = vmatprep.subr.bf16.mxu0 0
    %4439 = vmatpush1.bf16.msra.mxu0 %v3342
    %4440 = vmatprep.subr.bf16.mxu0 0
    %4441 = vmatpush1.bf16.msra.mxu0 %v3343
    %4442 = vmatprep.subr.bf16.mxu0 0
    %4443 = vmatpush1.bf16.msra.mxu0 %v3344
    %4444 = vmatprep.subr.bf16.mxu0 0
    %4445 = vmatpush1.bf16.msra.mxu0 %v3345
    %4446 = vmatprep.subr.bf16.mxu0 0
    %4447 = vmatpush1.bf16.msra.mxu0 %v3346
    %4448 = vmatprep.subr.bf16.mxu0 0
    %4449 = vmatpush1.bf16.msra.mxu0 %v3347
    %4450 = vmatprep.subr.bf16.mxu0 0
    %4451 = vmatpush1.bf16.msra.mxu0 %v3348
    %4452 = vmatprep.subr.bf16.mxu0 0
    %4453 = vmatpush1.bf16.msra.mxu0 %v3349
    %4454 = vmatprep.subr.bf16.mxu0 0
    %4455 = vmatpush1.bf16.msra.mxu0 %v3350
    %4456 = vmatprep.subr.bf16.mxu0 0
    %4457 = vmatpush1.bf16.msra.mxu0 %v3351
    %4458 = vmatprep.subr.bf16.mxu0 0
    %4459 = vmatpush1.bf16.msra.mxu0 %v3352
    %4460 = vmatprep.subr.bf16.mxu0 0
    %4461 = vmatpush1.bf16.msra.mxu0 %v3353
    %4462 = vmatprep.subr.bf16.mxu0 0
    %4463 = vmatpush1.bf16.msra.mxu0 %v3354
    %4464 = vmatprep.subr.bf16.mxu0 0
    %4465 = vmatpush1.bf16.msra.mxu0 %v3355
    %4466 = vmatprep.subr.bf16.mxu0 0
    %4467 = vmatpush1.bf16.msra.mxu0 %v3356
    %4468 = vmatprep.subr.bf16.mxu0 0
    %4469 = vmatpush1.bf16.msra.mxu0 %v3357
    %4470 = vmatprep.mubr.bf16.mxu0 %v158
    %4471 = vmatmul.mubr.bf16.gmra.mrb[0].mxu0 %v157
    %v4472 = vpop.f32.mrb[0].mxu0
    %v4473 = vadd.f32 %v4433, %v4472
    %v4474 = vpop.f32.mrb[0].mxu0
    %v4475 = vpop.f32.mrb[0].mxu0
    %v4476 = vpop.f32.mrb[0].mxu0
    %4477 = vdwg.mxu0
    %4478 = vmatprep.subr.bf16.mxu0 0
    %4479 = vmatpush1.bf16.msra.mxu0 %v3358
    %4480 = vmatprep.subr.bf16.mxu0 0
    %4481 = vmatpush1.bf16.msra.mxu0 %v3359
    %4482 = vmatprep.subr.bf16.mxu0 0
    %4483 = vmatpush1.bf16.msra.mxu0 %v3360
    %4484 = vmatprep.subr.bf16.mxu0 0
    %4485 = vmatpush1.bf16.msra.mxu0 %v3361
    %4486 = vmatprep.subr.bf16.mxu0 0
    %4487 = vmatpush1.bf16.msra.mxu0 %v3362
    %4488 = vmatprep.subr.bf16.mxu0 0
    %4489 = vmatpush1.bf16.msra.mxu0 %v3363
    %4490 = vmatprep.subr.bf16.mxu0 0
    %4491 = vmatpush1.bf16.msra.mxu0 %v3364
    %4492 = vmatprep.subr.bf16.mxu0 0
    %4493 = vmatpush1.bf16.msra.mxu0 %v3365
    %4494 = vmatprep.subr.bf16.mxu0 0
    %4495 = vmatpush1.bf16.msra.mxu0 %v3366
    %4496 = vmatprep.subr.bf16.mxu0 0
    %4497 = vmatpush1.bf16.msra.mxu0 %v3367
    %4498 = vmatprep.subr.bf16.mxu0 0
    %4499 = vmatpush1.bf16.msra.mxu0 %v3368
    %4500 = vmatprep.subr.bf16.mxu0 0
    %4501 = vmatpush1.bf16.msra.mxu0 %v3369
    %4502 = vmatprep.subr.bf16.mxu0 0
    %4503 = vmatpush1.bf16.msra.mxu0 %v3370
    %4504 = vmatprep.subr.bf16.mxu0 0
    %4505 = vmatpush1.bf16.msra.mxu0 %v3371
    %4506 = vmatprep.subr.bf16.mxu0 0
    %4507 = vmatpush1.bf16.msra.mxu0 %v3372
    %4508 = vmatprep.subr.bf16.mxu0 0
    %4509 = vmatpush1.bf16.msra.mxu0 %v3373
    %4510 = vmatprep.mubr.bf16.mxu0 %v160
    %4511 = vmatmul.mubr.bf16.gmra.mrb[0].mxu0 %v159
    %v4512 = vpop.f32.mrb[0].mxu0
    %v4513 = vadd.f32 %v4473, %v4512
    %v4514 = vpop.f32.mrb[0].mxu0
    %v4515 = vpop.f32.mrb[0].mxu0
    %v4516 = vpop.f32.mrb[0].mxu0
    %4517 = vdwg.mxu0
    %4518 = vmatprep.subr.bf16.mxu0 0
    %4519 = vmatpush1.bf16.msra.mxu0 %v3374
    %4520 = vmatprep.subr.bf16.mxu0 0
    %4521 = vmatpush1.bf16.msra.mxu0 %v3375
    %4522 = vmatprep.subr.bf16.mxu0 0
    %4523 = vmatpush1.bf16.msra.mxu0 %v3376
    %4524 = vmatprep.subr.bf16.mxu0 0
    %4525 = vmatpush1.bf16.msra.mxu0 %v3377
    %4526 = vmatprep.subr.bf16.mxu0 0
    %4527 = vmatpush1.bf16.msra.mxu0 %v3378
    %4528 = vmatprep.subr.bf16.mxu0 0
    %4529 = vmatpush1.bf16.msra.mxu0 %v3379
    %4530 = vmatprep.subr.bf16.mxu0 0
    %4531 = vmatpush1.bf16.msra.mxu0 %v3380
    %4532 = vmatprep.subr.bf16.mxu0 0
    %4533 = vmatpush1.bf16.msra.mxu0 %v3381
    %4534 = vmatprep.subr.bf16.mxu0 0
    %4535 = vmatpush1.bf16.msra.mxu0 %v3382
    %4536 = vmatprep.subr.bf16.mxu0 0
    %4537 = vmatpush1.bf16.msra.mxu0 %v3383
    %4538 = vmatprep.subr.bf16.mxu0 0
    %4539 = vmatpush1.bf16.msra.mxu0 %v3384
    %4540 = vmatprep.subr.bf16.mxu0 0
    %4541 = vmatpush1.bf16.msra.mxu0 %v3385
    %4542 = vmatprep.subr.bf16.mxu0 0
    %4543 = vmatpush1.bf16.msra.mxu0 %v3386
    %4544 = vmatprep.subr.bf16.mxu0 0
    %4545 = vmatpush1.bf16.msra.mxu0 %v3387
    %4546 = vmatprep.subr.bf16.mxu0 0
    %4547 = vmatpush1.bf16.msra.mxu0 %v3388
    %4548 = vmatprep.subr.bf16.mxu0 0
    %4549 = vmatpush1.bf16.msra.mxu0 %v3389
    %4550 = vmatprep.mubr.bf16.mxu0 %v162
    %4551 = vmatmul.mubr.bf16.gmra.mrb[0].mxu0 %v161
    %v4552 = vpop.f32.mrb[0].mxu0
    %v4553 = vadd.f32 %v4513, %v4552
    %v4554 = vpop.f32.mrb[0].mxu0
    %v4555 = vpop.f32.mrb[0].mxu0
    %v4556 = vpop.f32.mrb[0].mxu0
    %4557 = vdwg.mxu0
    %4558 = vmatprep.subr.bf16.mxu0 0
    %4559 = vmatpush1.bf16.msra.mxu0 %v3390
    %4560 = vmatprep.subr.bf16.mxu0 0
    %4561 = vmatpush1.bf16.msra.mxu0 %v3391
    %4562 = vmatprep.subr.bf16.mxu0 0
    %4563 = vmatpush1.bf16.msra.mxu0 %v3392
    %4564 = vmatprep.subr.bf16.mxu0 0
    %4565 = vmatpush1.bf16.msra.mxu0 %v3393
    %4566 = vmatprep.subr.bf16.mxu0 0
    %4567 = vmatpush1.bf16.msra.mxu0 %v3394
    %4568 = vmatprep.subr.bf16.mxu0 0
    %4569 = vmatpush1.bf16.msra.mxu0 %v3395
    %4570 = vmatprep.subr.bf16.mxu0 0
    %4571 = vmatpush1.bf16.msra.mxu0 %v3396
    %4572 = vmatprep.subr.bf16.mxu0 0
    %4573 = vmatpush1.bf16.msra.mxu0 %v3397
    %4574 = vmatprep.subr.bf16.mxu0 0
    %4575 = vmatpush1.bf16.msra.mxu0 %v3398
    %4576 = vmatprep.subr.bf16.mxu0 0
    %4577 = vmatpush1.bf16.msra.mxu0 %v3399
    %4578 = vmatprep.subr.bf16.mxu0 0
    %4579 = vmatpush1.bf16.msra.mxu0 %v3400
    %4580 = vmatprep.subr.bf16.mxu0 0
    %4581 = vmatpush1.bf16.msra.mxu0 %v3401
    %4582 = vmatprep.subr.bf16.mxu0 0
    %4583 = vmatpush1.bf16.msra.mxu0 %v3402
    %4584 = vmatprep.subr.bf16.mxu0 0
    %4585 = vmatpush1.bf16.msra.mxu0 %v3403
    %4586 = vmatprep.subr.bf16.mxu0 0
    %4587 = vmatpush1.bf16.msra.mxu0 %v3404
    %4588 = vmatprep.subr.bf16.mxu0 0
    %4589 = vmatpush1.bf16.msra.mxu0 %v3405
    %4590 = vmatprep.mubr.bf16.mxu0 %v164
    %4591 = vmatmul.mubr.bf16.gmra.mrb[0].mxu0 %v163
    %v4592 = vpop.f32.mrb[0].mxu0
    %v4593 = vadd.f32 %v4553, %v4592
    %v4594 = vpop.f32.mrb[0].mxu0
    %v4595 = vpop.f32.mrb[0].mxu0
    %v4596 = vpop.f32.mrb[0].mxu0
    %4597 = vdwg.mxu0
    %4598 = vmatprep.subr.bf16.mxu0 0
    %4599 = vmatpush1.bf16.msra.mxu0 %v3406
    %4600 = vmatprep.subr.bf16.mxu0 0
    %4601 = vmatpush1.bf16.msra.mxu0 %v3407
    %4602 = vmatprep.subr.bf16.mxu0 0
    %4603 = vmatpush1.bf16.msra.mxu0 %v3408
    %4604 = vmatprep.subr.bf16.mxu0 0
    %4605 = vmatpush1.bf16.msra.mxu0 %v3409
    %4606 = vmatprep.subr.bf16.mxu0 0
    %4607 = vmatpush1.bf16.msra.mxu0 %v3410
    %4608 = vmatprep.subr.bf16.mxu0 0
    %4609 = vmatpush1.bf16.msra.mxu0 %v3411
    %4610 = vmatprep.subr.bf16.mxu0 0
    %4611 = vmatpush1.bf16.msra.mxu0 %v3412
    %4612 = vmatprep.subr.bf16.mxu0 0
    %4613 = vmatpush1.bf16.msra.mxu0 %v3413
    %4614 = vmatprep.subr.bf16.mxu0 0
    %4615 = vmatpush1.bf16.msra.mxu0 %v3414
    %4616 = vmatprep.subr.bf16.mxu0 0
    %4617 = vmatpush1.bf16.msra.mxu0 %v3415
    %4618 = vmatprep.subr.bf16.mxu0 0
    %4619 = vmatpush1.bf16.msra.mxu0 %v3416
    %4620 = vmatprep.subr.bf16.mxu0 0
    %4621 = vmatpush1.bf16.msra.mxu0 %v3417
    %4622 = vmatprep.subr.bf16.mxu0 0
    %4623 = vmatpush1.bf16.msra.mxu0 %v3418
    %4624 = vmatprep.subr.bf16.mxu0 0
    %4625 = vmatpush1.bf16.msra.mxu0 %v3419
    %4626 = vmatprep.subr.bf16.mxu0 0
    %4627 = vmatpush1.bf16.msra.mxu0 %v3420
    %4628 = vmatprep.subr.bf16.mxu0 0
    %4629 = vmatpush1.bf16.msra.mxu0 %v3421
    %4630 = vmatprep.mubr.bf16.mxu0 %v166
    %4631 = vmatmul.mubr.bf16.gmra.mrb[0].mxu0 %v165
    %v4632 = vpop.f32.mrb[0].mxu0
    %v4633 = vadd.f32 %v4593, %v4632
    %v4634 = vpop.f32.mrb[0].mxu0
    %v4635 = vpop.f32.mrb[0].mxu0
    %v4636 = vpop.f32.mrb[0].mxu0
    %4637 = vdwg.mxu0
    %4638 = vmatprep.subr.bf16.mxu0 0
    %4639 = vmatpush1.bf16.msra.mxu0 %v3422
    %4640 = vmatprep.subr.bf16.mxu0 0
    %4641 = vmatpush1.bf16.msra.mxu0 %v3423
    %4642 = vmatprep.subr.bf16.mxu0 0
    %4643 = vmatpush1.bf16.msra.mxu0 %v3424
    %4644 = vmatprep.subr.bf16.mxu0 0
    %4645 = vmatpush1.bf16.msra.mxu0 %v3425
    %4646 = vmatprep.subr.bf16.mxu0 0
    %4647 = vmatpush1.bf16.msra.mxu0 %v3426
    %4648 = vmatprep.subr.bf16.mxu0 0
    %4649 = vmatpush1.bf16.msra.mxu0 %v3427
    %4650 = vmatprep.subr.bf16.mxu0 0
    %4651 = vmatpush1.bf16.msra.mxu0 %v3428
    %4652 = vmatprep.subr.bf16.mxu0 0
    %4653 = vmatpush1.bf16.msra.mxu0 %v3429
    %4654 = vmatprep.subr.bf16.mxu0 0
    %4655 = vmatpush1.bf16.msra.mxu0 %v3430
    %4656 = vmatprep.subr.bf16.mxu0 0
    %4657 = vmatpush1.bf16.msra.mxu0 %v3431
    %4658 = vmatprep.subr.bf16.mxu0 0
    %4659 = vmatpush1.bf16.msra.mxu0 %v3432
    %4660 = vmatprep.subr.bf16.mxu0 0
    %4661 = vmatpush1.bf16.msra.mxu0 %v3433
    %4662 = vmatprep.subr.bf16.mxu0 0
    %4663 = vmatpush1.bf16.msra.mxu0 %v3434
    %4664 = vmatprep.subr.bf16.mxu0 0
    %4665 = vmatpush1.bf16.msra.mxu0 %v3435
    %4666 = vmatprep.subr.bf16.mxu0 0
    %4667 = vmatpush1.bf16.msra.mxu0 %v3436
    %4668 = vmatprep.subr.bf16.mxu0 0
    %4669 = vmatpush1.bf16.msra.mxu0 %v3437
    %4670 = vmatprep.mubr.bf16.mxu0 %v168
    %4671 = vmatmul.mubr.bf16.gmra.mrb[0].mxu0 %v167
    %v4672 = vpop.f32.mrb[0].mxu0
    %v4673 = vadd.f32 %v4633, %v4672
    %v4674 = vpop.f32.mrb[0].mxu0
    %v4675 = vpop.f32.mrb[0].mxu0
    %v4676 = vpop.f32.mrb[0].mxu0
    %4677 = vdwg.mxu0
    %4678 = vmatprep.subr.bf16.mxu0 0
    %4679 = vmatpush1.bf16.msra.mxu0 %v3438
    %4680 = vmatprep.subr.bf16.mxu0 0
    %4681 = vmatpush1.bf16.msra.mxu0 %v3439
    %4682 = vmatprep.subr.bf16.mxu0 0
    %4683 = vmatpush1.bf16.msra.mxu0 %v3440
    %4684 = vmatprep.subr.bf16.mxu0 0
    %4685 = vmatpush1.bf16.msra.mxu0 %v3441
    %4686 = vmatprep.subr.bf16.mxu0 0
    %4687 = vmatpush1.bf16.msra.mxu0 %v3442
    %4688 = vmatprep.subr.bf16.mxu0 0
    %4689 = vmatpush1.bf16.msra.mxu0 %v3443
    %4690 = vmatprep.subr.bf16.mxu0 0
    %4691 = vmatpush1.bf16.msra.mxu0 %v3444
    %4692 = vmatprep.subr.bf16.mxu0 0
    %4693 = vmatpush1.bf16.msra.mxu0 %v3445
    %4694 = vmatprep.subr.bf16.mxu0 0
    %4695 = vmatpush1.bf16.msra.mxu0 %v3446
    %4696 = vmatprep.subr.bf16.mxu0 0
    %4697 = vmatpush1.bf16.msra.mxu0 %v3447
    %4698 = vmatprep.subr.bf16.mxu0 0
    %4699 = vmatpush1.bf16.msra.mxu0 %v3448
    %4700 = vmatprep.subr.bf16.mxu0 0
    %4701 = vmatpush1.bf16.msra.mxu0 %v3449
    %4702 = vmatprep.subr.bf16.mxu0 0
    %4703 = vmatpush1.bf16.msra.mxu0 %v3450
    %4704 = vmatprep.subr.bf16.mxu0 0
    %4705 = vmatpush1.bf16.msra.mxu0 %v3451
    %4706 = vmatprep.subr.bf16.mxu0 0
    %4707 = vmatpush1.bf16.msra.mxu0 %v3452
    %4708 = vmatprep.subr.bf16.mxu0 0
    %4709 = vmatpush1.bf16.msra.mxu0 %v3453
    %4710 = vmatprep.mubr.bf16.mxu0 %v170
    %4711 = vmatmul.mubr.bf16.gmra.mrb[0].mxu0 %v169
    %v4712 = vpop.f32.mrb[0].mxu0
    %v4713 = vadd.f32 %v4673, %v4712
    %v4714 = vpop.f32.mrb[0].mxu0
    %v4715 = vpop.f32.mrb[0].mxu0
    %v4716 = vpop.f32.mrb[0].mxu0
    %4717 = vdwg.mxu0
    %4718 = vmatprep.subr.bf16.mxu0 0
    %4719 = vmatpush1.bf16.msra.mxu0 %v3454
    %4720 = vmatprep.subr.bf16.mxu0 0
    %4721 = vmatpush1.bf16.msra.mxu0 %v3455
    %4722 = vmatprep.subr.bf16.mxu0 0
    %4723 = vmatpush1.bf16.msra.mxu0 %v3456
    %4724 = vmatprep.subr.bf16.mxu0 0
    %4725 = vmatpush1.bf16.msra.mxu0 %v3457
    %4726 = vmatprep.subr.bf16.mxu0 0
    %4727 = vmatpush1.bf16.msra.mxu0 %v3458
    %4728 = vmatprep.subr.bf16.mxu0 0
    %4729 = vmatpush1.bf16.msra.mxu0 %v3459
    %4730 = vmatprep.subr.bf16.mxu0 0
    %4731 = vmatpush1.bf16.msra.mxu0 %v3460
    %4732 = vmatprep.subr.bf16.mxu0 0
    %4733 = vmatpush1.bf16.msra.mxu0 %v3461
    %4734 = vmatprep.subr.bf16.mxu0 0
    %4735 = vmatpush1.bf16.msra.mxu0 %v3462
    %4736 = vmatprep.subr.bf16.mxu0 0
    %4737 = vmatpush1.bf16.msra.mxu0 %v3463
    %4738 = vmatprep.subr.bf16.mxu0 0
    %4739 = vmatpush1.bf16.msra.mxu0 %v3464
    %4740 = vmatprep.subr.bf16.mxu0 0
    %4741 = vmatpush1.bf16.msra.mxu0 %v3465
    %4742 = vmatprep.subr.bf16.mxu0 0
    %4743 = vmatpush1.bf16.msra.mxu0 %v3466
    %4744 = vmatprep.subr.bf16.mxu0 0
    %4745 = vmatpush1.bf16.msra.mxu0 %v3467
    %4746 = vmatprep.subr.bf16.mxu0 0
    %4747 = vmatpush1.bf16.msra.mxu0 %v3468
    %4748 = vmatprep.subr.bf16.mxu0 0
    %4749 = vmatpush1.bf16.msra.mxu0 %v3469
    %4750 = vmatprep.mubr.bf16.mxu0 %v172
    %4751 = vmatmul.mubr.bf16.gmra.mrb[0].mxu0 %v171
    %v4752 = vpop.f32.mrb[0].mxu0
    %v4753 = vadd.f32 %v4713, %v4752
    %v4754 = vpop.f32.mrb[0].mxu0
    %v4755 = vpop.f32.mrb[0].mxu0
    %v4756 = vpop.f32.mrb[0].mxu0
    %4757 = vdwg.mxu0
    %4758 = vmatprep.subr.bf16.mxu0 0
    %4759 = vmatpush1.bf16.msra.mxu0 %v3470
    %4760 = vmatprep.subr.bf16.mxu0 0
    %4761 = vmatpush1.bf16.msra.mxu0 %v3471
    %4762 = vmatprep.subr.bf16.mxu0 0
    %4763 = vmatpush1.bf16.msra.mxu0 %v3472
    %4764 = vmatprep.subr.bf16.mxu0 0
    %4765 = vmatpush1.bf16.msra.mxu0 %v3473
    %4766 = vmatprep.subr.bf16.mxu0 0
    %4767 = vmatpush1.bf16.msra.mxu0 %v3474
    %4768 = vmatprep.subr.bf16.mxu0 0
    %4769 = vmatpush1.bf16.msra.mxu0 %v3475
    %4770 = vmatprep.subr.bf16.mxu0 0
    %4771 = vmatpush1.bf16.msra.mxu0 %v3476
    %4772 = vmatprep.subr.bf16.mxu0 0
    %4773 = vmatpush1.bf16.msra.mxu0 %v3477
    %4774 = vmatprep.subr.bf16.mxu0 0
    %4775 = vmatpush1.bf16.msra.mxu0 %v3478
    %4776 = vmatprep.subr.bf16.mxu0 0
    %4777 = vmatpush1.bf16.msra.mxu0 %v3479
    %4778 = vmatprep.subr.bf16.mxu0 0
    %4779 = vmatpush1.bf16.msra.mxu0 %v3480
    %4780 = vmatprep.subr.bf16.mxu0 0
    %4781 = vmatpush1.bf16.msra.mxu0 %v3481
    %4782 = vmatprep.subr.bf16.mxu0 0
    %4783 = vmatpush1.bf16.msra.mxu0 %v3482
    %4784 = vmatprep.subr.bf16.mxu0 0
    %4785 = vmatpush1.bf16.msra.mxu0 %v3483
    %4786 = vmatprep.subr.bf16.mxu0 0
    %4787 = vmatpush1.bf16.msra.mxu0 %v3484
    %4788 = vmatprep.subr.bf16.mxu0 0
    %4789 = vmatpush1.bf16.msra.mxu0 %v3485
    %4790 = vmatprep.mubr.bf16.mxu0 %v174
    %4791 = vmatmul.mubr.bf16.gmra.mrb[0].mxu0 %v173
    %v4792 = vpop.f32.mrb[0].mxu0
    %v4793 = vadd.f32 %v4753, %v4792
    %v4794 = vpop.f32.mrb[0].mxu0
    %v4795 = vpop.f32.mrb[0].mxu0
    %v4796 = vpop.f32.mrb[0].mxu0
    %4797 = vdwg.mxu0
    %4798 = vmatprep.subr.bf16.mxu0 0
    %4799 = vmatpush1.bf16.msra.mxu0 %v3486
    %4800 = vmatprep.subr.bf16.mxu0 0
    %4801 = vmatpush1.bf16.msra.mxu0 %v3487
    %4802 = vmatprep.subr.bf16.mxu0 0
    %4803 = vmatpush1.bf16.msra.mxu0 %v3488
    %4804 = vmatprep.subr.bf16.mxu0 0
    %4805 = vmatpush1.bf16.msra.mxu0 %v3489
    %4806 = vmatprep.subr.bf16.mxu0 0
    %4807 = vmatpush1.bf16.msra.mxu0 %v3490
    %4808 = vmatprep.subr.bf16.mxu0 0
    %4809 = vmatpush1.bf16.msra.mxu0 %v3491
    %4810 = vmatprep.subr.bf16.mxu0 0
    %4811 = vmatpush1.bf16.msra.mxu0 %v3492
    %4812 = vmatprep.subr.bf16.mxu0 0
    %4813 = vmatpush1.bf16.msra.mxu0 %v3493
    %4814 = vmatprep.subr.bf16.mxu0 0
    %4815 = vmatpush1.bf16.msra.mxu0 %v3494
    %4816 = vmatprep.subr.bf16.mxu0 0
    %4817 = vmatpush1.bf16.msra.mxu0 %v3495
    %4818 = vmatprep.subr.bf16.mxu0 0
    %4819 = vmatpush1.bf16.msra.mxu0 %v3496
    %4820 = vmatprep.subr.bf16.mxu0 0
    %4821 = vmatpush1.bf16.msra.mxu0 %v3497
    %4822 = vmatprep.subr.bf16.mxu0 0
    %4823 = vmatpush1.bf16.msra.mxu0 %v3498
    %4824 = vmatprep.subr.bf16.mxu0 0
    %4825 = vmatpush1.bf16.msra.mxu0 %v3499
    %4826 = vmatprep.subr.bf16.mxu0 0
    %4827 = vmatpush1.bf16.msra.mxu0 %v3500
    %4828 = vmatprep.subr.bf16.mxu0 0
    %4829 = vmatpush1.bf16.msra.mxu0 %v3501
    %4830 = vmatprep.mubr.bf16.mxu0 %v176
    %4831 = vmatmul.mubr.bf16.gmra.mrb[0].mxu0 %v175
    %v4832 = vpop.f32.mrb[0].mxu0
    %v4833 = vadd.f32 %v4793, %v4832
    %v4834 = vpop.f32.mrb[0].mxu0
    %v4835 = vpop.f32.mrb[0].mxu0
    %v4836 = vpop.f32.mrb[0].mxu0
    %4837 = vdwg.mxu0
    %4838 = vmatprep.subr.bf16.mxu0 0
    %4839 = vmatpush1.bf16.msra.mxu0 %v3502
    %4840 = vmatprep.subr.bf16.mxu0 0
    %4841 = vmatpush1.bf16.msra.mxu0 %v3503
    %4842 = vmatprep.subr.bf16.mxu0 0
    %4843 = vmatpush1.bf16.msra.mxu0 %v3504
    %4844 = vmatprep.subr.bf16.mxu0 0
    %4845 = vmatpush1.bf16.msra.mxu0 %v3505
    %4846 = vmatprep.subr.bf16.mxu0 0
    %4847 = vmatpush1.bf16.msra.mxu0 %v3506
    %4848 = vmatprep.subr.bf16.mxu0 0
    %4849 = vmatpush1.bf16.msra.mxu0 %v3507
    %4850 = vmatprep.subr.bf16.mxu0 0
    %4851 = vmatpush1.bf16.msra.mxu0 %v3508
    %4852 = vmatprep.subr.bf16.mxu0 0
    %4853 = vmatpush1.bf16.msra.mxu0 %v3509
    %4854 = vmatprep.subr.bf16.mxu0 0
    %4855 = vmatpush1.bf16.msra.mxu0 %v3510
    %4856 = vmatprep.subr.bf16.mxu0 0
    %4857 = vmatpush1.bf16.msra.mxu0 %v3511
    %4858 = vmatprep.subr.bf16.mxu0 0
    %4859 = vmatpush1.bf16.msra.mxu0 %v3512
    %4860 = vmatprep.subr.bf16.mxu0 0
    %4861 = vmatpush1.bf16.msra.mxu0 %v3513
    %4862 = vmatprep.subr.bf16.mxu0 0
    %4863 = vmatpush1.bf16.msra.mxu0 %v3514
    %4864 = vmatprep.subr.bf16.mxu0 0
    %4865 = vmatpush1.bf16.msra.mxu0 %v3515
    %4866 = vmatprep.subr.bf16.mxu0 0
    %4867 = vmatpush1.bf16.msra.mxu0 %v3516
    %4868 = vmatprep.subr.bf16.mxu0 0
    %4869 = vmatpush1.bf16.msra.mxu0 %v3517
    %4870 = vmatprep.mubr.bf16.mxu0 %v178
    %4871 = vmatmul.mubr.bf16.gmra.mrb[0].mxu0 %v177
    %v4872 = vpop.f32.mrb[0].mxu0
    %v4873 = vadd.f32 %v4833, %v4872
    %v4874 = vpop.f32.mrb[0].mxu0
    %v4875 = vpop.f32.mrb[0].mxu0
    %v4876 = vpop.f32.mrb[0].mxu0
    %4877 = vdwg.mxu0
    %4878 = vmatprep.subr.bf16.mxu0 0
    %4879 = vmatpush1.bf16.msra.mxu0 %v3518
    %4880 = vmatprep.subr.bf16.mxu0 0
    %4881 = vmatpush1.bf16.msra.mxu0 %v3519
    %4882 = vmatprep.subr.bf16.mxu0 0
    %4883 = vmatpush1.bf16.msra.mxu0 %v3520
    %4884 = vmatprep.subr.bf16.mxu0 0
    %4885 = vmatpush1.bf16.msra.mxu0 %v3521
    %4886 = vmatprep.subr.bf16.mxu0 0
    %4887 = vmatpush1.bf16.msra.mxu0 %v3522
    %4888 = vmatprep.subr.bf16.mxu0 0
    %4889 = vmatpush1.bf16.msra.mxu0 %v3523
    %4890 = vmatprep.subr.bf16.mxu0 0
    %4891 = vmatpush1.bf16.msra.mxu0 %v3524
    %4892 = vmatprep.subr.bf16.mxu0 0
    %4893 = vmatpush1.bf16.msra.mxu0 %v3525
    %4894 = vmatprep.subr.bf16.mxu0 0
    %4895 = vmatpush1.bf16.msra.mxu0 %v3526
    %4896 = vmatprep.subr.bf16.mxu0 0
    %4897 = vmatpush1.bf16.msra.mxu0 %v3527
    %4898 = vmatprep.subr.bf16.mxu0 0
    %4899 = vmatpush1.bf16.msra.mxu0 %v3528
    %4900 = vmatprep.subr.bf16.mxu0 0
    %4901 = vmatpush1.bf16.msra.mxu0 %v3529
    %4902 = vmatprep.subr.bf16.mxu0 0
    %4903 = vmatpush1.bf16.msra.mxu0 %v3530
    %4904 = vmatprep.subr.bf16.mxu0 0
    %4905 = vmatpush1.bf16.msra.mxu0 %v3531
    %4906 = vmatprep.subr.bf16.mxu0 0
    %4907 = vmatpush1.bf16.msra.mxu0 %v3532
    %4908 = vmatprep.subr.bf16.mxu0 0
    %4909 = vmatpush1.bf16.msra.mxu0 %v3533
    %4910 = vmatprep.mubr.bf16.mxu0 %v180
    %4911 = vmatmul.mubr.bf16.gmra.mrb[0].mxu0 %v179
    %v4912 = vpop.f32.mrb[0].mxu0
    %v4913 = vadd.f32 %v4873, %v4912
    %v4914 = vpop.f32.mrb[0].mxu0
    %v4915 = vpop.f32.mrb[0].mxu0
    %v4916 = vpop.f32.mrb[0].mxu0
    %4917 = vdwg.mxu0
    %4918 = vmatprep.subr.bf16.mxu0 0
    %4919 = vmatpush1.bf16.msra.mxu0 %v3534
    %4920 = vmatprep.subr.bf16.mxu0 0
    %4921 = vmatpush1.bf16.msra.mxu0 %v3535
    %4922 = vmatprep.subr.bf16.mxu0 0
    %4923 = vmatpush1.bf16.msra.mxu0 %v3536
    %4924 = vmatprep.subr.bf16.mxu0 0
    %4925 = vmatpush1.bf16.msra.mxu0 %v3537
    %4926 = vmatprep.subr.bf16.mxu0 0
    %4927 = vmatpush1.bf16.msra.mxu0 %v3538
    %4928 = vmatprep.subr.bf16.mxu0 0
    %4929 = vmatpush1.bf16.msra.mxu0 %v3539
    %4930 = vmatprep.subr.bf16.mxu0 0
    %4931 = vmatpush1.bf16.msra.mxu0 %v3540
    %4932 = vmatprep.subr.bf16.mxu0 0
    %4933 = vmatpush1.bf16.msra.mxu0 %v3541
    %4934 = vmatprep.subr.bf16.mxu0 0
    %4935 = vmatpush1.bf16.msra.mxu0 %v3542
    %4936 = vmatprep.subr.bf16.mxu0 0
    %4937 = vmatpush1.bf16.msra.mxu0 %v3543
    %4938 = vmatprep.subr.bf16.mxu0 0
    %4939 = vmatpush1.bf16.msra.mxu0 %v3544
    %4940 = vmatprep.subr.bf16.mxu0 0
    %4941 = vmatpush1.bf16.msra.mxu0 %v3545
    %4942 = vmatprep.subr.bf16.mxu0 0
    %4943 = vmatpush1.bf16.msra.mxu0 %v3546
    %4944 = vmatprep.subr.bf16.mxu0 0
    %4945 = vmatpush1.bf16.msra.mxu0 %v3547
    %4946 = vmatprep.subr.bf16.mxu0 0
    %4947 = vmatpush1.bf16.msra.mxu0 %v3548
    %4948 = vmatprep.subr.bf16.mxu0 0
    %4949 = vmatpush1.bf16.msra.mxu0 %v3549
    %4950 = vmatprep.mubr.bf16.mxu0 %v182
    %4951 = vmatmul.mubr.bf16.gmra.mrb[0].mxu0 %v181
    %v4952 = vpop.f32.mrb[0].mxu0
    %v4953 = vadd.f32 %v4913, %v4952
    %v4954 = vpop.f32.mrb[0].mxu0
    %v4955 = vpop.f32.mrb[0].mxu0
    %v4956 = vpop.f32.mrb[0].mxu0
    %4957 = vdwg.mxu0
    %4958 = vmatprep.subr.bf16.mxu0 0
    %4959 = vmatpush1.bf16.msra.mxu0 %v3550
    %4960 = vmatprep.subr.bf16.mxu0 0
    %4961 = vmatpush1.bf16.msra.mxu0 %v3551
    %4962 = vmatprep.subr.bf16.mxu0 0
    %4963 = vmatpush1.bf16.msra.mxu0 %v3552
    %4964 = vmatprep.subr.bf16.mxu0 0
    %4965 = vmatpush1.bf16.msra.mxu0 %v3553
    %4966 = vmatprep.subr.bf16.mxu0 0
    %4967 = vmatpush1.bf16.msra.mxu0 %v3554
    %4968 = vmatprep.subr.bf16.mxu0 0
    %4969 = vmatpush1.bf16.msra.mxu0 %v3555
    %4970 = vmatprep.subr.bf16.mxu0 0
    %4971 = vmatpush1.bf16.msra.mxu0 %v3556
    %4972 = vmatprep.subr.bf16.mxu0 0
    %4973 = vmatpush1.bf16.msra.mxu0 %v3557
    %4974 = vmatprep.subr.bf16.mxu0 0
    %4975 = vmatpush1.bf16.msra.mxu0 %v3558
    %4976 = vmatprep.subr.bf16.mxu0 0
    %4977 = vmatpush1.bf16.msra.mxu0 %v3559
    %4978 = vmatprep.subr.bf16.mxu0 0
    %4979 = vmatpush1.bf16.msra.mxu0 %v3560
    %4980 = vmatprep.subr.bf16.mxu0 0
    %4981 = vmatpush1.bf16.msra.mxu0 %v3561
    %4982 = vmatprep.subr.bf16.mxu0 0
    %4983 = vmatpush1.bf16.msra.mxu0 %v3562
    %4984 = vmatprep.subr.bf16.mxu0 0
    %4985 = vmatpush1.bf16.msra.mxu0 %v3563
    %4986 = vmatprep.subr.bf16.mxu0 0
    %4987 = vmatpush1.bf16.msra.mxu0 %v3564
    %4988 = vmatprep.subr.bf16.mxu0 0
    %4989 = vmatpush1.bf16.msra.mxu0 %v3565
    %4990 = vmatprep.mubr.bf16.mxu0 %v184
    %4991 = vmatmul.mubr.bf16.gmra.mrb[0].mxu0 %v183
    %v4992 = vpop.f32.mrb[0].mxu0
    %v4993 = vadd.f32 %v4953, %v4992
    %v4994 = vpop.f32.mrb[0].mxu0
    %v4995 = vpop.f32.mrb[0].mxu0
    %v4996 = vpop.f32.mrb[0].mxu0
    %4997 = vdwg.mxu0
    %4998 = vmatprep.subr.bf16.mxu0 0
    %4999 = vmatpush1.bf16.msra.mxu0 %v3566
    %5000 = vmatprep.subr.bf16.mxu0 0
    %5001 = vmatpush1.bf16.msra.mxu0 %v3567
    %5002 = vmatprep.subr.bf16.mxu0 0
    %5003 = vmatpush1.bf16.msra.mxu0 %v3568
    %5004 = vmatprep.subr.bf16.mxu0 0
    %5005 = vmatpush1.bf16.msra.mxu0 %v3569
    %5006 = vmatprep.subr.bf16.mxu0 0
    %5007 = vmatpush1.bf16.msra.mxu0 %v3570
    %5008 = vmatprep.subr.bf16.mxu0 0
    %5009 = vmatpush1.bf16.msra.mxu0 %v3571
    %5010 = vmatprep.subr.bf16.mxu0 0
    %5011 = vmatpush1.bf16.msra.mxu0 %v3572
    %5012 = vmatprep.subr.bf16.mxu0 0
    %5013 = vmatpush1.bf16.msra.mxu0 %v3573
    %5014 = vmatprep.subr.bf16.mxu0 0
    %5015 = vmatpush1.bf16.msra.mxu0 %v3574
    %5016 = vmatprep.subr.bf16.mxu0 0
    %5017 = vmatpush1.bf16.msra.mxu0 %v3575
    %5018 = vmatprep.subr.bf16.mxu0 0
    %5019 = vmatpush1.bf16.msra.mxu0 %v3576
    %5020 = vmatprep.subr.bf16.mxu0 0
    %5021 = vmatpush1.bf16.msra.mxu0 %v3577
    %5022 = vmatprep.subr.bf16.mxu0 0
    %5023 = vmatpush1.bf16.msra.mxu0 %v3578
    %5024 = vmatprep.subr.bf16.mxu0 0
    %5025 = vmatpush1.bf16.msra.mxu0 %v3579
    %5026 = vmatprep.subr.bf16.mxu0 0
    %5027 = vmatpush1.bf16.msra.mxu0 %v3580
    %5028 = vmatprep.subr.bf16.mxu0 0
    %5029 = vmatpush1.bf16.msra.mxu0 %v3581
    %5030 = vmatprep.mubr.bf16.mxu0 %v186
    %5031 = vmatmul.mubr.bf16.gmra.mrb[0].mxu0 %v185
    %v5032 = vpop.f32.mrb[0].mxu0
    %v5033 = vadd.f32 %v4993, %v5032
    %v5034 = vpop.f32.mrb[0].mxu0
    %v5035 = vpop.f32.mrb[0].mxu0
    %v5036 = vpop.f32.mrb[0].mxu0
    %5037 = vdwg.mxu0
    %5038 = vmatprep.subr.bf16.mxu0 0
    %5039 = vmatpush1.bf16.msra.mxu0 %v3582
    %5040 = vmatprep.subr.bf16.mxu0 0
    %5041 = vmatpush1.bf16.msra.mxu0 %v3583
    %5042 = vmatprep.subr.bf16.mxu0 0
    %5043 = vmatpush1.bf16.msra.mxu0 %v3584
    %5044 = vmatprep.subr.bf16.mxu0 0
    %5045 = vmatpush1.bf16.msra.mxu0 %v3585
    %5046 = vmatprep.subr.bf16.mxu0 0
    %5047 = vmatpush1.bf16.msra.mxu0 %v3586
    %5048 = vmatprep.subr.bf16.mxu0 0
    %5049 = vmatpush1.bf16.msra.mxu0 %v3587
    %5050 = vmatprep.subr.bf16.mxu0 0
    %5051 = vmatpush1.bf16.msra.mxu0 %v3588
    %5052 = vmatprep.subr.bf16.mxu0 0
    %5053 = vmatpush1.bf16.msra.mxu0 %v3589
    %5054 = vmatprep.subr.bf16.mxu0 0
    %5055 = vmatpush1.bf16.msra.mxu0 %v3590
    %5056 = vmatprep.subr.bf16.mxu0 0
    %5057 = vmatpush1.bf16.msra.mxu0 %v3591
    %5058 = vmatprep.subr.bf16.mxu0 0
    %5059 = vmatpush1.bf16.msra.mxu0 %v3592
    %5060 = vmatprep.subr.bf16.mxu0 0
    %5061 = vmatpush1.bf16.msra.mxu0 %v3593
    %5062 = vmatprep.subr.bf16.mxu0 0
    %5063 = vmatpush1.bf16.msra.mxu0 %v3594
    %5064 = vmatprep.subr.bf16.mxu0 0
    %5065 = vmatpush1.bf16.msra.mxu0 %v3595
    %5066 = vmatprep.subr.bf16.mxu0 0
    %5067 = vmatpush1.bf16.msra.mxu0 %v3596
    %5068 = vmatprep.subr.bf16.mxu0 0
    %5069 = vmatpush1.bf16.msra.mxu0 %v3597
    %5070 = vmatprep.mubr.bf16.mxu0 %v188
    %5071 = vmatmul.mubr.bf16.gmra.mrb[0].mxu0 %v187
    %v5072 = vpop.f32.mrb[0].mxu0
    %v5073 = vadd.f32 %v5033, %v5072
    %v5074 = vpop.f32.mrb[0].mxu0
    %v5075 = vpop.f32.mrb[0].mxu0
    %v5076 = vpop.f32.mrb[0].mxu0
    %5077 = vdwg.mxu0
    %5078 = vmatprep.subr.bf16.mxu0 0
    %5079 = vmatpush1.bf16.msra.mxu0 %v3598
    %5080 = vmatprep.subr.bf16.mxu0 0
    %5081 = vmatpush1.bf16.msra.mxu0 %v3599
    %5082 = vmatprep.subr.bf16.mxu0 0
    %5083 = vmatpush1.bf16.msra.mxu0 %v3600
    %5084 = vmatprep.subr.bf16.mxu0 0
    %5085 = vmatpush1.bf16.msra.mxu0 %v3601
    %5086 = vmatprep.subr.bf16.mxu0 0
    %5087 = vmatpush1.bf16.msra.mxu0 %v3602
    %5088 = vmatprep.subr.bf16.mxu0 0
    %5089 = vmatpush1.bf16.msra.mxu0 %v3603
    %5090 = vmatprep.subr.bf16.mxu0 0
    %5091 = vmatpush1.bf16.msra.mxu0 %v3604
    %5092 = vmatprep.subr.bf16.mxu0 0
    %5093 = vmatpush1.bf16.msra.mxu0 %v3605
    %5094 = vmatprep.subr.bf16.mxu0 0
    %5095 = vmatpush1.bf16.msra.mxu0 %v3606
    %5096 = vmatprep.subr.bf16.mxu0 0
    %5097 = vmatpush1.bf16.msra.mxu0 %v3607
    %5098 = vmatprep.subr.bf16.mxu0 0
    %5099 = vmatpush1.bf16.msra.mxu0 %v3608
    %5100 = vmatprep.subr.bf16.mxu0 0
    %5101 = vmatpush1.bf16.msra.mxu0 %v3609
    %5102 = vmatprep.subr.bf16.mxu0 0
    %5103 = vmatpush1.bf16.msra.mxu0 %v3610
    %5104 = vmatprep.subr.bf16.mxu0 0
    %5105 = vmatpush1.bf16.msra.mxu0 %v3611
    %5106 = vmatprep.subr.bf16.mxu0 0
    %5107 = vmatpush1.bf16.msra.mxu0 %v3612
    %5108 = vmatprep.subr.bf16.mxu0 0
    %5109 = vmatpush1.bf16.msra.mxu0 %v3613
    %5110 = vmatprep.mubr.bf16.mxu0 %v190
    %5111 = vmatmul.mubr.bf16.gmra.mrb[0].mxu0 %v189
    %v5112 = vpop.f32.mrb[0].mxu0
    %v5113 = vadd.f32 %v5073, %v5112
    %v5114 = vpop.f32.mrb[0].mxu0
    %v5115 = vpop.f32.mrb[0].mxu0
    %v5116 = vpop.f32.mrb[0].mxu0
    %5117 = vdwg.mxu0
    %5118 = vmatprep.subr.bf16.mxu0 0
    %5119 = vmatpush1.bf16.msra.mxu0 %v3614
    %5120 = vmatprep.subr.bf16.mxu0 0
    %5121 = vmatpush1.bf16.msra.mxu0 %v3615
    %5122 = vmatprep.subr.bf16.mxu0 0
    %5123 = vmatpush1.bf16.msra.mxu0 %v3616
    %5124 = vmatprep.subr.bf16.mxu0 0
    %5125 = vmatpush1.bf16.msra.mxu0 %v3617
    %5126 = vmatprep.subr.bf16.mxu0 0
    %5127 = vmatpush1.bf16.msra.mxu0 %v3618
    %5128 = vmatprep.subr.bf16.mxu0 0
    %5129 = vmatpush1.bf16.msra.mxu0 %v3619
    %5130 = vmatprep.subr.bf16.mxu0 0
    %5131 = vmatpush1.bf16.msra.mxu0 %v3620
    %5132 = vmatprep.subr.bf16.mxu0 0
    %5133 = vmatpush1.bf16.msra.mxu0 %v3621
    %5134 = vmatprep.subr.bf16.mxu0 0
    %5135 = vmatpush1.bf16.msra.mxu0 %v3622
    %5136 = vmatprep.subr.bf16.mxu0 0
    %5137 = vmatpush1.bf16.msra.mxu0 %v3623
    %5138 = vmatprep.subr.bf16.mxu0 0
    %5139 = vmatpush1.bf16.msra.mxu0 %v3624
    %5140 = vmatprep.subr.bf16.mxu0 0
    %5141 = vmatpush1.bf16.msra.mxu0 %v3625
    %5142 = vmatprep.subr.bf16.mxu0 0
    %5143 = vmatpush1.bf16.msra.mxu0 %v3626
    %5144 = vmatprep.subr.bf16.mxu0 0
    %5145 = vmatpush1.bf16.msra.mxu0 %v3627
    %5146 = vmatprep.subr.bf16.mxu0 0
    %5147 = vmatpush1.bf16.msra.mxu0 %v3628
    %5148 = vmatprep.subr.bf16.mxu0 0
    %5149 = vmatpush1.bf16.msra.mxu0 %v3629
    %5150 = vmatprep.mubr.bf16.mxu0 %v192
    %5151 = vmatmul.mubr.bf16.gmra.mrb[0].mxu0 %v191
    %v5152 = vpop.f32.mrb[0].mxu0
    %v5153 = vadd.f32 %v5113, %v5152
    %v5154 = vpop.f32.mrb[0].mxu0
    %v5155 = vpop.f32.mrb[0].mxu0
    %v5156 = vpop.f32.mrb[0].mxu0
    %5157 = vdwg.mxu0
    %5158 = vmatprep.subr.bf16.mxu0 0
    %5159 = vmatpush1.bf16.msra.mxu0 %v3630
    %5160 = vmatprep.subr.bf16.mxu0 0
    %5161 = vmatpush1.bf16.msra.mxu0 %v3631
    %5162 = vmatprep.subr.bf16.mxu0 0
    %5163 = vmatpush1.bf16.msra.mxu0 %v3632
    %5164 = vmatprep.subr.bf16.mxu0 0
    %5165 = vmatpush1.bf16.msra.mxu0 %v3633
    %5166 = vmatprep.subr.bf16.mxu0 0
    %5167 = vmatpush1.bf16.msra.mxu0 %v3634
    %5168 = vmatprep.subr.bf16.mxu0 0
    %5169 = vmatpush1.bf16.msra.mxu0 %v3635
    %5170 = vmatprep.subr.bf16.mxu0 0
    %5171 = vmatpush1.bf16.msra.mxu0 %v3636
    %5172 = vmatprep.subr.bf16.mxu0 0
    %5173 = vmatpush1.bf16.msra.mxu0 %v3637
    %5174 = vmatprep.subr.bf16.mxu0 0
    %5175 = vmatpush1.bf16.msra.mxu0 %v3638
    %5176 = vmatprep.subr.bf16.mxu0 0
    %5177 = vmatpush1.bf16.msra.mxu0 %v3639
    %5178 = vmatprep.subr.bf16.mxu0 0
    %5179 = vmatpush1.bf16.msra.mxu0 %v3640
    %5180 = vmatprep.subr.bf16.mxu0 0
    %5181 = vmatpush1.bf16.msra.mxu0 %v3641
    %5182 = vmatprep.subr.bf16.mxu0 0
    %5183 = vmatpush1.bf16.msra.mxu0 %v3642
    %5184 = vmatprep.subr.bf16.mxu0 0
    %5185 = vmatpush1.bf16.msra.mxu0 %v3643
    %5186 = vmatprep.subr.bf16.mxu0 0
    %5187 = vmatpush1.bf16.msra.mxu0 %v3644
    %5188 = vmatprep.subr.bf16.mxu0 0
    %5189 = vmatpush1.bf16.msra.mxu0 %v3645
    %5190 = vmatprep.mubr.bf16.mxu0 %v194
    %5191 = vmatmul.mubr.bf16.gmra.mrb[0].mxu0 %v193
    %v5192 = vpop.f32.mrb[0].mxu0
    %v5193 = vadd.f32 %v5153, %v5192
    %v5194 = vpop.f32.mrb[0].mxu0
    %v5195 = vpop.f32.mrb[0].mxu0
    %v5196 = vpop.f32.mrb[0].mxu0
    %5197 = vdwg.mxu0
    %5198 = vmatprep.subr.bf16.mxu0 0
    %5199 = vmatpush1.bf16.msra.mxu0 %v3646
    %5200 = vmatprep.subr.bf16.mxu0 0
    %5201 = vmatpush1.bf16.msra.mxu0 %v3647
    %5202 = vmatprep.subr.bf16.mxu0 0
    %5203 = vmatpush1.bf16.msra.mxu0 %v3648
    %5204 = vmatprep.subr.bf16.mxu0 0
    %5205 = vmatpush1.bf16.msra.mxu0 %v3649
    %5206 = vmatprep.subr.bf16.mxu0 0
    %5207 = vmatpush1.bf16.msra.mxu0 %v3650
    %5208 = vmatprep.subr.bf16.mxu0 0
    %5209 = vmatpush1.bf16.msra.mxu0 %v3651
    %5210 = vmatprep.subr.bf16.mxu0 0
    %5211 = vmatpush1.bf16.msra.mxu0 %v3652
    %5212 = vmatprep.subr.bf16.mxu0 0
    %5213 = vmatpush1.bf16.msra.mxu0 %v3653
    %5214 = vmatprep.subr.bf16.mxu0 0
    %5215 = vmatpush1.bf16.msra.mxu0 %v3654
    %5216 = vmatprep.subr.bf16.mxu0 0
    %5217 = vmatpush1.bf16.msra.mxu0 %v3655
    %5218 = vmatprep.subr.bf16.mxu0 0
    %5219 = vmatpush1.bf16.msra.mxu0 %v3656
    %5220 = vmatprep.subr.bf16.mxu0 0
    %5221 = vmatpush1.bf16.msra.mxu0 %v3657
    %5222 = vmatprep.subr.bf16.mxu0 0
    %5223 = vmatpush1.bf16.msra.mxu0 %v3658
    %5224 = vmatprep.subr.bf16.mxu0 0
    %5225 = vmatpush1.bf16.msra.mxu0 %v3659
    %5226 = vmatprep.subr.bf16.mxu0 0
    %5227 = vmatpush1.bf16.msra.mxu0 %v3660
    %5228 = vmatprep.subr.bf16.mxu0 0
    %5229 = vmatpush1.bf16.msra.mxu0 %v3661
    %5230 = vmatprep.mubr.bf16.mxu0 %v196
    %5231 = vmatmul.mubr.bf16.gmra.mrb[0].mxu0 %v195
    %v5232 = vpop.f32.mrb[0].mxu0
    %v5233 = vadd.f32 %v5193, %v5232
    %v5234 = vpop.f32.mrb[0].mxu0
    %v5235 = vpop.f32.mrb[0].mxu0
    %v5236 = vpop.f32.mrb[0].mxu0
    %5237 = vdwg.mxu0
    %5238 = vmatprep.subr.bf16.mxu0 0
    %5239 = vmatpush1.bf16.msra.mxu0 %v3662
    %5240 = vmatprep.subr.bf16.mxu0 0
    %5241 = vmatpush1.bf16.msra.mxu0 %v3663
    %5242 = vmatprep.subr.bf16.mxu0 0
    %5243 = vmatpush1.bf16.msra.mxu0 %v3664
    %5244 = vmatprep.subr.bf16.mxu0 0
    %5245 = vmatpush1.bf16.msra.mxu0 %v3665
    %5246 = vmatprep.subr.bf16.mxu0 0
    %5247 = vmatpush1.bf16.msra.mxu0 %v3666
    %5248 = vmatprep.subr.bf16.mxu0 0
    %5249 = vmatpush1.bf16.msra.mxu0 %v3667
    %5250 = vmatprep.subr.bf16.mxu0 0
    %5251 = vmatpush1.bf16.msra.mxu0 %v3668
    %5252 = vmatprep.subr.bf16.mxu0 0
    %5253 = vmatpush1.bf16.msra.mxu0 %v3669
    %5254 = vmatprep.subr.bf16.mxu0 0
    %5255 = vmatpush1.bf16.msra.mxu0 %v3670
    %5256 = vmatprep.subr.bf16.mxu0 0
    %5257 = vmatpush1.bf16.msra.mxu0 %v3671
    %5258 = vmatprep.subr.bf16.mxu0 0
    %5259 = vmatpush1.bf16.msra.mxu0 %v3672
    %5260 = vmatprep.subr.bf16.mxu0 0
    %5261 = vmatpush1.bf16.msra.mxu0 %v3673
    %5262 = vmatprep.subr.bf16.mxu0 0
    %5263 = vmatpush1.bf16.msra.mxu0 %v3674
    %5264 = vmatprep.subr.bf16.mxu0 0
    %5265 = vmatpush1.bf16.msra.mxu0 %v3675
    %5266 = vmatprep.subr.bf16.mxu0 0
    %5267 = vmatpush1.bf16.msra.mxu0 %v3676
    %5268 = vmatprep.subr.bf16.mxu0 0
    %5269 = vmatpush1.bf16.msra.mxu0 %v3677
    %5270 = vmatprep.mubr.bf16.mxu0 %v198
    %5271 = vmatmul.mubr.bf16.gmra.mrb[0].mxu0 %v197
    %v5272 = vpop.f32.mrb[0].mxu0
    %v5273 = vadd.f32 %v5233, %v5272
    %v5274 = vpop.f32.mrb[0].mxu0
    %v5275 = vpop.f32.mrb[0].mxu0
    %v5276 = vpop.f32.mrb[0].mxu0
    %5277 = vdwg.mxu0
    %5278 = vmatprep.subr.bf16.mxu0 0
    %5279 = vmatpush1.bf16.msra.mxu0 %v3678
    %5280 = vmatprep.subr.bf16.mxu0 0
    %5281 = vmatpush1.bf16.msra.mxu0 %v3679
    %5282 = vmatprep.subr.bf16.mxu0 0
    %5283 = vmatpush1.bf16.msra.mxu0 %v3680
    %5284 = vmatprep.subr.bf16.mxu0 0
    %5285 = vmatpush1.bf16.msra.mxu0 %v3681
    %5286 = vmatprep.subr.bf16.mxu0 0
    %5287 = vmatpush1.bf16.msra.mxu0 %v3682
    %5288 = vmatprep.subr.bf16.mxu0 0
    %5289 = vmatpush1.bf16.msra.mxu0 %v3683
    %5290 = vmatprep.subr.bf16.mxu0 0
    %5291 = vmatpush1.bf16.msra.mxu0 %v3684
    %5292 = vmatprep.subr.bf16.mxu0 0
    %5293 = vmatpush1.bf16.msra.mxu0 %v3685
    %5294 = vmatprep.subr.bf16.mxu0 0
    %5295 = vmatpush1.bf16.msra.mxu0 %v3686
    %5296 = vmatprep.subr.bf16.mxu0 0
    %5297 = vmatpush1.bf16.msra.mxu0 %v3687
    %5298 = vmatprep.subr.bf16.mxu0 0
    %5299 = vmatpush1.bf16.msra.mxu0 %v3688
    %5300 = vmatprep.subr.bf16.mxu0 0
    %5301 = vmatpush1.bf16.msra.mxu0 %v3689
    %5302 = vmatprep.subr.bf16.mxu0 0
    %5303 = vmatpush1.bf16.msra.mxu0 %v3690
    %5304 = vmatprep.subr.bf16.mxu0 0
    %5305 = vmatpush1.bf16.msra.mxu0 %v3691
    %5306 = vmatprep.subr.bf16.mxu0 0
    %5307 = vmatpush1.bf16.msra.mxu0 %v3692
    %5308 = vmatprep.subr.bf16.mxu0 0
    %5309 = vmatpush1.bf16.msra.mxu0 %v3693
    %5310 = vmatprep.mubr.bf16.mxu0 %v200
    %5311 = vmatmul.mubr.bf16.gmra.mrb[0].mxu0 %v199
    %v5312 = vpop.f32.mrb[0].mxu0
    %v5313 = vadd.f32 %v5273, %v5312
    %v5314 = vpop.f32.mrb[0].mxu0
    %v5315 = vpop.f32.mrb[0].mxu0
    %v5316 = vpop.f32.mrb[0].mxu0
    %5317 = vdwg.mxu0
    %5318 = vmatprep.subr.bf16.mxu0 0
    %5319 = vmatpush1.bf16.msra.mxu0 %v3694
    %5320 = vmatprep.subr.bf16.mxu0 0
    %5321 = vmatpush1.bf16.msra.mxu0 %v3695
    %5322 = vmatprep.subr.bf16.mxu0 0
    %5323 = vmatpush1.bf16.msra.mxu0 %v3696
    %5324 = vmatprep.subr.bf16.mxu0 0
    %5325 = vmatpush1.bf16.msra.mxu0 %v3697
    %5326 = vmatprep.subr.bf16.mxu0 0
    %5327 = vmatpush1.bf16.msra.mxu0 %v3698
    %5328 = vmatprep.subr.bf16.mxu0 0
    %5329 = vmatpush1.bf16.msra.mxu0 %v3699
    %5330 = vmatprep.subr.bf16.mxu0 0
    %5331 = vmatpush1.bf16.msra.mxu0 %v3700
    %5332 = vmatprep.subr.bf16.mxu0 0
    %5333 = vmatpush1.bf16.msra.mxu0 %v3701
    %5334 = vmatprep.subr.bf16.mxu0 0
    %5335 = vmatpush1.bf16.msra.mxu0 %v3702
    %5336 = vmatprep.subr.bf16.mxu0 0
    %5337 = vmatpush1.bf16.msra.mxu0 %v3703
    %5338 = vmatprep.subr.bf16.mxu0 0
    %5339 = vmatpush1.bf16.msra.mxu0 %v3704
    %5340 = vmatprep.subr.bf16.mxu0 0
    %5341 = vmatpush1.bf16.msra.mxu0 %v3705
    %5342 = vmatprep.subr.bf16.mxu0 0
    %5343 = vmatpush1.bf16.msra.mxu0 %v3706
    %5344 = vmatprep.subr.bf16.mxu0 0
    %5345 = vmatpush1.bf16.msra.mxu0 %v3707
    %5346 = vmatprep.subr.bf16.mxu0 0
    %5347 = vmatpush1.bf16.msra.mxu0 %v3708
    %5348 = vmatprep.subr.bf16.mxu0 0
    %5349 = vmatpush1.bf16.msra.mxu0 %v3709
    %5350 = vmatprep.mubr.bf16.mxu0 %v202
    %5351 = vmatmul.mubr.bf16.gmra.mrb[0].mxu0 %v201
    %v5352 = vpop.f32.mrb[0].mxu0
    %v5353 = vadd.f32 %v5313, %v5352
    %v5354 = vpop.f32.mrb[0].mxu0
    %v5355 = vpop.f32.mrb[0].mxu0
    %v5356 = vpop.f32.mrb[0].mxu0
    %5357 = vdwg.mxu0
    %5358 = vmatprep.subr.bf16.mxu0 0
    %5359 = vmatpush1.bf16.msra.mxu0 %v3710
    %5360 = vmatprep.subr.bf16.mxu0 0
    %5361 = vmatpush1.bf16.msra.mxu0 %v3711
    %5362 = vmatprep.subr.bf16.mxu0 0
    %5363 = vmatpush1.bf16.msra.mxu0 %v3712
    %5364 = vmatprep.subr.bf16.mxu0 0
    %5365 = vmatpush1.bf16.msra.mxu0 %v3713
    %5366 = vmatprep.subr.bf16.mxu0 0
    %5367 = vmatpush1.bf16.msra.mxu0 %v3714
    %5368 = vmatprep.subr.bf16.mxu0 0
    %5369 = vmatpush1.bf16.msra.mxu0 %v3715
    %5370 = vmatprep.subr.bf16.mxu0 0
    %5371 = vmatpush1.bf16.msra.mxu0 %v3716
    %5372 = vmatprep.subr.bf16.mxu0 0
    %5373 = vmatpush1.bf16.msra.mxu0 %v3717
    %5374 = vmatprep.subr.bf16.mxu0 0
    %5375 = vmatpush1.bf16.msra.mxu0 %v3718
    %5376 = vmatprep.subr.bf16.mxu0 0
    %5377 = vmatpush1.bf16.msra.mxu0 %v3719
    %5378 = vmatprep.subr.bf16.mxu0 0
    %5379 = vmatpush1.bf16.msra.mxu0 %v3720
    %5380 = vmatprep.subr.bf16.mxu0 0
    %5381 = vmatpush1.bf16.msra.mxu0 %v3721
    %5382 = vmatprep.subr.bf16.mxu0 0
    %5383 = vmatpush1.bf16.msra.mxu0 %v3722
    %5384 = vmatprep.subr.bf16.mxu0 0
    %5385 = vmatpush1.bf16.msra.mxu0 %v3723
    %5386 = vmatprep.subr.bf16.mxu0 0
    %5387 = vmatpush1.bf16.msra.mxu0 %v3724
    %5388 = vmatprep.subr.bf16.mxu0 0
    %5389 = vmatpush1.bf16.msra.mxu0 %v3725
    %5390 = vmatprep.mubr.bf16.mxu0 %v204
    %5391 = vmatmul.mubr.bf16.gmra.mrb[0].mxu0 %v203
    %v5392 = vpop.f32.mrb[0].mxu0
    %v5393 = vadd.f32 %v5353, %v5392
    %v5394 = vpop.f32.mrb[0].mxu0
    %v5395 = vpop.f32.mrb[0].mxu0
    %v5396 = vpop.f32.mrb[0].mxu0
    %5397 = vdwg.mxu0
    %5398 = vmatprep.subr.bf16.mxu0 0
    %5399 = vmatpush1.bf16.msra.mxu0 %v3726
    %5400 = vmatprep.subr.bf16.mxu0 0
    %5401 = vmatpush1.bf16.msra.mxu0 %v3727
    %5402 = vmatprep.subr.bf16.mxu0 0
    %5403 = vmatpush1.bf16.msra.mxu0 %v3728
    %5404 = vmatprep.subr.bf16.mxu0 0
    %5405 = vmatpush1.bf16.msra.mxu0 %v3729
    %5406 = vmatprep.subr.bf16.mxu0 0
    %5407 = vmatpush1.bf16.msra.mxu0 %v3730
    %5408 = vmatprep.subr.bf16.mxu0 0
    %5409 = vmatpush1.bf16.msra.mxu0 %v3731
    %5410 = vmatprep.subr.bf16.mxu0 0
    %5411 = vmatpush1.bf16.msra.mxu0 %v3732
    %5412 = vmatprep.subr.bf16.mxu0 0
    %5413 = vmatpush1.bf16.msra.mxu0 %v3733
    %5414 = vmatprep.subr.bf16.mxu0 0
    %5415 = vmatpush1.bf16.msra.mxu0 %v3734
    %5416 = vmatprep.subr.bf16.mxu0 0
    %5417 = vmatpush1.bf16.msra.mxu0 %v3735
    %5418 = vmatprep.subr.bf16.mxu0 0
    %5419 = vmatpush1.bf16.msra.mxu0 %v3736
    %5420 = vmatprep.subr.bf16.mxu0 0
    %5421 = vmatpush1.bf16.msra.mxu0 %v3737
    %5422 = vmatprep.subr.bf16.mxu0 0
    %5423 = vmatpush1.bf16.msra.mxu0 %v3738
    %5424 = vmatprep.subr.bf16.mxu0 0
    %5425 = vmatpush1.bf16.msra.mxu0 %v3739
    %5426 = vmatprep.subr.bf16.mxu0 0
    %5427 = vmatpush1.bf16.msra.mxu0 %v3740
    %5428 = vmatprep.subr.bf16.mxu0 0
    %5429 = vmatpush1.bf16.msra.mxu0 %v3741
    %5430 = vmatprep.mubr.bf16.mxu0 %v206
    %5431 = vmatmul.mubr.bf16.gmra.mrb[0].mxu0 %v205
    %v5432 = vpop.f32.mrb[0].mxu0
    %v5433 = vadd.f32 %v5393, %v5432
    %v5434 = vpop.f32.mrb[0].mxu0
    %v5435 = vpop.f32.mrb[0].mxu0
    %v5436 = vpop.f32.mrb[0].mxu0
    %5437 = vdwg.mxu0
    %5438 = vmatprep.subr.bf16.mxu0 0
    %5439 = vmatpush1.bf16.msra.mxu0 %v3742
    %5440 = vmatprep.subr.bf16.mxu0 0
    %5441 = vmatpush1.bf16.msra.mxu0 %v3743
    %5442 = vmatprep.subr.bf16.mxu0 0
    %5443 = vmatpush1.bf16.msra.mxu0 %v3744
    %5444 = vmatprep.subr.bf16.mxu0 0
    %5445 = vmatpush1.bf16.msra.mxu0 %v3745
    %5446 = vmatprep.subr.bf16.mxu0 0
    %5447 = vmatpush1.bf16.msra.mxu0 %v3746
    %5448 = vmatprep.subr.bf16.mxu0 0
    %5449 = vmatpush1.bf16.msra.mxu0 %v3747
    %5450 = vmatprep.subr.bf16.mxu0 0
    %5451 = vmatpush1.bf16.msra.mxu0 %v3748
    %5452 = vmatprep.subr.bf16.mxu0 0
    %5453 = vmatpush1.bf16.msra.mxu0 %v3749
    %5454 = vmatprep.subr.bf16.mxu0 0
    %5455 = vmatpush1.bf16.msra.mxu0 %v3750
    %5456 = vmatprep.subr.bf16.mxu0 0
    %5457 = vmatpush1.bf16.msra.mxu0 %v3751
    %5458 = vmatprep.subr.bf16.mxu0 0
    %5459 = vmatpush1.bf16.msra.mxu0 %v3752
    %5460 = vmatprep.subr.bf16.mxu0 0
    %5461 = vmatpush1.bf16.msra.mxu0 %v3753
    %5462 = vmatprep.subr.bf16.mxu0 0
    %5463 = vmatpush1.bf16.msra.mxu0 %v3754
    %5464 = vmatprep.subr.bf16.mxu0 0
    %5465 = vmatpush1.bf16.msra.mxu0 %v3755
    %5466 = vmatprep.subr.bf16.mxu0 0
    %5467 = vmatpush1.bf16.msra.mxu0 %v3756
    %5468 = vmatprep.subr.bf16.mxu0 0
    %5469 = vmatpush1.bf16.msra.mxu0 %v3757
    %5470 = vmatprep.mubr.bf16.mxu0 %v208
    %5471 = vmatmul.mubr.bf16.gmra.mrb[0].mxu0 %v207
    %v5472 = vpop.f32.mrb[0].mxu0
    %v5473 = vadd.f32 %v5433, %v5472
    %v5474 = vpop.f32.mrb[0].mxu0
    %v5475 = vpop.f32.mrb[0].mxu0
    %v5476 = vpop.f32.mrb[0].mxu0
    %5477 = vdwg.mxu0
    %5478 = vmatprep.subr.bf16.mxu0 0
    %5479 = vmatpush1.bf16.msra.mxu0 %v3758
    %5480 = vmatprep.subr.bf16.mxu0 0
    %5481 = vmatpush1.bf16.msra.mxu0 %v3759
    %5482 = vmatprep.subr.bf16.mxu0 0
    %5483 = vmatpush1.bf16.msra.mxu0 %v3760
    %5484 = vmatprep.subr.bf16.mxu0 0
    %5485 = vmatpush1.bf16.msra.mxu0 %v3761
    %5486 = vmatprep.subr.bf16.mxu0 0
    %5487 = vmatpush1.bf16.msra.mxu0 %v3762
    %5488 = vmatprep.subr.bf16.mxu0 0
    %5489 = vmatpush1.bf16.msra.mxu0 %v3763
    %5490 = vmatprep.subr.bf16.mxu0 0
    %5491 = vmatpush1.bf16.msra.mxu0 %v3764
    %5492 = vmatprep.subr.bf16.mxu0 0
    %5493 = vmatpush1.bf16.msra.mxu0 %v3765
    %5494 = vmatprep.subr.bf16.mxu0 0
    %5495 = vmatpush1.bf16.msra.mxu0 %v3766
    %5496 = vmatprep.subr.bf16.mxu0 0
    %5497 = vmatpush1.bf16.msra.mxu0 %v3767
    %5498 = vmatprep.subr.bf16.mxu0 0
    %5499 = vmatpush1.bf16.msra.mxu0 %v3768
    %5500 = vmatprep.subr.bf16.mxu0 0
    %5501 = vmatpush1.bf16.msra.mxu0 %v3769
    %5502 = vmatprep.subr.bf16.mxu0 0
    %5503 = vmatpush1.bf16.msra.mxu0 %v3770
    %5504 = vmatprep.subr.bf16.mxu0 0
    %5505 = vmatpush1.bf16.msra.mxu0 %v3771
    %5506 = vmatprep.subr.bf16.mxu0 0
    %5507 = vmatpush1.bf16.msra.mxu0 %v3772
    %5508 = vmatprep.subr.bf16.mxu0 0
    %5509 = vmatpush1.bf16.msra.mxu0 %v3773
    %5510 = vmatprep.mubr.bf16.mxu0 %v210
    %5511 = vmatmul.mubr.bf16.gmra.mrb[0].mxu0 %v209
    %v5512 = vpop.f32.mrb[0].mxu0
    %v5513 = vadd.f32 %v5473, %v5512
    %v5514 = vpop.f32.mrb[0].mxu0
    %v5515 = vpop.f32.mrb[0].mxu0
    %v5516 = vpop.f32.mrb[0].mxu0
    %5517 = vdwg.mxu0
    %5518 = vmatprep.subr.bf16.mxu0 0
    %5519 = vmatpush1.bf16.msra.mxu0 %v3774
    %5520 = vmatprep.subr.bf16.mxu0 0
    %5521 = vmatpush1.bf16.msra.mxu0 %v3775
    %5522 = vmatprep.subr.bf16.mxu0 0
    %5523 = vmatpush1.bf16.msra.mxu0 %v3776
    %5524 = vmatprep.subr.bf16.mxu0 0
    %5525 = vmatpush1.bf16.msra.mxu0 %v3777
    %5526 = vmatprep.subr.bf16.mxu0 0
    %5527 = vmatpush1.bf16.msra.mxu0 %v3778
    %5528 = vmatprep.subr.bf16.mxu0 0
    %5529 = vmatpush1.bf16.msra.mxu0 %v3779
    %5530 = vmatprep.subr.bf16.mxu0 0
    %5531 = vmatpush1.bf16.msra.mxu0 %v3780
    %5532 = vmatprep.subr.bf16.mxu0 0
    %5533 = vmatpush1.bf16.msra.mxu0 %v3781
    %5534 = vmatprep.subr.bf16.mxu0 0
    %5535 = vmatpush1.bf16.msra.mxu0 %v3782
    %5536 = vmatprep.subr.bf16.mxu0 0
    %5537 = vmatpush1.bf16.msra.mxu0 %v3783
    %5538 = vmatprep.subr.bf16.mxu0 0
    %5539 = vmatpush1.bf16.msra.mxu0 %v3784
    %5540 = vmatprep.subr.bf16.mxu0 0
    %5541 = vmatpush1.bf16.msra.mxu0 %v3785
    %5542 = vmatprep.subr.bf16.mxu0 0
    %5543 = vmatpush1.bf16.msra.mxu0 %v3786
    %5544 = vmatprep.subr.bf16.mxu0 0
    %5545 = vmatpush1.bf16.msra.mxu0 %v3787
    %5546 = vmatprep.subr.bf16.mxu0 0
    %5547 = vmatpush1.bf16.msra.mxu0 %v3788
    %5548 = vmatprep.subr.bf16.mxu0 0
    %5549 = vmatpush1.bf16.msra.mxu0 %v3789
    %5550 = vmatprep.mubr.bf16.mxu0 %v212
    %5551 = vmatmul.mubr.bf16.gmra.mrb[0].mxu0 %v211
    %v5552 = vpop.f32.mrb[0].mxu0
    %v5553 = vadd.f32 %v5513, %v5552
    %v5554 = vpop.f32.mrb[0].mxu0
    %v5555 = vpop.f32.mrb[0].mxu0
    %v5556 = vpop.f32.mrb[0].mxu0
    %5557 = vdwg.mxu0
    %5558 = vmatprep.subr.bf16.mxu0 0
    %5559 = vmatpush1.bf16.msra.mxu0 %v3790
    %5560 = vmatprep.subr.bf16.mxu0 0
    %5561 = vmatpush1.bf16.msra.mxu0 %v3791
    %5562 = vmatprep.subr.bf16.mxu0 0
    %5563 = vmatpush1.bf16.msra.mxu0 %v3792
    %5564 = vmatprep.subr.bf16.mxu0 0
    %5565 = vmatpush1.bf16.msra.mxu0 %v3793
    %5566 = vmatprep.subr.bf16.mxu0 0
    %5567 = vmatpush1.bf16.msra.mxu0 %v3794
    %5568 = vmatprep.subr.bf16.mxu0 0
    %5569 = vmatpush1.bf16.msra.mxu0 %v3795
    %5570 = vmatprep.subr.bf16.mxu0 0
    %5571 = vmatpush1.bf16.msra.mxu0 %v3796
    %5572 = vmatprep.subr.bf16.mxu0 0
    %5573 = vmatpush1.bf16.msra.mxu0 %v3797
    %5574 = vmatprep.subr.bf16.mxu0 0
    %5575 = vmatpush1.bf16.msra.mxu0 %v3798
    %5576 = vmatprep.subr.bf16.mxu0 0
    %5577 = vmatpush1.bf16.msra.mxu0 %v3799
    %5578 = vmatprep.subr.bf16.mxu0 0
    %5579 = vmatpush1.bf16.msra.mxu0 %v3800
    %5580 = vmatprep.subr.bf16.mxu0 0
    %5581 = vmatpush1.bf16.msra.mxu0 %v3801
    %5582 = vmatprep.subr.bf16.mxu0 0
    %5583 = vmatpush1.bf16.msra.mxu0 %v3802
    %5584 = vmatprep.subr.bf16.mxu0 0
    %5585 = vmatpush1.bf16.msra.mxu0 %v3803
    %5586 = vmatprep.subr.bf16.mxu0 0
    %5587 = vmatpush1.bf16.msra.mxu0 %v3804
    %5588 = vmatprep.subr.bf16.mxu0 0
    %5589 = vmatpush1.bf16.msra.mxu0 %v3805
    %5590 = vmatprep.mubr.bf16.mxu0 %v214
    %5591 = vmatmul.mubr.bf16.gmra.mrb[0].mxu0 %v213
    %v5592 = vpop.f32.mrb[0].mxu0
    %v5593 = vadd.f32 %v5553, %v5592
    %v5594 = vpop.f32.mrb[0].mxu0
    %v5595 = vpop.f32.mrb[0].mxu0
    %v5596 = vpop.f32.mrb[0].mxu0
    %5597 = vdwg.mxu0
    %v5598 = vmax.f32 %v5593, 0.0
    %v5599 = vld [vmem:[%s3] sm:$0xff]
    %v5600 = vld [vmem:[%s3 + $0x8] sm:$0xff]
    %v5601 = vld [vmem:[%s3 + $0x10] sm:$0xff]
    %v5602 = vld [vmem:[%s3 + $0x18] sm:$0xff]
    %v5603 = vld [vmem:[%s3 + $0x20] sm:$0xff]
    %v5604 = vld [vmem:[%s3 + $0x28] sm:$0xff]
    %v5605 = vld [vmem:[%s3 + $0x30] sm:$0xff]
    %v5606 = vld [vmem:[%s3 + $0x38] sm:$0xff]
    %v5607 = vld [vmem:[%s3 + $0x40] sm:$0xff]
    %v5608 = vld [vmem:[%s3 + $0x48] sm:$0xff]
    %v5609 = vld [vmem:[%s3 + $0x50] sm:$0xff]
    %v5610 = vld [vmem:[%s3 + $0x58] sm:$0xff]
    %v5611 = vld [vmem:[%s3 + $0x60] sm:$0xff]
    %v5612 = vld [vmem:[%s3 + $0x68] sm:$0xff]
    %v5613 = vld [vmem:[%s3 + $0x70] sm:$0xff]
    %v5614 = vld [vmem:[%s3 + $0x78] sm:$0xff]
    %v5615 = vld [vmem:[#allocation7] sm:$0x1]
    %v5617 = vlaneseq
    %v5618 = vshrl.u32 %v5617, 7
    %v5619 = vsub.s32 0, %v5618
    %v5620 = vrot.slane %v5615, %v5619
    %5622 = vmatprep.subr.mxu0 0.0
    %5623 = vmatpush1.msra.mxu0 %v5599
    %5624 = vmatprep.subr.mxu0 0.0
    %5625 = vmatpush1.msra.mxu0 %v5600
    %5626 = vmatprep.subr.mxu0 0.0
    %5627 = vmatpush1.msra.mxu0 %v5601
    %5628 = vmatprep.subr.mxu0 0.0
    %5629 = vmatpush1.msra.mxu0 %v5602
    %5630 = vmatprep.subr.mxu0 0.0
    %5631 = vmatpush1.msra.mxu0 %v5603
    %5632 = vmatprep.subr.mxu0 0.0
    %5633 = vmatpush1.msra.mxu0 %v5604
    %5634 = vmatprep.subr.mxu0 0.0
    %5635 = vmatpush1.msra.mxu0 %v5605
    %5636 = vmatprep.subr.mxu0 0.0
    %5637 = vmatpush1.msra.mxu0 %v5606
    %5638 = vmatprep.subr.mxu0 0.0
    %5639 = vmatpush1.msra.mxu0 %v5607
    %5640 = vmatprep.subr.mxu0 0.0
    %5641 = vmatpush1.msra.mxu0 %v5608
    %5642 = vmatprep.subr.mxu0 0.0
    %5643 = vmatpush1.msra.mxu0 %v5609
    %5644 = vmatprep.subr.mxu0 0.0
    %5645 = vmatpush1.msra.mxu0 %v5610
    %5646 = vmatprep.subr.mxu0 0.0
    %5647 = vmatpush1.msra.mxu0 %v5611
    %5648 = vmatprep.subr.mxu0 0.0
    %5649 = vmatpush1.msra.mxu0 %v5612
    %5650 = vmatprep.subr.mxu0 0.0
    %5651 = vmatpush1.msra.mxu0 %v5613
    %5652 = vmatprep.subr.mxu0 0.0
    %5653 = vmatpush1.msra.mxu0 %v5614
    %5654 = vmatprep.subr.mxu0 0.0
    %5655 = vmatpush1.msra.mxu0 0.0
    %5656 = vmatprep.subr.mxu0 0.0
    %5657 = vmatpush1.msra.mxu0 0.0
    %5658 = vmatprep.subr.mxu0 0.0
    %5659 = vmatpush1.msra.mxu0 0.0
    %5660 = vmatprep.subr.mxu0 0.0
    %5661 = vmatpush1.msra.mxu0 0.0
    %5662 = vmatprep.subr.mxu0 0.0
    %5663 = vmatpush1.msra.mxu0 0.0
    %5664 = vmatprep.subr.mxu0 0.0
    %5665 = vmatpush1.msra.mxu0 0.0
    %5666 = vmatprep.subr.mxu0 0.0
    %5667 = vmatpush1.msra.mxu0 0.0
    %5668 = vmatprep.subr.mxu0 0.0
    %5669 = vmatpush1.msra.mxu0 0.0
    %5670 = vmatprep.subr.mxu0 0.0
    %5671 = vmatpush1.msra.mxu0 0.0
    %5672 = vmatprep.subr.mxu0 0.0
    %5673 = vmatpush1.msra.mxu0 0.0
    %5674 = vmatprep.subr.mxu0 0.0
    %5675 = vmatpush1.msra.mxu0 0.0
    %5676 = vmatprep.subr.mxu0 0.0
    %5677 = vmatpush1.msra.mxu0 0.0
    %5678 = vmatprep.subr.mxu0 0.0
    %5679 = vmatpush1.msra.mxu0 0.0
    %5680 = vmatprep.subr.mxu0 0.0
    %5681 = vmatpush1.msra.mxu0 0.0
    %5682 = vmatprep.subr.mxu0 0.0
    %5683 = vmatpush1.msra.mxu0 0.0
    %5684 = vmatprep.subr.mxu0 0.0
    %5685 = vmatpush1.msra.mxu0 0.0
    %5686 = vmatprep.mubr.f32.mxu0 0.0
    %5687 = vmatmul.mubr.f32.gmra.mrb[0].mxu0 %v5598
    %v5688 = vpop.f32.mrb[0].mxu0
    %v5689 = vadd.f32 %v5620, %v5688
    %v5690 = vpop.f32.mrb[0].mxu0
    %5691 = vdwg.mxu0
    %v5692 = vmax.f32 %v5689, 0.0
    %v5693 = vld [vmem:[%s5] sm:$0xff]
    %v5694 = vld [vmem:[%s5 + $0x8] sm:$0xff]
    %v5695 = vld [vmem:[%s5 + $0x10] sm:$0xff]
    %v5696 = vld [vmem:[%s5 + $0x18] sm:$0xff]
    %v5697 = vld [vmem:[#allocation9] sm:$0x1]
    %v5699 = vlaneseq
    %v5700 = vshrl.u32 %v5699, 7
    %v5701 = vsub.s32 0, %v5700
    %v5702 = vrot.slane %v5697, %v5701
    %vm5704 = vcmask 261120
    %v5706 = vsel %vm5704, %v5692, 0
    %5708 = vmatprep.subr.mxu0 0.0
    %5709 = vmatpush1.msra.mxu0 %v5693
    %5710 = vmatprep.subr.mxu0 0.0
    %5711 = vmatpush1.msra.mxu0 %v5694
    %5712 = vmatprep.subr.mxu0 0.0
    %5713 = vmatpush1.msra.mxu0 %v5695
    %5714 = vmatprep.subr.mxu0 0.0
    %5715 = vmatpush1.msra.mxu0 %v5696
    %5716 = vmatprep.subr.mxu0 0.0
    %5717 = vmatpush1.msra.mxu0 0.0
    %5718 = vmatprep.subr.mxu0 0.0
    %5719 = vmatpush1.msra.mxu0 0.0
    %5720 = vmatprep.subr.mxu0 0.0
    %5721 = vmatpush1.msra.mxu0 0.0
    %5722 = vmatprep.subr.mxu0 0.0
    %5723 = vmatpush1.msra.mxu0 0.0
    %5724 = vmatprep.subr.mxu0 0.0
    %5725 = vmatpush1.msra.mxu0 0.0
    %5726 = vmatprep.subr.mxu0 0.0
    %5727 = vmatpush1.msra.mxu0 0.0
    %5728 = vmatprep.subr.mxu0 0.0
    %5729 = vmatpush1.msra.mxu0 0.0
    %5730 = vmatprep.subr.mxu0 0.0
    %5731 = vmatpush1.msra.mxu0 0.0
    %5732 = vmatprep.subr.mxu0 0.0
    %5733 = vmatpush1.msra.mxu0 0.0
    %5734 = vmatprep.subr.mxu0 0.0
    %5735 = vmatpush1.msra.mxu0 0.0
    %5736 = vmatprep.subr.mxu0 0.0
    %5737 = vmatpush1.msra.mxu0 0.0
    %5738 = vmatprep.subr.mxu0 0.0
    %5739 = vmatpush1.msra.mxu0 0.0
    %5740 = vmatprep.subr.mxu0 0.0
    %5741 = vmatpush1.msra.mxu0 0.0
    %5742 = vmatprep.subr.mxu0 0.0
    %5743 = vmatpush1.msra.mxu0 0.0
    %5744 = vmatprep.subr.mxu0 0.0
    %5745 = vmatpush1.msra.mxu0 0.0
    %5746 = vmatprep.subr.mxu0 0.0
    %5747 = vmatpush1.msra.mxu0 0.0
    %5748 = vmatprep.subr.mxu0 0.0
    %5749 = vmatpush1.msra.mxu0 0.0
    %5750 = vmatprep.subr.mxu0 0.0
    %5751 = vmatpush1.msra.mxu0 0.0
    %5752 = vmatprep.subr.mxu0 0.0
    %5753 = vmatpush1.msra.mxu0 0.0
    %5754 = vmatprep.subr.mxu0 0.0
    %5755 = vmatpush1.msra.mxu0 0.0
    %5756 = vmatprep.subr.mxu0 0.0
    %5757 = vmatpush1.msra.mxu0 0.0
    %5758 = vmatprep.subr.mxu0 0.0
    %5759 = vmatpush1.msra.mxu0 0.0
    %5760 = vmatprep.subr.mxu0 0.0
    %5761 = vmatpush1.msra.mxu0 0.0
    %5762 = vmatprep.subr.mxu0 0.0
    %5763 = vmatpush1.msra.mxu0 0.0
    %5764 = vmatprep.subr.mxu0 0.0
    %5765 = vmatpush1.msra.mxu0 0.0
    %5766 = vmatprep.subr.mxu0 0.0
    %5767 = vmatpush1.msra.mxu0 0.0
    %5768 = vmatprep.subr.mxu0 0.0
    %5769 = vmatpush1.msra.mxu0 0.0
    %5770 = vmatprep.subr.mxu0 0.0
    %5771 = vmatpush1.msra.mxu0 0.0
    %5772 = vmatprep.mubr.f32.mxu0 0.0
    %5773 = vmatmul.mubr.f32.gmra.mrb[0].mxu0 %v5706
    %v5774 = vpop.f32.mrb[0].mxu0
    %v5775 = vadd.f32 %v5702, %v5774
    %v5776 = vpop.f32.mrb[0].mxu0
    %5777 = vdwg.mxu0
    %vm5778 = vcmask 31744
    %5779 = vst.msk [vmem:[%s7] sm:$0xff] %vm5778, %v5775
    // Predicated region
    $region50: #{tpu_custom_call.1} parent=1 // pred_check
      _
    $region51: #{tpu_custom_call.1} parent=1 // pred_check_branch
      %5781 = sbr.rel (0) target = $region53
    $region52: #{tpu_custom_call.1} parent=1 // pred_region
      _
    $region53: #{tpu_custom_call.1} parent=1 // pred_fallthru
      _
    // Predicated region
    $region54: #{tpu_custom_call.1} parent=1 // pred_check
      _
    $region55: #{tpu_custom_call.1} parent=1 // pred_check_branch
      %5783 = sbr.rel (0) target = $region57
    $region56: #{tpu_custom_call.1} parent=1 // pred_region
      _
    $region57: #{tpu_custom_call.1} parent=1 // pred_fallthru
      _
    %5784 = vsyncpa [#allocation3], 1
    %5785 = vsyncpa [#allocation5], 1
    %5786 = vsyncpa [#allocation8], 1

</llo_original>
